<compile_context>
chip_gen: v7x
topology: tpu7x:2x2x1
jax: 0.10.0
libtpu: 0.0.40
codegen_flags: <defaults>
</compile_context>

<pallas_src>
import jax
import jax.numpy as jnp
import numpy as np
from jax import lax
from jax.experimental import pallas as pl
from jax.experimental.pallas import tpu as pltpu


def _choose_t_chunk(seq_len, batch, max_rows=1024):
    """Pick a time-chunk size: single chunk when small, else the largest divisor
    of seq_len whose flattened row count (t*batch) is a multiple of 8 (so that
    blocked specs stay (8,128)-legal) and stays within max_rows."""
    if seq_len * batch <= max_rows:
        return seq_len
    best = None
    for t in range(1, seq_len + 1):
        if seq_len % t == 0 and t * batch <= max_rows and (t * batch) % 8 == 0:
            best = t
    return best if best is not None else seq_len


def _make_kernel(*, tau_h, alpha_x, alpha_h, t_chunk, batch):
    inv_tau = 1.0 / float(tau_h)
    decay = 1.0 - inv_tau
    alpha_h = float(alpha_h)
    use_fb = float(alpha_x) > 0.0          # static branch, like `if self.alpha_x > 0`
    unroll = t_chunk <= 16                 # short fixed loop -> fully unroll

    def kernel(*refs):
        if use_fb:
            (x_ref, g_ref, h0_ref, c0_ref,
             w_rT_ref, b_r_ref, w_cT_ref, w_oT_ref, b_o_ref,
             W_oo_ref, w_c_ref,
             err_ref, h_scr, c_scr, u_scr) = refs
        else:
            (x_ref, h0_ref, c0_ref,
             w_rT_ref, b_r_ref, w_cT_ref, w_oT_ref, b_o_ref,
             err_ref, h_scr, u_scr) = refs

        mm_dtype = w_rT_ref.dtype          # f32 (default) or bf16 on v6e/v7x

        # Initialize the carried state on the first time-chunk only.
        @pl.when(pl.program_id(0) == 0)
        def _():
            h_scr[...] = h0_ref[...]
            if use_fb:
                c_scr[...] = c0_ref[...]

        if use_fb:
            def step(t, carry):
                h, c = carry
                th = jnp.tanh(h)
                rec = jnp.dot(th.astype(mm_dtype), w_rT_ref[...],
                              preferred_element_type=jnp.float32)
                cw = jnp.dot(c.astype(mm_dtype), w_cT_ref[...],
                             preferred_element_type=jnp.float32)
                h_prior = decay * h + inv_tau * (rec + cw + b_r_ref[...])
                u = jnp.tanh(h_prior)
                u_scr[pl.ds(t * batch, batch), :] = u      # slab for epilogue matmul
                # alpha_x * (error @ w_o)  ==  u @ W_oo + g[t]   (hoisted/fused)
                e_proj = jnp.dot(u.astype(mm_dtype), W_oo_ref[...],
                                 preferred_element_type=jnp.float32) \
                         + g_ref[pl.ds(t * batch, batch), :]
                error_h = (1.0 - u * u) * e_proj           # == h_prior - h_post
                h_post = h_prior - error_h
                c_new = c - alpha_h * jnp.dot(error_h.astype(mm_dtype), w_c_ref[...],
                                              preferred_element_type=jnp.float32)
                return h_post, c_new

            h_fin, c_fin = lax.fori_loop(0, t_chunk, step,
                                         (h_scr[...], c_scr[...]), unroll=unroll)
            h_scr[...] = h_fin
            c_scr[...] = c_fin
        else:
            # c never changes when alpha_x <= 0 -> hoist c @ w_c.T out of the loop.
            cw0 = jnp.dot(c0_ref[...].astype(mm_dtype), w_cT_ref[...],
                          preferred_element_type=jnp.float32) + b_r_ref[...]

            def step(t, h):
                th = jnp.tanh(h)
                rec = jnp.dot(th.astype(mm_dtype), w_rT_ref[...],
                              preferred_element_type=jnp.float32)
                h_prior = decay * h + inv_tau * (rec + cw0)
                u_scr[pl.ds(t * batch, batch), :] = jnp.tanh(h_prior)
                return h_prior

            h_fin = lax.fori_loop(0, t_chunk, step, h_scr[...], unroll=unroll)
            h_scr[...] = h_fin

        # Epilogue: one big (T_CHUNK*B, S) @ (S, O) matmul + single dense store.
        pred = jnp.dot(u_scr[...].astype(mm_dtype), w_oT_ref[...],
                       preferred_element_type=jnp.float32) + b_o_ref[...]
        err_ref[...] = (pred - x_ref[...]).astype(err_ref.dtype)

    return kernel


def pc_rnn_hc_a_forward(x, c_init, h_init, w_o, b_o, w_r, b_r, w_c, *,
                        tau_h, alpha_x, alpha_h,
                        t_chunk=None, matmul_dtype=jnp.float32):
    """Forward pass of PC_RNN_HC_A. Returns errors (seq_len, batch, output_dim).

    x      : (seq_len, batch, output_dim)
    c_init : (batch, causes_dim)
    h_init : scalar or (batch, states_dim)
    w_o (O,S), b_o (O,), w_r (S,S), b_r (S,), w_c (S,C)
    matmul_dtype: jnp.float32 (default) or jnp.bfloat16 (recommended on v6e/v7x
                  for large states_dim; accumulation stays f32).
    """
    x = jnp.asarray(x, jnp.float32)
    seq_len, batch, output_dim = x.shape
    states_dim = w_r.shape[0]
    causes_dim = w_c.shape[1]

    h_init = jnp.broadcast_to(jnp.asarray(h_init, jnp.float32), (batch, states_dim))
    c_init = jnp.asarray(c_init, jnp.float32).reshape(batch, causes_dim)

    if t_chunk is None:
        t_chunk = _choose_t_chunk(seq_len, batch)
    assert seq_len % t_chunk == 0
    num_chunks = seq_len // t_chunk
    rows = t_chunk * batch

    w_o = jnp.asarray(w_o, jnp.float32)
    w_r = jnp.asarray(w_r, jnp.float32)
    w_c = jnp.asarray(w_c, jnp.float32)
    b_o = jnp.asarray(b_o, jnp.float32)
    b_r = jnp.asarray(b_r, jnp.float32)

    # One-time weight prep (hoist/cache this if calling repeatedly under jit).
    w_rT = w_r.T.astype(matmul_dtype)                     # (S, S)
    w_oT = w_o.T.astype(matmul_dtype)                     # (S, O)
    w_cT = w_c.T.astype(matmul_dtype)                     # (C, S)
    b_r2 = b_r.reshape(1, states_dim)
    b_o2 = b_o.reshape(1, output_dim)

    x_flat = x.reshape(seq_len * batch, output_dim)       # lane-friendly 2-D layout

    use_fb = float(alpha_x) > 0.0
    kernel = _make_kernel(tau_h=float(tau_h), alpha_x=float(alpha_x),
                          alpha_h=float(alpha_h), t_chunk=t_chunk, batch=batch)

    def const2(shape):
        return pl.BlockSpec(shape, lambda i: (0, 0))

    def seq2(shape):
        return pl.BlockSpec(shape, lambda i: (i, 0))

    in_specs = [seq2((rows, output_dim))]                 # x (per time-chunk)
    operands = [x_flat]
    if use_fb:
        # Hoisted non-recurrent part of alpha_x * (error @ w_o):
        #   alpha_x*(error@w_o) = tanh(h_prior) @ W_oo + g[t]
        W_oo = (float(alpha_x) * (w_o.T @ w_o)).astype(matmul_dtype)   # (S, S)
        g_flat = float(alpha_x) * ((b_o2 - x_flat) @ w_o)              # (T*B, S)
        in_specs += [seq2((rows, states_dim))]
        operands += [g_flat]
    in_specs += [const2((batch, states_dim)),             # h_init
                 const2((batch, causes_dim)),             # c_init
                 const2((states_dim, states_dim)),        # w_r.T
                 const2((1, states_dim)),                 # b_r
                 const2((causes_dim, states_dim)),        # w_c.T
                 const2((states_dim, output_dim)),        # w_o.T
                 const2((1, output_dim))]                 # b_o
    operands += [h_init, c_init, w_rT, b_r2, w_cT, w_oT, b_o2]
    if use_fb:
        in_specs += [const2((states_dim, states_dim)),    # W_oo
                     const2((states_dim, causes_dim))]    # w_c
        operands += [W_oo, w_c.astype(matmul_dtype)]

    scratch = [pltpu.VMEM((batch, states_dim), jnp.float32)]            # h carry
    if use_fb:
        scratch += [pltpu.VMEM((batch, causes_dim), jnp.float32)]       # c carry
    scratch += [pltpu.VMEM((rows, states_dim), jnp.float32)]            # tanh(h_prior)

    grid_spec = pltpu.PrefetchScalarGridSpec(
        num_scalar_prefetch=0,
        grid=(num_chunks,),
        in_specs=in_specs,
        out_specs=pl.BlockSpec((rows, output_dim), lambda i: (i, 0)),
        scratch_shapes=scratch,
    )

    errors_flat = pl.pallas_call(
        kernel,
        out_shape=jax.ShapeDtypeStruct((seq_len * batch, output_dim), jnp.float32),
        grid_spec=grid_spec,
        compiler_params=pltpu.CompilerParams(
            dimension_semantics=("arbitrary",)),          # recurrence over time
    )(*operands)

    return errors_flat.reshape(seq_len, batch, output_dim)


def pc_rnn_hc_a_forward_ref(x, c_init, h_init, w_o, b_o, w_r, b_r, w_c, *,
                            tau_h, alpha_x, alpha_h):
    """Pure-JAX mirror of the PyTorch forward pass (step-by-step, no fusions)."""
    seq_len = x.shape[0]
    errors = []
    old_h = h_init
    c = c_init
    for t in range(seq_len):
        h_prior = (1 - 1 / tau_h) * old_h + (1 / tau_h) * (
            jnp.tanh(old_h) @ w_r.T + c @ w_c.T + b_r[None, :])
        x_pred = jnp.tanh(h_prior) @ w_o.T + b_o[None, :]
        error = x_pred - x[t]
        errors.append(error)
        if alpha_x > 0:
            h_post = h_prior - alpha_x * (1 - jnp.tanh(h_prior) ** 2) * (error @ w_o)
            error_h = h_prior - h_post
            c = c - alpha_h * (error_h @ w_c)
            old_h = h_post
        else:
            old_h = h_prior
    return jnp.stack(errors, axis=0)


if __name__ == "__main__":
    seq_len, batch = 8, 2
    states_dim, output_dim, causes_dim = 32, 8, 16
    tau_h, alpha_x, alpha_h = 2.0, 0.1, 0.1

    key = jax.random.PRNGKey(0)
    k1, k2, k3, k4, k5, k6, k7 = jax.random.split(key, 7)

    # Deterministic "randn"-style init with the same scaling as the module.
    w_o = jax.random.normal(k1, (output_dim, states_dim), jnp.float32) / states_dim
    b_o = jax.random.normal(k2, (output_dim,), jnp.float32) / 10.0
    w_r = jax.random.normal(k3, (states_dim, states_dim), jnp.float32) / states_dim
    b_r = jax.random.normal(k4, (states_dim,), jnp.float32) / 10.0
    w_c = jax.random.normal(k5, (states_dim, causes_dim), jnp.float32) / causes_dim

    x = jax.random.normal(k6, (seq_len, batch, output_dim), jnp.float32)
    c_init = jax.random.normal(k7, (batch, causes_dim), jnp.float32) / 10.0
    h_init = jnp.zeros((batch, states_dim), jnp.float32)   # module default h_init=0

    # alpha_x > 0 path (inference feedback + hidden-cause update).
    errors = pc_rnn_hc_a_forward(x, c_init, h_init, w_o, b_o, w_r, b_r, w_c,
                                 tau_h=tau_h, alpha_x=alpha_x, alpha_h=alpha_h)
    errors = jax.block_until_ready(errors)
    ref = pc_rnn_hc_a_forward_ref(x, c_init, h_init, w_o, b_o, w_r, b_r, w_c,
                                  tau_h=tau_h, alpha_x=alpha_x, alpha_h=alpha_h)
    # atol slightly above 1e-5: the hoisted W_oo / g fusions reorder f32 ops.
    np.testing.assert_allclose(np.asarray(errors), np.asarray(ref),
                               rtol=1e-5, atol=2e-5)

    # alpha_x <= 0 path (no feedback weights passed/DMA'd at all).
    errors0 = pc_rnn_hc_a_forward(x, c_init, h_init, w_o, b_o, w_r, b_r, w_c,
                                  tau_h=tau_h, alpha_x=0.0, alpha_h=alpha_h)
    ref0 = pc_rnn_hc_a_forward_ref(x, c_init, h_init, w_o, b_o, w_r, b_r, w_c,
                                   tau_h=tau_h, alpha_x=0.0, alpha_h=alpha_h)
    np.testing.assert_allclose(np.asarray(jax.block_until_ready(errors0)),
                               np.asarray(ref0), rtol=1e-5, atol=2e-5)

    print("KERNEL_OK")
</pallas_src>

<mosaic_0001>
module attributes {stable_mosaic.version = 11 : i64} {
  func.func @kernel(%arg0: i32, %arg1: memref<16x8xf32, #tpu.memory_space<vmem>>, %arg2: memref<16x32xf32, #tpu.memory_space<vmem>>, %arg3: memref<2x32xf32, #tpu.memory_space<vmem>>, %arg4: memref<2x16xf32, #tpu.memory_space<vmem>>, %arg5: memref<32x32xf32, #tpu.memory_space<vmem>>, %arg6: memref<1x32xf32, #tpu.memory_space<vmem>>, %arg7: memref<16x32xf32, #tpu.memory_space<vmem>>, %arg8: memref<32x8xf32, #tpu.memory_space<vmem>>, %arg9: memref<1x8xf32, #tpu.memory_space<vmem>>, %arg10: memref<32x32xf32, #tpu.memory_space<vmem>>, %arg11: memref<32x16xf32, #tpu.memory_space<vmem>>, %arg12: memref<16x8xf32, #tpu.memory_space<vmem>>, %arg13: memref<2x32xf32, #tpu.memory_space<vmem>>, %arg14: memref<2x16xf32, #tpu.memory_space<vmem>>, %arg15: memref<16x32xf32, #tpu.memory_space<vmem>>) attributes {dimension_semantics = [#tpu.dimension_semantics<arbitrary>], iteration_bounds = array<i64: 1>, scalar_prefetch = 0 : i64, scratch_operands = 3 : i64, tpu.core_type = #tpu.core_type<tc>, window_params = [{transform_indices = @transform_0, window_bounds = array<i64: 16, 8>}, {transform_indices = @transform_1, window_bounds = array<i64: 16, 32>}, {pipeline_mode = #tpu.pipeline_mode<synchronous>, transform_indices = @transform_2, window_bounds = array<i64: 2, 32>}, {pipeline_mode = #tpu.pipeline_mode<synchronous>, transform_indices = @transform_3, window_bounds = array<i64: 2, 16>}, {pipeline_mode = #tpu.pipeline_mode<synchronous>, transform_indices = @transform_4, window_bounds = array<i64: 32, 32>}, {pipeline_mode = #tpu.pipeline_mode<synchronous>, transform_indices = @transform_5, window_bounds = array<i64: 1, 32>}, {pipeline_mode = #tpu.pipeline_mode<synchronous>, transform_indices = @transform_6, window_bounds = array<i64: 16, 32>}, {pipeline_mode = #tpu.pipeline_mode<synchronous>, transform_indices = @transform_7, window_bounds = array<i64: 32, 8>}, {pipeline_mode = #tpu.pipeline_mode<synchronous>, transform_indices = @transform_8, window_bounds = array<i64: 1, 8>}, {pipeline_mode = #tpu.pipeline_mode<synchronous>, transform_indices = @transform_9, window_bounds = array<i64: 32, 32>}, {pipeline_mode = #tpu.pipeline_mode<synchronous>, transform_indices = @transform_10, window_bounds = array<i64: 32, 16>}, {transform_indices = @transform_11, window_bounds = array<i64: 16, 8>}]} {
    %c0_i32 = arith.constant 0 : i32
    %0 = arith.cmpi eq, %arg0, %c0_i32 : i32
    %1 = arith.extui %0 : i1 to i32
    %c0_i32_0 = arith.constant 0 : i32
    %2 = arith.cmpi ne, %1, %c0_i32_0 : i32
    scf.if %2 {
      %c0_195 = arith.constant 0 : index
      %c0_196 = arith.constant 0 : index
      %288 = vector.load %arg3[%c0_195, %c0_196] : memref<2x32xf32, #tpu.memory_space<vmem>>, vector<2x32xf32>
      %c0_197 = arith.constant 0 : index
      %c0_198 = arith.constant 0 : index
      %289 = vector.load %arg13[%c0_197, %c0_198] : memref<2x32xf32, #tpu.memory_space<vmem>>, vector<2x32xf32>
      tpu.vector_store %arg13[%c0_197, %c0_198], %288 {strides = array<i32>} : memref<2x32xf32, #tpu.memory_space<vmem>>, vector<2x32xf32>,
      %c0_199 = arith.constant 0 : index
      %c0_200 = arith.constant 0 : index
      %290 = vector.load %arg4[%c0_199, %c0_200] : memref<2x16xf32, #tpu.memory_space<vmem>>, vector<2x16xf32>
      %c0_201 = arith.constant 0 : index
      %c0_202 = arith.constant 0 : index
      %291 = vector.load %arg14[%c0_201, %c0_202] : memref<2x16xf32, #tpu.memory_space<vmem>>, vector<2x16xf32>
      tpu.vector_store %arg14[%c0_201, %c0_202], %290 {strides = array<i32>} : memref<2x16xf32, #tpu.memory_space<vmem>>, vector<2x16xf32>,
    } else {
    }
    %c0 = arith.constant 0 : index
    %c0_1 = arith.constant 0 : index
    %3 = vector.load %arg13[%c0, %c0_1] : memref<2x32xf32, #tpu.memory_space<vmem>>, vector<2x32xf32>
    %c0_2 = arith.constant 0 : index
    %c0_3 = arith.constant 0 : index
    %4 = vector.load %arg14[%c0_2, %c0_3] : memref<2x16xf32, #tpu.memory_space<vmem>>, vector<2x16xf32>
    %c0_i32_4 = arith.constant 0 : i32
    %5 = math.tanh %3 : vector<2x32xf32>
    %c0_5 = arith.constant 0 : index
    %c0_6 = arith.constant 0 : index
    %6 = vector.load %arg5[%c0_5, %c0_6] : memref<32x32xf32, #tpu.memory_space<vmem>>, vector<32x32xf32>
    %cst = arith.constant dense<0.000000e+00> : vector<2x32xf32>
    %7 = tpu.matmul %5, %6, %cst {dimension_numbers = #tpu.dot_dimension_numbers<[1], [0], [0], [1], [0, 0, 1, 1], [], []>} : vector<2x32xf32>, vector<32x32xf32>, vector<2x32xf32> -> vector<2x32xf32>
    %c0_7 = arith.constant 0 : index
    %c0_8 = arith.constant 0 : index
    %8 = vector.load %arg7[%c0_7, %c0_8] : memref<16x32xf32, #tpu.memory_space<vmem>>, vector<16x32xf32>
    %cst_9 = arith.constant dense<0.000000e+00> : vector<2x32xf32>
    %9 = tpu.matmul %4, %8, %cst_9 {dimension_numbers = #tpu.dot_dimension_numbers<[1], [0], [0], [1], [0, 0, 1, 1], [], []>} : vector<2x16xf32>, vector<16x32xf32>, vector<2x32xf32> -> vector<2x32xf32>
    %cst_10 = arith.constant 5.000000e-01 : f32
    %10 = vector.broadcast %cst_10 : f32 to vector<2x32xf32>
    %11 = arith.mulf %10, %3 : vector<2x32xf32>
    %12 = arith.addf %7, %9 : vector<2x32xf32>
    %c0_11 = arith.constant 0 : index
    %c0_12 = arith.constant 0 : index
    %13 = vector.load %arg6[%c0_11, %c0_12] : memref<1x32xf32, #tpu.memory_space<vmem>>, vector<1x32xf32>
    %14 = vector.broadcast %13 : vector<1x32xf32> to vector<2x32xf32>
    %15 = arith.addf %12, %14 : vector<2x32xf32>
    %cst_13 = arith.constant 5.000000e-01 : f32
    %16 = vector.broadcast %cst_13 : f32 to vector<2x32xf32>
    %17 = arith.mulf %16, %15 : vector<2x32xf32>
    %18 = arith.addf %11, %17 : vector<2x32xf32>
    %19 = math.tanh %18 : vector<2x32xf32>
    %c2_i32 = arith.constant 2 : i32
    %20 = arith.muli %c0_i32_4, %c2_i32 : i32
    %21 = arith.index_cast %20 : i32 to index
    %c0_14 = arith.constant 0 : index
    %22 = vector.load %arg15[%21, %c0_14] : memref<16x32xf32, #tpu.memory_space<vmem>>, vector<2x32xf32>
    tpu.vector_store %arg15[%21, %c0_14], %19 {strides = array<i32>} : memref<16x32xf32, #tpu.memory_space<vmem>>, vector<2x32xf32>,
    %c0_15 = arith.constant 0 : index
    %c0_16 = arith.constant 0 : index
    %23 = vector.load %arg10[%c0_15, %c0_16] : memref<32x32xf32, #tpu.memory_space<vmem>>, vector<32x32xf32>
    %cst_17 = arith.constant dense<0.000000e+00> : vector<2x32xf32>
    %24 = tpu.matmul %19, %23, %cst_17 {dimension_numbers = #tpu.dot_dimension_numbers<[1], [0], [0], [1], [0, 0, 1, 1], [], []>} : vector<2x32xf32>, vector<32x32xf32>, vector<2x32xf32> -> vector<2x32xf32>
    %c2_i32_18 = arith.constant 2 : i32
    %25 = arith.muli %c0_i32_4, %c2_i32_18 : i32
    %26 = arith.index_cast %25 : i32 to index
    %c0_19 = arith.constant 0 : index
    %27 = vector.load %arg2[%26, %c0_19] : memref<16x32xf32, #tpu.memory_space<vmem>>, vector<2x32xf32>
    %28 = arith.addf %24, %27 : vector<2x32xf32>
    %29 = arith.mulf %19, %19 : vector<2x32xf32>
    %cst_20 = arith.constant 1.000000e+00 : f32
    %30 = vector.broadcast %cst_20 : f32 to vector<2x32xf32>
    %31 = arith.subf %30, %29 : vector<2x32xf32>
    %32 = arith.mulf %31, %28 : vector<2x32xf32>
    %33 = arith.subf %18, %32 : vector<2x32xf32>
    %c0_21 = arith.constant 0 : index
    %c0_22 = arith.constant 0 : index
    %34 = vector.load %arg11[%c0_21, %c0_22] : memref<32x16xf32, #tpu.memory_space<vmem>>, vector<32x16xf32>
    %cst_23 = arith.constant dense<0.000000e+00> : vector<2x16xf32>
    %35 = tpu.matmul %32, %34, %cst_23 {dimension_numbers = #tpu.dot_dimension_numbers<[1], [0], [0], [1], [0, 0, 1, 1], [], []>} : vector<2x32xf32>, vector<32x16xf32>, vector<2x16xf32> -> vector<2x16xf32>
    %cst_24 = arith.constant 1.000000e-01 : f32
    %36 = vector.broadcast %cst_24 : f32 to vector<2x16xf32>
    %37 = arith.mulf %36, %35 : vector<2x16xf32>
    %38 = arith.subf %4, %37 : vector<2x16xf32>
    %c1_i32 = arith.constant 1 : i32
    %39 = math.tanh %33 : vector<2x32xf32>
    %c0_25 = arith.constant 0 : index
    %c0_26 = arith.constant 0 : index
    %40 = vector.load %arg5[%c0_25, %c0_26] : memref<32x32xf32, #tpu.memory_space<vmem>>, vector<32x32xf32>
    %cst_27 = arith.constant dense<0.000000e+00> : vector<2x32xf32>
    %41 = tpu.matmul %39, %40, %cst_27 {dimension_numbers = #tpu.dot_dimension_numbers<[1], [0], [0], [1], [0, 0, 1, 1], [], []>} : vector<2x32xf32>, vector<32x32xf32>, vector<2x32xf32> -> vector<2x32xf32>
    %c0_28 = arith.constant 0 : index
    %c0_29 = arith.constant 0 : index
    %42 = vector.load %arg7[%c0_28, %c0_29] : memref<16x32xf32, #tpu.memory_space<vmem>>, vector<16x32xf32>
    %cst_30 = arith.constant dense<0.000000e+00> : vector<2x32xf32>
    %43 = tpu.matmul %38, %42, %cst_30 {dimension_numbers = #tpu.dot_dimension_numbers<[1], [0], [0], [1], [0, 0, 1, 1], [], []>} : vector<2x16xf32>, vector<16x32xf32>, vector<2x32xf32> -> vector<2x32xf32>
    %cst_31 = arith.constant 5.000000e-01 : f32
    %44 = vector.broadcast %cst_31 : f32 to vector<2x32xf32>
    %45 = arith.mulf %44, %33 : vector<2x32xf32>
    %46 = arith.addf %41, %43 : vector<2x32xf32>
    %c0_32 = arith.constant 0 : index
    %c0_33 = arith.constant 0 : index
    %47 = vector.load %arg6[%c0_32, %c0_33] : memref<1x32xf32, #tpu.memory_space<vmem>>, vector<1x32xf32>
    %48 = vector.broadcast %47 : vector<1x32xf32> to vector<2x32xf32>
    %49 = arith.addf %46, %48 : vector<2x32xf32>
    %cst_34 = arith.constant 5.000000e-01 : f32
    %50 = vector.broadcast %cst_34 : f32 to vector<2x32xf32>
    %51 = arith.mulf %50, %49 : vector<2x32xf32>
    %52 = arith.addf %45, %51 : vector<2x32xf32>
    %53 = math.tanh %52 : vector<2x32xf32>
    %c2_i32_35 = arith.constant 2 : i32
    %54 = arith.muli %c1_i32, %c2_i32_35 : i32
    %55 = arith.index_cast %54 : i32 to index
    %c0_36 = arith.constant 0 : index
    %56 = vector.load %arg15[%55, %c0_36] : memref<16x32xf32, #tpu.memory_space<vmem>>, vector<2x32xf32>
    tpu.vector_store %arg15[%55, %c0_36], %53 {strides = array<i32>} : memref<16x32xf32, #tpu.memory_space<vmem>>, vector<2x32xf32>,
    %c0_37 = arith.constant 0 : index
    %c0_38 = arith.constant 0 : index
    %57 = vector.load %arg10[%c0_37, %c0_38] : memref<32x32xf32, #tpu.memory_space<vmem>>, vector<32x32xf32>
    %cst_39 = arith.constant dense<0.000000e+00> : vector<2x32xf32>
    %58 = tpu.matmul %53, %57, %cst_39 {dimension_numbers = #tpu.dot_dimension_numbers<[1], [0], [0], [1], [0, 0, 1, 1], [], []>} : vector<2x32xf32>, vector<32x32xf32>, vector<2x32xf32> -> vector<2x32xf32>
    %c2_i32_40 = arith.constant 2 : i32
    %59 = arith.muli %c1_i32, %c2_i32_40 : i32
    %60 = arith.index_cast %59 : i32 to index
    %c0_41 = arith.constant 0 : index
    %61 = vector.load %arg2[%60, %c0_41] : memref<16x32xf32, #tpu.memory_space<vmem>>, vector<2x32xf32>
    %62 = arith.addf %58, %61 : vector<2x32xf32>
    %63 = arith.mulf %53, %53 : vector<2x32xf32>
    %cst_42 = arith.constant 1.000000e+00 : f32
    %64 = vector.broadcast %cst_42 : f32 to vector<2x32xf32>
    %65 = arith.subf %64, %63 : vector<2x32xf32>
    %66 = arith.mulf %65, %62 : vector<2x32xf32>
    %67 = arith.subf %52, %66 : vector<2x32xf32>
    %c0_43 = arith.constant 0 : index
    %c0_44 = arith.constant 0 : index
    %68 = vector.load %arg11[%c0_43, %c0_44] : memref<32x16xf32, #tpu.memory_space<vmem>>, vector<32x16xf32>
    %cst_45 = arith.constant dense<0.000000e+00> : vector<2x16xf32>
    %69 = tpu.matmul %66, %68, %cst_45 {dimension_numbers = #tpu.dot_dimension_numbers<[1], [0], [0], [1], [0, 0, 1, 1], [], []>} : vector<2x32xf32>, vector<32x16xf32>, vector<2x16xf32> -> vector<2x16xf32>
    %cst_46 = arith.constant 1.000000e-01 : f32
    %70 = vector.broadcast %cst_46 : f32 to vector<2x16xf32>
    %71 = arith.mulf %70, %69 : vector<2x16xf32>
    %72 = arith.subf %38, %71 : vector<2x16xf32>
    %c2_i32_47 = arith.constant 2 : i32
    %73 = math.tanh %67 : vector<2x32xf32>
    %c0_48 = arith.constant 0 : index
    %c0_49 = arith.constant 0 : index
    %74 = vector.load %arg5[%c0_48, %c0_49] : memref<32x32xf32, #tpu.memory_space<vmem>>, vector<32x32xf32>
    %cst_50 = arith.constant dense<0.000000e+00> : vector<2x32xf32>
    %75 = tpu.matmul %73, %74, %cst_50 {dimension_numbers = #tpu.dot_dimension_numbers<[1], [0], [0], [1], [0, 0, 1, 1], [], []>} : vector<2x32xf32>, vector<32x32xf32>, vector<2x32xf32> -> vector<2x32xf32>
    %c0_51 = arith.constant 0 : index
    %c0_52 = arith.constant 0 : index
    %76 = vector.load %arg7[%c0_51, %c0_52] : memref<16x32xf32, #tpu.memory_space<vmem>>, vector<16x32xf32>
    %cst_53 = arith.constant dense<0.000000e+00> : vector<2x32xf32>
    %77 = tpu.matmul %72, %76, %cst_53 {dimension_numbers = #tpu.dot_dimension_numbers<[1], [0], [0], [1], [0, 0, 1, 1], [], []>} : vector<2x16xf32>, vector<16x32xf32>, vector<2x32xf32> -> vector<2x32xf32>
    %cst_54 = arith.constant 5.000000e-01 : f32
    %78 = vector.broadcast %cst_54 : f32 to vector<2x32xf32>
    %79 = arith.mulf %78, %67 : vector<2x32xf32>
    %80 = arith.addf %75, %77 : vector<2x32xf32>
    %c0_55 = arith.constant 0 : index
    %c0_56 = arith.constant 0 : index
    %81 = vector.load %arg6[%c0_55, %c0_56] : memref<1x32xf32, #tpu.memory_space<vmem>>, vector<1x32xf32>
    %82 = vector.broadcast %81 : vector<1x32xf32> to vector<2x32xf32>
    %83 = arith.addf %80, %82 : vector<2x32xf32>
    %cst_57 = arith.constant 5.000000e-01 : f32
    %84 = vector.broadcast %cst_57 : f32 to vector<2x32xf32>
    %85 = arith.mulf %84, %83 : vector<2x32xf32>
    %86 = arith.addf %79, %85 : vector<2x32xf32>
    %87 = math.tanh %86 : vector<2x32xf32>
    %c2_i32_58 = arith.constant 2 : i32
    %88 = arith.muli %c2_i32_47, %c2_i32_58 : i32
    %89 = arith.index_cast %88 : i32 to index
    %c0_59 = arith.constant 0 : index
    %90 = vector.load %arg15[%89, %c0_59] : memref<16x32xf32, #tpu.memory_space<vmem>>, vector<2x32xf32>
    tpu.vector_store %arg15[%89, %c0_59], %87 {strides = array<i32>} : memref<16x32xf32, #tpu.memory_space<vmem>>, vector<2x32xf32>,
    %c0_60 = arith.constant 0 : index
    %c0_61 = arith.constant 0 : index
    %91 = vector.load %arg10[%c0_60, %c0_61] : memref<32x32xf32, #tpu.memory_space<vmem>>, vector<32x32xf32>
    %cst_62 = arith.constant dense<0.000000e+00> : vector<2x32xf32>
    %92 = tpu.matmul %87, %91, %cst_62 {dimension_numbers = #tpu.dot_dimension_numbers<[1], [0], [0], [1], [0, 0, 1, 1], [], []>} : vector<2x32xf32>, vector<32x32xf32>, vector<2x32xf32> -> vector<2x32xf32>
    %c2_i32_63 = arith.constant 2 : i32
    %93 = arith.muli %c2_i32_47, %c2_i32_63 : i32
    %94 = arith.index_cast %93 : i32 to index
    %c0_64 = arith.constant 0 : index
    %95 = vector.load %arg2[%94, %c0_64] : memref<16x32xf32, #tpu.memory_space<vmem>>, vector<2x32xf32>
    %96 = arith.addf %92, %95 : vector<2x32xf32>
    %97 = arith.mulf %87, %87 : vector<2x32xf32>
    %cst_65 = arith.constant 1.000000e+00 : f32
    %98 = vector.broadcast %cst_65 : f32 to vector<2x32xf32>
    %99 = arith.subf %98, %97 : vector<2x32xf32>
    %100 = arith.mulf %99, %96 : vector<2x32xf32>
    %101 = arith.subf %86, %100 : vector<2x32xf32>
    %c0_66 = arith.constant 0 : index
    %c0_67 = arith.constant 0 : index
    %102 = vector.load %arg11[%c0_66, %c0_67] : memref<32x16xf32, #tpu.memory_space<vmem>>, vector<32x16xf32>
    %cst_68 = arith.constant dense<0.000000e+00> : vector<2x16xf32>
    %103 = tpu.matmul %100, %102, %cst_68 {dimension_numbers = #tpu.dot_dimension_numbers<[1], [0], [0], [1], [0, 0, 1, 1], [], []>} : vector<2x32xf32>, vector<32x16xf32>, vector<2x16xf32> -> vector<2x16xf32>
    %cst_69 = arith.constant 1.000000e-01 : f32
    %104 = vector.broadcast %cst_69 : f32 to vector<2x16xf32>
    %105 = arith.mulf %104, %103 : vector<2x16xf32>
    %106 = arith.subf %72, %105 : vector<2x16xf32>
    %c3_i32 = arith.constant 3 : i32
    %107 = math.tanh %101 : vector<2x32xf32>
    %c0_70 = arith.constant 0 : index
    %c0_71 = arith.constant 0 : index
    %108 = vector.load %arg5[%c0_70, %c0_71] : memref<32x32xf32, #tpu.memory_space<vmem>>, vector<32x32xf32>
    %cst_72 = arith.constant dense<0.000000e+00> : vector<2x32xf32>
    %109 = tpu.matmul %107, %108, %cst_72 {dimension_numbers = #tpu.dot_dimension_numbers<[1], [0], [0], [1], [0, 0, 1, 1], [], []>} : vector<2x32xf32>, vector<32x32xf32>, vector<2x32xf32> -> vector<2x32xf32>
    %c0_73 = arith.constant 0 : index
    %c0_74 = arith.constant 0 : index
    %110 = vector.load %arg7[%c0_73, %c0_74] : memref<16x32xf32, #tpu.memory_space<vmem>>, vector<16x32xf32>
    %cst_75 = arith.constant dense<0.000000e+00> : vector<2x32xf32>
    %111 = tpu.matmul %106, %110, %cst_75 {dimension_numbers = #tpu.dot_dimension_numbers<[1], [0], [0], [1], [0, 0, 1, 1], [], []>} : vector<2x16xf32>, vector<16x32xf32>, vector<2x32xf32> -> vector<2x32xf32>
    %cst_76 = arith.constant 5.000000e-01 : f32
    %112 = vector.broadcast %cst_76 : f32 to vector<2x32xf32>
    %113 = arith.mulf %112, %101 : vector<2x32xf32>
    %114 = arith.addf %109, %111 : vector<2x32xf32>
    %c0_77 = arith.constant 0 : index
    %c0_78 = arith.constant 0 : index
    %115 = vector.load %arg6[%c0_77, %c0_78] : memref<1x32xf32, #tpu.memory_space<vmem>>, vector<1x32xf32>
    %116 = vector.broadcast %115 : vector<1x32xf32> to vector<2x32xf32>
    %117 = arith.addf %114, %116 : vector<2x32xf32>
    %cst_79 = arith.constant 5.000000e-01 : f32
    %118 = vector.broadcast %cst_79 : f32 to vector<2x32xf32>
    %119 = arith.mulf %118, %117 : vector<2x32xf32>
    %120 = arith.addf %113, %119 : vector<2x32xf32>
    %121 = math.tanh %120 : vector<2x32xf32>
    %c2_i32_80 = arith.constant 2 : i32
    %122 = arith.muli %c3_i32, %c2_i32_80 : i32
    %123 = arith.index_cast %122 : i32 to index
    %c0_81 = arith.constant 0 : index
    %124 = vector.load %arg15[%123, %c0_81] : memref<16x32xf32, #tpu.memory_space<vmem>>, vector<2x32xf32>
    tpu.vector_store %arg15[%123, %c0_81], %121 {strides = array<i32>} : memref<16x32xf32, #tpu.memory_space<vmem>>, vector<2x32xf32>,
    %c0_82 = arith.constant 0 : index
    %c0_83 = arith.constant 0 : index
    %125 = vector.load %arg10[%c0_82, %c0_83] : memref<32x32xf32, #tpu.memory_space<vmem>>, vector<32x32xf32>
    %cst_84 = arith.constant dense<0.000000e+00> : vector<2x32xf32>
    %126 = tpu.matmul %121, %125, %cst_84 {dimension_numbers = #tpu.dot_dimension_numbers<[1], [0], [0], [1], [0, 0, 1, 1], [], []>} : vector<2x32xf32>, vector<32x32xf32>, vector<2x32xf32> -> vector<2x32xf32>
    %c2_i32_85 = arith.constant 2 : i32
    %127 = arith.muli %c3_i32, %c2_i32_85 : i32
    %128 = arith.index_cast %127 : i32 to index
    %c0_86 = arith.constant 0 : index
    %129 = vector.load %arg2[%128, %c0_86] : memref<16x32xf32, #tpu.memory_space<vmem>>, vector<2x32xf32>
    %130 = arith.addf %126, %129 : vector<2x32xf32>
    %131 = arith.mulf %121, %121 : vector<2x32xf32>
    %cst_87 = arith.constant 1.000000e+00 : f32
    %132 = vector.broadcast %cst_87 : f32 to vector<2x32xf32>
    %133 = arith.subf %132, %131 : vector<2x32xf32>
    %134 = arith.mulf %133, %130 : vector<2x32xf32>
    %135 = arith.subf %120, %134 : vector<2x32xf32>
    %c0_88 = arith.constant 0 : index
    %c0_89 = arith.constant 0 : index
    %136 = vector.load %arg11[%c0_88, %c0_89] : memref<32x16xf32, #tpu.memory_space<vmem>>, vector<32x16xf32>
    %cst_90 = arith.constant dense<0.000000e+00> : vector<2x16xf32>
    %137 = tpu.matmul %134, %136, %cst_90 {dimension_numbers = #tpu.dot_dimension_numbers<[1], [0], [0], [1], [0, 0, 1, 1], [], []>} : vector<2x32xf32>, vector<32x16xf32>, vector<2x16xf32> -> vector<2x16xf32>
    %cst_91 = arith.constant 1.000000e-01 : f32
    %138 = vector.broadcast %cst_91 : f32 to vector<2x16xf32>
    %139 = arith.mulf %138, %137 : vector<2x16xf32>
    %140 = arith.subf %106, %139 : vector<2x16xf32>
    %c4_i32 = arith.constant 4 : i32
    %141 = math.tanh %135 : vector<2x32xf32>
    %c0_92 = arith.constant 0 : index
    %c0_93 = arith.constant 0 : index
    %142 = vector.load %arg5[%c0_92, %c0_93] : memref<32x32xf32, #tpu.memory_space<vmem>>, vector<32x32xf32>
    %cst_94 = arith.constant dense<0.000000e+00> : vector<2x32xf32>
    %143 = tpu.matmul %141, %142, %cst_94 {dimension_numbers = #tpu.dot_dimension_numbers<[1], [0], [0], [1], [0, 0, 1, 1], [], []>} : vector<2x32xf32>, vector<32x32xf32>, vector<2x32xf32> -> vector<2x32xf32>
    %c0_95 = arith.constant 0 : index
    %c0_96 = arith.constant 0 : index
    %144 = vector.load %arg7[%c0_95, %c0_96] : memref<16x32xf32, #tpu.memory_space<vmem>>, vector<16x32xf32>
    %cst_97 = arith.constant dense<0.000000e+00> : vector<2x32xf32>
    %145 = tpu.matmul %140, %144, %cst_97 {dimension_numbers = #tpu.dot_dimension_numbers<[1], [0], [0], [1], [0, 0, 1, 1], [], []>} : vector<2x16xf32>, vector<16x32xf32>, vector<2x32xf32> -> vector<2x32xf32>
    %cst_98 = arith.constant 5.000000e-01 : f32
    %146 = vector.broadcast %cst_98 : f32 to vector<2x32xf32>
    %147 = arith.mulf %146, %135 : vector<2x32xf32>
    %148 = arith.addf %143, %145 : vector<2x32xf32>
    %c0_99 = arith.constant 0 : index
    %c0_100 = arith.constant 0 : index
    %149 = vector.load %arg6[%c0_99, %c0_100] : memref<1x32xf32, #tpu.memory_space<vmem>>, vector<1x32xf32>
    %150 = vector.broadcast %149 : vector<1x32xf32> to vector<2x32xf32>
    %151 = arith.addf %148, %150 : vector<2x32xf32>
    %cst_101 = arith.constant 5.000000e-01 : f32
    %152 = vector.broadcast %cst_101 : f32 to vector<2x32xf32>
    %153 = arith.mulf %152, %151 : vector<2x32xf32>
    %154 = arith.addf %147, %153 : vector<2x32xf32>
    %155 = math.tanh %154 : vector<2x32xf32>
    %c2_i32_102 = arith.constant 2 : i32
    %156 = arith.muli %c4_i32, %c2_i32_102 : i32
    %157 = arith.index_cast %156 : i32 to index
    %c0_103 = arith.constant 0 : index
    %158 = vector.load %arg15[%157, %c0_103] : memref<16x32xf32, #tpu.memory_space<vmem>>, vector<2x32xf32>
    tpu.vector_store %arg15[%157, %c0_103], %155 {strides = array<i32>} : memref<16x32xf32, #tpu.memory_space<vmem>>, vector<2x32xf32>,
    %c0_104 = arith.constant 0 : index
    %c0_105 = arith.constant 0 : index
    %159 = vector.load %arg10[%c0_104, %c0_105] : memref<32x32xf32, #tpu.memory_space<vmem>>, vector<32x32xf32>
    %cst_106 = arith.constant dense<0.000000e+00> : vector<2x32xf32>
    %160 = tpu.matmul %155, %159, %cst_106 {dimension_numbers = #tpu.dot_dimension_numbers<[1], [0], [0], [1], [0, 0, 1, 1], [], []>} : vector<2x32xf32>, vector<32x32xf32>, vector<2x32xf32> -> vector<2x32xf32>
    %c2_i32_107 = arith.constant 2 : i32
    %161 = arith.muli %c4_i32, %c2_i32_107 : i32
    %162 = arith.index_cast %161 : i32 to index
    %c0_108 = arith.constant 0 : index
    %163 = vector.load %arg2[%162, %c0_108] : memref<16x32xf32, #tpu.memory_space<vmem>>, vector<2x32xf32>
    %164 = arith.addf %160, %163 : vector<2x32xf32>
    %165 = arith.mulf %155, %155 : vector<2x32xf32>
    %cst_109 = arith.constant 1.000000e+00 : f32
    %166 = vector.broadcast %cst_109 : f32 to vector<2x32xf32>
    %167 = arith.subf %166, %165 : vector<2x32xf32>
    %168 = arith.mulf %167, %164 : vector<2x32xf32>
    %169 = arith.subf %154, %168 : vector<2x32xf32>
    %c0_110 = arith.constant 0 : index
    %c0_111 = arith.constant 0 : index
    %170 = vector.load %arg11[%c0_110, %c0_111] : memref<32x16xf32, #tpu.memory_space<vmem>>, vector<32x16xf32>
    %cst_112 = arith.constant dense<0.000000e+00> : vector<2x16xf32>
    %171 = tpu.matmul %168, %170, %cst_112 {dimension_numbers = #tpu.dot_dimension_numbers<[1], [0], [0], [1], [0, 0, 1, 1], [], []>} : vector<2x32xf32>, vector<32x16xf32>, vector<2x16xf32> -> vector<2x16xf32>
    %cst_113 = arith.constant 1.000000e-01 : f32
    %172 = vector.broadcast %cst_113 : f32 to vector<2x16xf32>
    %173 = arith.mulf %172, %171 : vector<2x16xf32>
    %174 = arith.subf %140, %173 : vector<2x16xf32>
    %c5_i32 = arith.constant 5 : i32
    %175 = math.tanh %169 : vector<2x32xf32>
    %c0_114 = arith.constant 0 : index
    %c0_115 = arith.constant 0 : index
    %176 = vector.load %arg5[%c0_114, %c0_115] : memref<32x32xf32, #tpu.memory_space<vmem>>, vector<32x32xf32>
    %cst_116 = arith.constant dense<0.000000e+00> : vector<2x32xf32>
    %177 = tpu.matmul %175, %176, %cst_116 {dimension_numbers = #tpu.dot_dimension_numbers<[1], [0], [0], [1], [0, 0, 1, 1], [], []>} : vector<2x32xf32>, vector<32x32xf32>, vector<2x32xf32> -> vector<2x32xf32>
    %c0_117 = arith.constant 0 : index
    %c0_118 = arith.constant 0 : index
    %178 = vector.load %arg7[%c0_117, %c0_118] : memref<16x32xf32, #tpu.memory_space<vmem>>, vector<16x32xf32>
    %cst_119 = arith.constant dense<0.000000e+00> : vector<2x32xf32>
    %179 = tpu.matmul %174, %178, %cst_119 {dimension_numbers = #tpu.dot_dimension_numbers<[1], [0], [0], [1], [0, 0, 1, 1], [], []>} : vector<2x16xf32>, vector<16x32xf32>, vector<2x32xf32> -> vector<2x32xf32>
    %cst_120 = arith.constant 5.000000e-01 : f32
    %180 = vector.broadcast %cst_120 : f32 to vector<2x32xf32>
    %181 = arith.mulf %180, %169 : vector<2x32xf32>
    %182 = arith.addf %177, %179 : vector<2x32xf32>
    %c0_121 = arith.constant 0 : index
    %c0_122 = arith.constant 0 : index
    %183 = vector.load %arg6[%c0_121, %c0_122] : memref<1x32xf32, #tpu.memory_space<vmem>>, vector<1x32xf32>
    %184 = vector.broadcast %183 : vector<1x32xf32> to vector<2x32xf32>
    %185 = arith.addf %182, %184 : vector<2x32xf32>
    %cst_123 = arith.constant 5.000000e-01 : f32
    %186 = vector.broadcast %cst_123 : f32 to vector<2x32xf32>
    %187 = arith.mulf %186, %185 : vector<2x32xf32>
    %188 = arith.addf %181, %187 : vector<2x32xf32>
    %189 = math.tanh %188 : vector<2x32xf32>
    %c2_i32_124 = arith.constant 2 : i32
    %190 = arith.muli %c5_i32, %c2_i32_124 : i32
    %191 = arith.index_cast %190 : i32 to index
    %c0_125 = arith.constant 0 : index
    %192 = vector.load %arg15[%191, %c0_125] : memref<16x32xf32, #tpu.memory_space<vmem>>, vector<2x32xf32>
    tpu.vector_store %arg15[%191, %c0_125], %189 {strides = array<i32>} : memref<16x32xf32, #tpu.memory_space<vmem>>, vector<2x32xf32>,
    %c0_126 = arith.constant 0 : index
    %c0_127 = arith.constant 0 : index
    %193 = vector.load %arg10[%c0_126, %c0_127] : memref<32x32xf32, #tpu.memory_space<vmem>>, vector<32x32xf32>
    %cst_128 = arith.constant dense<0.000000e+00> : vector<2x32xf32>
    %194 = tpu.matmul %189, %193, %cst_128 {dimension_numbers = #tpu.dot_dimension_numbers<[1], [0], [0], [1], [0, 0, 1, 1], [], []>} : vector<2x32xf32>, vector<32x32xf32>, vector<2x32xf32> -> vector<2x32xf32>
    %c2_i32_129 = arith.constant 2 : i32
    %195 = arith.muli %c5_i32, %c2_i32_129 : i32
    %196 = arith.index_cast %195 : i32 to index
    %c0_130 = arith.constant 0 : index
    %197 = vector.load %arg2[%196, %c0_130] : memref<16x32xf32, #tpu.memory_space<vmem>>, vector<2x32xf32>
    %198 = arith.addf %194, %197 : vector<2x32xf32>
    %199 = arith.mulf %189, %189 : vector<2x32xf32>
    %cst_131 = arith.constant 1.000000e+00 : f32
    %200 = vector.broadcast %cst_131 : f32 to vector<2x32xf32>
    %201 = arith.subf %200, %199 : vector<2x32xf32>
    %202 = arith.mulf %201, %198 : vector<2x32xf32>
    %203 = arith.subf %188, %202 : vector<2x32xf32>
    %c0_132 = arith.constant 0 : index
    %c0_133 = arith.constant 0 : index
    %204 = vector.load %arg11[%c0_132, %c0_133] : memref<32x16xf32, #tpu.memory_space<vmem>>, vector<32x16xf32>
    %cst_134 = arith.constant dense<0.000000e+00> : vector<2x16xf32>
    %205 = tpu.matmul %202, %204, %cst_134 {dimension_numbers = #tpu.dot_dimension_numbers<[1], [0], [0], [1], [0, 0, 1, 1], [], []>} : vector<2x32xf32>, vector<32x16xf32>, vector<2x16xf32> -> vector<2x16xf32>
    %cst_135 = arith.constant 1.000000e-01 : f32
    %206 = vector.broadcast %cst_135 : f32 to vector<2x16xf32>
    %207 = arith.mulf %206, %205 : vector<2x16xf32>
    %208 = arith.subf %174, %207 : vector<2x16xf32>
    %c6_i32 = arith.constant 6 : i32
    %209 = math.tanh %203 : vector<2x32xf32>
    %c0_136 = arith.constant 0 : index
    %c0_137 = arith.constant 0 : index
    %210 = vector.load %arg5[%c0_136, %c0_137] : memref<32x32xf32, #tpu.memory_space<vmem>>, vector<32x32xf32>
    %cst_138 = arith.constant dense<0.000000e+00> : vector<2x32xf32>
    %211 = tpu.matmul %209, %210, %cst_138 {dimension_numbers = #tpu.dot_dimension_numbers<[1], [0], [0], [1], [0, 0, 1, 1], [], []>} : vector<2x32xf32>, vector<32x32xf32>, vector<2x32xf32> -> vector<2x32xf32>
    %c0_139 = arith.constant 0 : index
    %c0_140 = arith.constant 0 : index
    %212 = vector.load %arg7[%c0_139, %c0_140] : memref<16x32xf32, #tpu.memory_space<vmem>>, vector<16x32xf32>
    %cst_141 = arith.constant dense<0.000000e+00> : vector<2x32xf32>
    %213 = tpu.matmul %208, %212, %cst_141 {dimension_numbers = #tpu.dot_dimension_numbers<[1], [0], [0], [1], [0, 0, 1, 1], [], []>} : vector<2x16xf32>, vector<16x32xf32>, vector<2x32xf32> -> vector<2x32xf32>
    %cst_142 = arith.constant 5.000000e-01 : f32
    %214 = vector.broadcast %cst_142 : f32 to vector<2x32xf32>
    %215 = arith.mulf %214, %203 : vector<2x32xf32>
    %216 = arith.addf %211, %213 : vector<2x32xf32>
    %c0_143 = arith.constant 0 : index
    %c0_144 = arith.constant 0 : index
    %217 = vector.load %arg6[%c0_143, %c0_144] : memref<1x32xf32, #tpu.memory_space<vmem>>, vector<1x32xf32>
    %218 = vector.broadcast %217 : vector<1x32xf32> to vector<2x32xf32>
    %219 = arith.addf %216, %218 : vector<2x32xf32>
    %cst_145 = arith.constant 5.000000e-01 : f32
    %220 = vector.broadcast %cst_145 : f32 to vector<2x32xf32>
    %221 = arith.mulf %220, %219 : vector<2x32xf32>
    %222 = arith.addf %215, %221 : vector<2x32xf32>
    %223 = math.tanh %222 : vector<2x32xf32>
    %c2_i32_146 = arith.constant 2 : i32
    %224 = arith.muli %c6_i32, %c2_i32_146 : i32
    %225 = arith.index_cast %224 : i32 to index
    %c0_147 = arith.constant 0 : index
    %226 = vector.load %arg15[%225, %c0_147] : memref<16x32xf32, #tpu.memory_space<vmem>>, vector<2x32xf32>
    tpu.vector_store %arg15[%225, %c0_147], %223 {strides = array<i32>} : memref<16x32xf32, #tpu.memory_space<vmem>>, vector<2x32xf32>,
    %c0_148 = arith.constant 0 : index
    %c0_149 = arith.constant 0 : index
    %227 = vector.load %arg10[%c0_148, %c0_149] : memref<32x32xf32, #tpu.memory_space<vmem>>, vector<32x32xf32>
    %cst_150 = arith.constant dense<0.000000e+00> : vector<2x32xf32>
    %228 = tpu.matmul %223, %227, %cst_150 {dimension_numbers = #tpu.dot_dimension_numbers<[1], [0], [0], [1], [0, 0, 1, 1], [], []>} : vector<2x32xf32>, vector<32x32xf32>, vector<2x32xf32> -> vector<2x32xf32>
    %c2_i32_151 = arith.constant 2 : i32
    %229 = arith.muli %c6_i32, %c2_i32_151 : i32
    %230 = arith.index_cast %229 : i32 to index
    %c0_152 = arith.constant 0 : index
    %231 = vector.load %arg2[%230, %c0_152] : memref<16x32xf32, #tpu.memory_space<vmem>>, vector<2x32xf32>
    %232 = arith.addf %228, %231 : vector<2x32xf32>
    %233 = arith.mulf %223, %223 : vector<2x32xf32>
    %cst_153 = arith.constant 1.000000e+00 : f32
    %234 = vector.broadcast %cst_153 : f32 to vector<2x32xf32>
    %235 = arith.subf %234, %233 : vector<2x32xf32>
    %236 = arith.mulf %235, %232 : vector<2x32xf32>
    %237 = arith.subf %222, %236 : vector<2x32xf32>
    %c0_154 = arith.constant 0 : index
    %c0_155 = arith.constant 0 : index
    %238 = vector.load %arg11[%c0_154, %c0_155] : memref<32x16xf32, #tpu.memory_space<vmem>>, vector<32x16xf32>
    %cst_156 = arith.constant dense<0.000000e+00> : vector<2x16xf32>
    %239 = tpu.matmul %236, %238, %cst_156 {dimension_numbers = #tpu.dot_dimension_numbers<[1], [0], [0], [1], [0, 0, 1, 1], [], []>} : vector<2x32xf32>, vector<32x16xf32>, vector<2x16xf32> -> vector<2x16xf32>
    %cst_157 = arith.constant 1.000000e-01 : f32
    %240 = vector.broadcast %cst_157 : f32 to vector<2x16xf32>
    %241 = arith.mulf %240, %239 : vector<2x16xf32>
    %242 = arith.subf %208, %241 : vector<2x16xf32>
    %c7_i32 = arith.constant 7 : i32
    %243 = math.tanh %237 : vector<2x32xf32>
    %c0_158 = arith.constant 0 : index
    %c0_159 = arith.constant 0 : index
    %244 = vector.load %arg5[%c0_158, %c0_159] : memref<32x32xf32, #tpu.memory_space<vmem>>, vector<32x32xf32>
    %cst_160 = arith.constant dense<0.000000e+00> : vector<2x32xf32>
    %245 = tpu.matmul %243, %244, %cst_160 {dimension_numbers = #tpu.dot_dimension_numbers<[1], [0], [0], [1], [0, 0, 1, 1], [], []>} : vector<2x32xf32>, vector<32x32xf32>, vector<2x32xf32> -> vector<2x32xf32>
    %c0_161 = arith.constant 0 : index
    %c0_162 = arith.constant 0 : index
    %246 = vector.load %arg7[%c0_161, %c0_162] : memref<16x32xf32, #tpu.memory_space<vmem>>, vector<16x32xf32>
    %cst_163 = arith.constant dense<0.000000e+00> : vector<2x32xf32>
    %247 = tpu.matmul %242, %246, %cst_163 {dimension_numbers = #tpu.dot_dimension_numbers<[1], [0], [0], [1], [0, 0, 1, 1], [], []>} : vector<2x16xf32>, vector<16x32xf32>, vector<2x32xf32> -> vector<2x32xf32>
    %cst_164 = arith.constant 5.000000e-01 : f32
    %248 = vector.broadcast %cst_164 : f32 to vector<2x32xf32>
    %249 = arith.mulf %248, %237 : vector<2x32xf32>
    %250 = arith.addf %245, %247 : vector<2x32xf32>
    %c0_165 = arith.constant 0 : index
    %c0_166 = arith.constant 0 : index
    %251 = vector.load %arg6[%c0_165, %c0_166] : memref<1x32xf32, #tpu.memory_space<vmem>>, vector<1x32xf32>
    %252 = vector.broadcast %251 : vector<1x32xf32> to vector<2x32xf32>
    %253 = arith.addf %250, %252 : vector<2x32xf32>
    %cst_167 = arith.constant 5.000000e-01 : f32
    %254 = vector.broadcast %cst_167 : f32 to vector<2x32xf32>
    %255 = arith.mulf %254, %253 : vector<2x32xf32>
    %256 = arith.addf %249, %255 : vector<2x32xf32>
    %257 = math.tanh %256 : vector<2x32xf32>
    %c2_i32_168 = arith.constant 2 : i32
    %258 = arith.muli %c7_i32, %c2_i32_168 : i32
    %259 = arith.index_cast %258 : i32 to index
    %c0_169 = arith.constant 0 : index
    %260 = vector.load %arg15[%259, %c0_169] : memref<16x32xf32, #tpu.memory_space<vmem>>, vector<2x32xf32>
    tpu.vector_store %arg15[%259, %c0_169], %257 {strides = array<i32>} : memref<16x32xf32, #tpu.memory_space<vmem>>, vector<2x32xf32>,
    %c0_170 = arith.constant 0 : index
    %c0_171 = arith.constant 0 : index
    %261 = vector.load %arg10[%c0_170, %c0_171] : memref<32x32xf32, #tpu.memory_space<vmem>>, vector<32x32xf32>
    %cst_172 = arith.constant dense<0.000000e+00> : vector<2x32xf32>
    %262 = tpu.matmul %257, %261, %cst_172 {dimension_numbers = #tpu.dot_dimension_numbers<[1], [0], [0], [1], [0, 0, 1, 1], [], []>} : vector<2x32xf32>, vector<32x32xf32>, vector<2x32xf32> -> vector<2x32xf32>
    %c2_i32_173 = arith.constant 2 : i32
    %263 = arith.muli %c7_i32, %c2_i32_173 : i32
    %264 = arith.index_cast %263 : i32 to index
    %c0_174 = arith.constant 0 : index
    %265 = vector.load %arg2[%264, %c0_174] : memref<16x32xf32, #tpu.memory_space<vmem>>, vector<2x32xf32>
    %266 = arith.addf %262, %265 : vector<2x32xf32>
    %267 = arith.mulf %257, %257 : vector<2x32xf32>
    %cst_175 = arith.constant 1.000000e+00 : f32
    %268 = vector.broadcast %cst_175 : f32 to vector<2x32xf32>
    %269 = arith.subf %268, %267 : vector<2x32xf32>
    %270 = arith.mulf %269, %266 : vector<2x32xf32>
    %271 = arith.subf %256, %270 : vector<2x32xf32>
    %c0_176 = arith.constant 0 : index
    %c0_177 = arith.constant 0 : index
    %272 = vector.load %arg11[%c0_176, %c0_177] : memref<32x16xf32, #tpu.memory_space<vmem>>, vector<32x16xf32>
    %cst_178 = arith.constant dense<0.000000e+00> : vector<2x16xf32>
    %273 = tpu.matmul %270, %272, %cst_178 {dimension_numbers = #tpu.dot_dimension_numbers<[1], [0], [0], [1], [0, 0, 1, 1], [], []>} : vector<2x32xf32>, vector<32x16xf32>, vector<2x16xf32> -> vector<2x16xf32>
    %cst_179 = arith.constant 1.000000e-01 : f32
    %274 = vector.broadcast %cst_179 : f32 to vector<2x16xf32>
    %275 = arith.mulf %274, %273 : vector<2x16xf32>
    %276 = arith.subf %242, %275 : vector<2x16xf32>
    %c8_i32 = arith.constant 8 : i32
    %c0_180 = arith.constant 0 : index
    %c0_181 = arith.constant 0 : index
    %277 = vector.load %arg13[%c0_180, %c0_181] : memref<2x32xf32, #tpu.memory_space<vmem>>, vector<2x32xf32>
    tpu.vector_store %arg13[%c0_180, %c0_181], %271 {strides = array<i32>} : memref<2x32xf32, #tpu.memory_space<vmem>>, vector<2x32xf32>,
    %c0_182 = arith.constant 0 : index
    %c0_183 = arith.constant 0 : index
    %278 = vector.load %arg14[%c0_182, %c0_183] : memref<2x16xf32, #tpu.memory_space<vmem>>, vector<2x16xf32>
    tpu.vector_store %arg14[%c0_182, %c0_183], %276 {strides = array<i32>} : memref<2x16xf32, #tpu.memory_space<vmem>>, vector<2x16xf32>,
    %c0_184 = arith.constant 0 : index
    %c0_185 = arith.constant 0 : index
    %279 = vector.load %arg15[%c0_184, %c0_185] : memref<16x32xf32, #tpu.memory_space<vmem>>, vector<16x32xf32>
    %c0_186 = arith.constant 0 : index
    %c0_187 = arith.constant 0 : index
    %280 = vector.load %arg8[%c0_186, %c0_187] : memref<32x8xf32, #tpu.memory_space<vmem>>, vector<32x8xf32>
    %cst_188 = arith.constant dense<0.000000e+00> : vector<16x8xf32>
    %281 = tpu.matmul %279, %280, %cst_188 {dimension_numbers = #tpu.dot_dimension_numbers<[1], [0], [0], [1], [0, 0, 1, 1], [], []>} : vector<16x32xf32>, vector<32x8xf32>, vector<16x8xf32> -> vector<16x8xf32>
    %c0_189 = arith.constant 0 : index
    %c0_190 = arith.constant 0 : index
    %282 = vector.load %arg9[%c0_189, %c0_190] : memref<1x8xf32, #tpu.memory_space<vmem>>, vector<1x8xf32>
    %283 = vector.broadcast %282 : vector<1x8xf32> to vector<16x8xf32>
    %284 = arith.addf %281, %283 : vector<16x8xf32>
    %c0_191 = arith.constant 0 : index
    %c0_192 = arith.constant 0 : index
    %285 = vector.load %arg1[%c0_191, %c0_192] : memref<16x8xf32, #tpu.memory_space<vmem>>, vector<16x8xf32>
    %286 = arith.subf %284, %285 : vector<16x8xf32>
    %c0_193 = arith.constant 0 : index
    %c0_194 = arith.constant 0 : index
    %287 = vector.load %arg12[%c0_193, %c0_194] : memref<16x8xf32, #tpu.memory_space<vmem>>, vector<16x8xf32>
    tpu.vector_store %arg12[%c0_193, %c0_194], %286 {strides = array<i32>} : memref<16x8xf32, #tpu.memory_space<vmem>>, vector<16x8xf32>,
    return
  }
  func.func @transform_0(%arg0: i32) -> (i32, i32) {
    %c0_i32 = arith.constant 0 : i32
    %c0_i32_0 = arith.constant 0 : i32
    return %arg0, %c0_i32 : i32, i32
  }
  func.func @transform_1(%arg0: i32) -> (i32, i32) {
    %c0_i32 = arith.constant 0 : i32
    %c0_i32_0 = arith.constant 0 : i32
    return %arg0, %c0_i32 : i32, i32
  }
  func.func @transform_2(%arg0: i32) -> (i32, i32) {
    %c0_i32 = arith.constant 0 : i32
    %c0_i32_0 = arith.constant 0 : i32
    %c0_i32_1 = arith.constant 0 : i32
    return %c0_i32, %c0_i32_0 : i32, i32
  }
  func.func @transform_3(%arg0: i32) -> (i32, i32) {
    %c0_i32 = arith.constant 0 : i32
    %c0_i32_0 = arith.constant 0 : i32
    %c0_i32_1 = arith.constant 0 : i32
    return %c0_i32, %c0_i32_0 : i32, i32
  }
  func.func @transform_4(%arg0: i32) -> (i32, i32) {
    %c0_i32 = arith.constant 0 : i32
    %c0_i32_0 = arith.constant 0 : i32
    %c0_i32_1 = arith.constant 0 : i32
    return %c0_i32, %c0_i32_0 : i32, i32
  }
  func.func @transform_5(%arg0: i32) -> (i32, i32) {
    %c0_i32 = arith.constant 0 : i32
    %c0_i32_0 = arith.constant 0 : i32
    %c0_i32_1 = arith.constant 0 : i32
    return %c0_i32, %c0_i32_0 : i32, i32
  }
  func.func @transform_6(%arg0: i32) -> (i32, i32) {
    %c0_i32 = arith.constant 0 : i32
    %c0_i32_0 = arith.constant 0 : i32
    %c0_i32_1 = arith.constant 0 : i32
    return %c0_i32, %c0_i32_0 : i32, i32
  }
  func.func @transform_7(%arg0: i32) -> (i32, i32) {
    %c0_i32 = arith.constant 0 : i32
    %c0_i32_0 = arith.constant 0 : i32
    %c0_i32_1 = arith.constant 0 : i32
    return %c0_i32, %c0_i32_0 : i32, i32
  }
  func.func @transform_8(%arg0: i32) -> (i32, i32) {
    %c0_i32 = arith.constant 0 : i32
    %c0_i32_0 = arith.constant 0 : i32
    %c0_i32_1 = arith.constant 0 : i32
    return %c0_i32, %c0_i32_0 : i32, i32
  }
  func.func @transform_9(%arg0: i32) -> (i32, i32) {
    %c0_i32 = arith.constant 0 : i32
    %c0_i32_0 = arith.constant 0 : i32
    %c0_i32_1 = arith.constant 0 : i32
    return %c0_i32, %c0_i32_0 : i32, i32
  }
  func.func @transform_10(%arg0: i32) -> (i32, i32) {
    %c0_i32 = arith.constant 0 : i32
    %c0_i32_0 = arith.constant 0 : i32
    %c0_i32_1 = arith.constant 0 : i32
    return %c0_i32, %c0_i32_0 : i32, i32
  }
  func.func @transform_11(%arg0: i32) -> (i32, i32) {
    %c0_i32 = arith.constant 0 : i32
    %c0_i32_0 = arith.constant 0 : i32
    return %arg0, %c0_i32 : i32, i32
  }
}

</mosaic_0001>

<llo_original>
// kernel: tpu_custom_call.1
$region0: #{tpu_custom_call.1}
  #allocation0 [shape = 'u32[]', space=smem, size = 0x4, offset = 0x4, fixed_abs, tag = 'smem constant byte address 0x4 - core index']
  #allocation1 [shape = 'u32[144,128]{1,0:T(1,128)}', space=vmem, size = 0x12000, scoped, tag = 'internal scratch']
  #allocation2 [shape = 'f32[2,32]{1,0:T(2,128)}', space=vmem, size = 0x400, scoped, tag = 'scratch operand']
  #allocation3 [shape = 'f32[2,16]{1,0:T(2,128)}', space=vmem, size = 0x400, scoped, tag = 'scratch operand']
  #allocation4 [shape = 'f32[16,32]{1,0:T(8,128)}', space=vmem, size = 0x2000, scoped, tag = 'scratch operand']
  %s0 = inlined_call_operand.vmem [shape: f32[16,8], index: 0, kind: input, shape index: {}]
  %s1 = inlined_call_operand.vmem [shape: f32[16,32], index: 1, kind: input, shape index: {}]
  %s2 = inlined_call_operand.vmem [shape: f32[2,32], index: 2, kind: input, shape index: {}]
  %s3 = inlined_call_operand.hbm [shape: f32[2,16], index: 3, kind: input, shape index: {}]
  %s4 = inlined_call_operand.vmem [shape: f32[32,32], index: 4, kind: input, shape index: {}]
  %s5 = inlined_call_operand.vmem [shape: f32[1,32], index: 5, kind: input, shape index: {}]
  %s6 = inlined_call_operand.vmem [shape: f32[16,32], index: 6, kind: input, shape index: {}]
  %s7 = inlined_call_operand.vmem [shape: f32[32,8], index: 7, kind: input, shape index: {}]
  %s8 = inlined_call_operand.vmem [shape: f32[1,8], index: 8, kind: input, shape index: {}]
  %s9 = inlined_call_operand.vmem [shape: f32[32,32], index: 9, kind: input, shape index: {}]
  %s10 = inlined_call_operand.vmem [shape: f32[32,16], index: 10, kind: input, shape index: {}]
  %s11 = inlined_call_operand.vmem [shape: f32[16,8], index: 11, kind: output, shape index: {}]
  %s12 = sld [smem:[#allocation0]]
  $region62: #{tpu_custom_call.1} parent=0
    _
  %s14 = ssub.s32 1, %s12
  %s15 = scalar_select 0, %s14, %s12
  $region1: #{tpu_custom_call.1} parent=0
    #allocation5 [shape = 'u8[1024]{0}', space=vmem, size = 0x400, scoped, tag = 'input window, operand 3, single buffered']
    #allocation6 [shape = 's32[1]{0}', space=sflag, size = 0x4, scoped, tag = 'scoped memory for tpu_custom_call.1']
    %16 = vsyncpa [#allocation6], 0
    // Predicated region
    $region2: #{tpu_custom_call.1} parent=1 // pred_check
      _
    $region3: #{tpu_custom_call.1} parent=1 // pred_check_branch
      %18 = sbr.rel (0) target = $region5
    $region4: #{tpu_custom_call.1} parent=1 // pred_region
      _
    $region5: #{tpu_custom_call.1} parent=1 // pred_fallthru
      _
    // Predicated region
    $region6: #{tpu_custom_call.1} parent=1 // pred_check
      _
    $region7: #{tpu_custom_call.1} parent=1 // pred_check_branch
      %20 = sbr.rel (0) target = $region9
    $region8: #{tpu_custom_call.1} parent=1 // pred_region
      _
    $region9: #{tpu_custom_call.1} parent=1 // pred_fallthru
      _
    // Predicated region
    $region10: #{tpu_custom_call.1} parent=1 // pred_check
      _
    $region11: #{tpu_custom_call.1} parent=1 // pred_check_branch
      %22 = sbr.rel (0) target = $region13
    $region12: #{tpu_custom_call.1} parent=1 // pred_region
      _
    $region13: #{tpu_custom_call.1} parent=1 // pred_fallthru
      _
    // Predicated region
    $region14: #{tpu_custom_call.1} parent=1 // pred_check
      _
    $region15: #{tpu_custom_call.1} parent=1 // pred_check_branch
      %24 = sbr.rel (0) target = $region17
    $region16: #{tpu_custom_call.1} parent=1 // pred_region
      %s26 = ssub.s32 32, 32
      %27 = vsyncadd [#allocation6], %s26
      %s29 = sshll.u32 [#allocation5], 4
      %s30 = int_to_ptr.vmem [resolvable:$true] %s29
      %32 = dma.hbm_to_vmem [thread:$0]  %s3, 32, %s30, [#allocation6]
    $region17: #{tpu_custom_call.1} parent=1 // pred_fallthru
      _
    // Predicated region
    $region18: #{tpu_custom_call.1} parent=1 // pred_check
      _
    $region19: #{tpu_custom_call.1} parent=1 // pred_check_branch
      %34 = sbr.rel (0) target = $region21
    $region20: #{tpu_custom_call.1} parent=1 // pred_region
      _
    $region21: #{tpu_custom_call.1} parent=1 // pred_fallthru
      _
    // Predicated region
    $region22: #{tpu_custom_call.1} parent=1 // pred_check
      _
    $region23: #{tpu_custom_call.1} parent=1 // pred_check_branch
      %36 = sbr.rel (0) target = $region25
    $region24: #{tpu_custom_call.1} parent=1 // pred_region
      _
    $region25: #{tpu_custom_call.1} parent=1 // pred_fallthru
      _
    // Predicated region
    $region26: #{tpu_custom_call.1} parent=1 // pred_check
      _
    $region27: #{tpu_custom_call.1} parent=1 // pred_check_branch
      %38 = sbr.rel (0) target = $region29
    $region28: #{tpu_custom_call.1} parent=1 // pred_region
      _
    $region29: #{tpu_custom_call.1} parent=1 // pred_fallthru
      _
    // Predicated region
    $region30: #{tpu_custom_call.1} parent=1 // pred_check
      _
    $region31: #{tpu_custom_call.1} parent=1 // pred_check_branch
      %40 = sbr.rel (0) target = $region33
    $region32: #{tpu_custom_call.1} parent=1 // pred_region
      _
    $region33: #{tpu_custom_call.1} parent=1 // pred_fallthru
      _
    // Predicated region
    $region34: #{tpu_custom_call.1} parent=1 // pred_check
      _
    $region35: #{tpu_custom_call.1} parent=1 // pred_check_branch
      %42 = sbr.rel (0) target = $region37
    $region36: #{tpu_custom_call.1} parent=1 // pred_region
      _
    $region37: #{tpu_custom_call.1} parent=1 // pred_fallthru
      _
    // Predicated region
    $region38: #{tpu_custom_call.1} parent=1 // pred_check
      _
    $region39: #{tpu_custom_call.1} parent=1 // pred_check_branch
      %44 = sbr.rel (0) target = $region41
    $region40: #{tpu_custom_call.1} parent=1 // pred_region
      _
    $region41: #{tpu_custom_call.1} parent=1 // pred_fallthru
      _
    // Predicated region
    $region42: #{tpu_custom_call.1} parent=1 // pred_check
      _
    $region43: #{tpu_custom_call.1} parent=1 // pred_check_branch
      %46 = sbr.rel (0) target = $region45
    $region44: #{tpu_custom_call.1} parent=1 // pred_region
      _
    $region45: #{tpu_custom_call.1} parent=1 // pred_fallthru
      _
    // Predicated region
    $region46: #{tpu_custom_call.1} parent=1 // pred_check
      _
    $region47: #{tpu_custom_call.1} parent=1 // pred_check_branch
      %48 = sbr.rel (0) target = $region49
    $region48: #{tpu_custom_call.1} parent=1 // pred_region
      %49 = dma.done [#allocation6], 32
    $region49: #{tpu_custom_call.1} parent=1 // pred_fallthru
      _
    %p50 = scmp.eq.s32.totalorder 0, 0
    // Predicated region
    $region50: #{tpu_custom_call.1} parent=1 // pred_check
      %p51 = pneg %p50
    $region51: #{tpu_custom_call.1} parent=1 // pred_check_branch
      %53 = sbr.rel (%p51) target = $region53
    $region52: #{tpu_custom_call.1} parent=1 // pred_region
      %v54 = vld [vmem:[%s2] sm:$0x3]
      %vm55 = vcmask 254976
      %56 = vst.msk [vmem:[#allocation2] sm:$0x3] %vm55, %v54
      %v57 = vld [vmem:[#allocation5] sm:$0x3]
      %vm58 = vcmask 123904
      %59 = vst.msk [vmem:[#allocation3] sm:$0x3] %vm58, %v57
    $region53: #{tpu_custom_call.1} parent=1 // pred_fallthru
      _
    %v60 = vld [vmem:[#allocation2] sm:$0x3]
    %v61 = vld [vmem:[#allocation3] sm:$0x3]
    %v62 = vtanh.pop %v60
    %v63 = vld [vmem:[%s4] sm:$0xff]
    %v64 = vld [vmem:[%s4 + $0x8] sm:$0xff]
    %v65 = vld [vmem:[%s4 + $0x10] sm:$0xff]
    %v66 = vld [vmem:[%s4 + $0x18] sm:$0xff]
    %v67 = vld [vmem:[%s6] sm:$0xff]
    %v68 = vld [vmem:[%s6 + $0x8] sm:$0xff]
    %vm69 = vcmask 130048
    %v71 = vsel %vm69, %v61, 0
    %73 = vmatprep.subr.mxu0 0.0
    %74 = vmatpush1.msra.mxu0 %v67
    %75 = vmatprep.subr.mxu0 0.0
    %76 = vmatpush1.msra.mxu0 %v68
    %77 = vmatprep.subr.mxu0 0.0
    %78 = vmatpush1.msra.mxu0 0.0
    %79 = vmatprep.subr.mxu0 0.0
    %80 = vmatpush1.msra.mxu0 0.0
    %81 = vmatprep.subr.mxu0 0.0
    %82 = vmatpush1.msra.mxu0 0.0
    %83 = vmatprep.subr.mxu0 0.0
    %84 = vmatpush1.msra.mxu0 0.0
    %85 = vmatprep.subr.mxu0 0.0
    %86 = vmatpush1.msra.mxu0 0.0
    %87 = vmatprep.subr.mxu0 0.0
    %88 = vmatpush1.msra.mxu0 0.0
    %89 = vmatprep.subr.mxu0 0.0
    %90 = vmatpush1.msra.mxu0 0.0
    %91 = vmatprep.subr.mxu0 0.0
    %92 = vmatpush1.msra.mxu0 0.0
    %93 = vmatprep.subr.mxu0 0.0
    %94 = vmatpush1.msra.mxu0 0.0
    %95 = vmatprep.subr.mxu0 0.0
    %96 = vmatpush1.msra.mxu0 0.0
    %97 = vmatprep.subr.mxu0 0.0
    %98 = vmatpush1.msra.mxu0 0.0
    %99 = vmatprep.subr.mxu0 0.0
    %100 = vmatpush1.msra.mxu0 0.0
    %101 = vmatprep.subr.mxu0 0.0
    %102 = vmatpush1.msra.mxu0 0.0
    %103 = vmatprep.subr.mxu0 0.0
    %104 = vmatpush1.msra.mxu0 0.0
    %105 = vmatprep.subr.mxu0 0.0
    %106 = vmatpush1.msra.mxu0 0.0
    %107 = vmatprep.subr.mxu0 0.0
    %108 = vmatpush1.msra.mxu0 0.0
    %109 = vmatprep.subr.mxu0 0.0
    %110 = vmatpush1.msra.mxu0 0.0
    %111 = vmatprep.subr.mxu0 0.0
    %112 = vmatpush1.msra.mxu0 0.0
    %113 = vmatprep.subr.mxu0 0.0
    %114 = vmatpush1.msra.mxu0 0.0
    %115 = vmatprep.subr.mxu0 0.0
    %116 = vmatpush1.msra.mxu0 0.0
    %117 = vmatprep.subr.mxu0 0.0
    %118 = vmatpush1.msra.mxu0 0.0
    %119 = vmatprep.subr.mxu0 0.0
    %120 = vmatpush1.msra.mxu0 0.0
    %121 = vmatprep.subr.mxu0 0.0
    %122 = vmatpush1.msra.mxu0 0.0
    %123 = vmatprep.subr.mxu0 0.0
    %124 = vmatpush1.msra.mxu0 0.0
    %125 = vmatprep.subr.mxu0 0.0
    %126 = vmatpush1.msra.mxu0 0.0
    %127 = vmatprep.subr.mxu0 0.0
    %128 = vmatpush1.msra.mxu0 0.0
    %129 = vmatprep.subr.mxu0 0.0
    %130 = vmatpush1.msra.mxu0 0.0
    %131 = vmatprep.subr.mxu0 0.0
    %132 = vmatpush1.msra.mxu0 0.0
    %133 = vmatprep.subr.mxu0 0.0
    %134 = vmatpush1.msra.mxu0 0.0
    %135 = vmatprep.subr.mxu0 0.0
    %136 = vmatpush1.msra.mxu0 0.0
    %137 = vmatprep.mubr.f32.mxu0 0.0
    %138 = vmatmul.mubr.f32.gmra.mrb[0].mxu0 %v71
    %v139 = vpop.f32.mrb[0].mxu0
    %v140 = vadd.f32 0.0, %v139
    %v141 = vpop.f32.mrb[0].mxu0
    %142 = vdwg.mxu0
    %v143 = vmul.f32 %v60, 0.5
    %vm144 = vcmask 261120
    %v146 = vsel %vm144, %v62, 0
    %148 = vmatprep.subr.mxu0 0.0
    %149 = vmatpush1.msra.mxu0 %v63
    %150 = vmatprep.subr.mxu0 0.0
    %151 = vmatpush1.msra.mxu0 %v64
    %152 = vmatprep.subr.mxu0 0.0
    %153 = vmatpush1.msra.mxu0 %v65
    %154 = vmatprep.subr.mxu0 0.0
    %155 = vmatpush1.msra.mxu0 %v66
    %156 = vmatprep.subr.mxu0 0.0
    %157 = vmatpush1.msra.mxu0 0.0
    %158 = vmatprep.subr.mxu0 0.0
    %159 = vmatpush1.msra.mxu0 0.0
    %160 = vmatprep.subr.mxu0 0.0
    %161 = vmatpush1.msra.mxu0 0.0
    %162 = vmatprep.subr.mxu0 0.0
    %163 = vmatpush1.msra.mxu0 0.0
    %164 = vmatprep.subr.mxu0 0.0
    %165 = vmatpush1.msra.mxu0 0.0
    %166 = vmatprep.subr.mxu0 0.0
    %167 = vmatpush1.msra.mxu0 0.0
    %168 = vmatprep.subr.mxu0 0.0
    %169 = vmatpush1.msra.mxu0 0.0
    %170 = vmatprep.subr.mxu0 0.0
    %171 = vmatpush1.msra.mxu0 0.0
    %172 = vmatprep.subr.mxu0 0.0
    %173 = vmatpush1.msra.mxu0 0.0
    %174 = vmatprep.subr.mxu0 0.0
    %175 = vmatpush1.msra.mxu0 0.0
    %176 = vmatprep.subr.mxu0 0.0
    %177 = vmatpush1.msra.mxu0 0.0
    %178 = vmatprep.subr.mxu0 0.0
    %179 = vmatpush1.msra.mxu0 0.0
    %180 = vmatprep.subr.mxu0 0.0
    %181 = vmatpush1.msra.mxu0 0.0
    %182 = vmatprep.subr.mxu0 0.0
    %183 = vmatpush1.msra.mxu0 0.0
    %184 = vmatprep.subr.mxu0 0.0
    %185 = vmatpush1.msra.mxu0 0.0
    %186 = vmatprep.subr.mxu0 0.0
    %187 = vmatpush1.msra.mxu0 0.0
    %188 = vmatprep.subr.mxu0 0.0
    %189 = vmatpush1.msra.mxu0 0.0
    %190 = vmatprep.subr.mxu0 0.0
    %191 = vmatpush1.msra.mxu0 0.0
    %192 = vmatprep.subr.mxu0 0.0
    %193 = vmatpush1.msra.mxu0 0.0
    %194 = vmatprep.subr.mxu0 0.0
    %195 = vmatpush1.msra.mxu0 0.0
    %196 = vmatprep.subr.mxu0 0.0
    %197 = vmatpush1.msra.mxu0 0.0
    %198 = vmatprep.subr.mxu0 0.0
    %199 = vmatpush1.msra.mxu0 0.0
    %200 = vmatprep.subr.mxu0 0.0
    %201 = vmatpush1.msra.mxu0 0.0
    %202 = vmatprep.subr.mxu0 0.0
    %203 = vmatpush1.msra.mxu0 0.0
    %204 = vmatprep.subr.mxu0 0.0
    %205 = vmatpush1.msra.mxu0 0.0
    %206 = vmatprep.subr.mxu0 0.0
    %207 = vmatpush1.msra.mxu0 0.0
    %208 = vmatprep.subr.mxu0 0.0
    %209 = vmatpush1.msra.mxu0 0.0
    %210 = vmatprep.subr.mxu0 0.0
    %211 = vmatpush1.msra.mxu0 0.0
    %212 = vmatprep.mubr.f32.mxu0 0.0
    %213 = vmatmul.mubr.f32.gmra.mrb[0].mxu0 %v146
    %v214 = vpop.f32.mrb[0].mxu0
    %v215 = vadd.f32 %v140, %v214
    %v216 = vpop.f32.mrb[0].mxu0
    %217 = vdwg.mxu0
    %v218 = vld [vmem:[%s5] sm:$0x1]
    %v220 = vlaneseq
    %v221 = vshrl.u32 %v220, 7
    %v222 = vsub.s32 0, %v221
    %v223 = vrot.slane %v218, %v222
    %v225 = vadd.f32 %v215, %v223
    %v226 = vmul.f32 %v225, 0.5
    %v227 = vadd.f32 %v143, %v226
    %v228 = vtanh.pop %v227
    %vm229 = vcmask 254976
    %230 = vst.msk [vmem:[#allocation4] sm:$0x3] %vm229, %v228
    %v231 = vld [vmem:[%s9] sm:$0xff]
    %v232 = vld [vmem:[%s9 + $0x8] sm:$0xff]
    %v233 = vld [vmem:[%s9 + $0x10] sm:$0xff]
    %v234 = vld [vmem:[%s9 + $0x18] sm:$0xff]
    %v235 = vld [vmem:[%s1] sm:$0x3]
    %v237 = vsel %vm144, %v228, 0
    %239 = vmatprep.subr.mxu0 0.0
    %240 = vmatpush1.msra.mxu0 %v231
    %241 = vmatprep.subr.mxu0 0.0
    %242 = vmatpush1.msra.mxu0 %v232
    %243 = vmatprep.subr.mxu0 0.0
    %244 = vmatpush1.msra.mxu0 %v233
    %245 = vmatprep.subr.mxu0 0.0
    %246 = vmatpush1.msra.mxu0 %v234
    %247 = vmatprep.subr.mxu0 0.0
    %248 = vmatpush1.msra.mxu0 0.0
    %249 = vmatprep.subr.mxu0 0.0
    %250 = vmatpush1.msra.mxu0 0.0
    %251 = vmatprep.subr.mxu0 0.0
    %252 = vmatpush1.msra.mxu0 0.0
    %253 = vmatprep.subr.mxu0 0.0
    %254 = vmatpush1.msra.mxu0 0.0
    %255 = vmatprep.subr.mxu0 0.0
    %256 = vmatpush1.msra.mxu0 0.0
    %257 = vmatprep.subr.mxu0 0.0
    %258 = vmatpush1.msra.mxu0 0.0
    %259 = vmatprep.subr.mxu0 0.0
    %260 = vmatpush1.msra.mxu0 0.0
    %261 = vmatprep.subr.mxu0 0.0
    %262 = vmatpush1.msra.mxu0 0.0
    %263 = vmatprep.subr.mxu0 0.0
    %264 = vmatpush1.msra.mxu0 0.0
    %265 = vmatprep.subr.mxu0 0.0
    %266 = vmatpush1.msra.mxu0 0.0
    %267 = vmatprep.subr.mxu0 0.0
    %268 = vmatpush1.msra.mxu0 0.0
    %269 = vmatprep.subr.mxu0 0.0
    %270 = vmatpush1.msra.mxu0 0.0
    %271 = vmatprep.subr.mxu0 0.0
    %272 = vmatpush1.msra.mxu0 0.0
    %273 = vmatprep.subr.mxu0 0.0
    %274 = vmatpush1.msra.mxu0 0.0
    %275 = vmatprep.subr.mxu0 0.0
    %276 = vmatpush1.msra.mxu0 0.0
    %277 = vmatprep.subr.mxu0 0.0
    %278 = vmatpush1.msra.mxu0 0.0
    %279 = vmatprep.subr.mxu0 0.0
    %280 = vmatpush1.msra.mxu0 0.0
    %281 = vmatprep.subr.mxu0 0.0
    %282 = vmatpush1.msra.mxu0 0.0
    %283 = vmatprep.subr.mxu0 0.0
    %284 = vmatpush1.msra.mxu0 0.0
    %285 = vmatprep.subr.mxu0 0.0
    %286 = vmatpush1.msra.mxu0 0.0
    %287 = vmatprep.subr.mxu0 0.0
    %288 = vmatpush1.msra.mxu0 0.0
    %289 = vmatprep.subr.mxu0 0.0
    %290 = vmatpush1.msra.mxu0 0.0
    %291 = vmatprep.subr.mxu0 0.0
    %292 = vmatpush1.msra.mxu0 0.0
    %293 = vmatprep.subr.mxu0 0.0
    %294 = vmatpush1.msra.mxu0 0.0
    %295 = vmatprep.subr.mxu0 0.0
    %296 = vmatpush1.msra.mxu0 0.0
    %297 = vmatprep.subr.mxu0 0.0
    %298 = vmatpush1.msra.mxu0 0.0
    %299 = vmatprep.subr.mxu0 0.0
    %300 = vmatpush1.msra.mxu0 0.0
    %301 = vmatprep.subr.mxu0 0.0
    %302 = vmatpush1.msra.mxu0 0.0
    %303 = vmatprep.mubr.f32.mxu0 0.0
    %304 = vmatmul.mubr.f32.gmra.mrb[0].mxu0 %v237
    %v305 = vpop.f32.mrb[0].mxu0
    %v306 = vadd.f32 %v235, %v305
    %v307 = vpop.f32.mrb[0].mxu0
    %308 = vdwg.mxu0
    %v309 = vmul.f32 %v228, %v228
    %v310 = vsub.f32 1.0, %v309
    %v311 = vmul.f32 %v310, %v306
    %v312 = vsub.f32 %v227, %v311
    %v313 = vld [vmem:[%s10] sm:$0xff]
    %v314 = vld [vmem:[%s10 + $0x8] sm:$0xff]
    %v315 = vld [vmem:[%s10 + $0x10] sm:$0xff]
    %v316 = vld [vmem:[%s10 + $0x18] sm:$0xff]
    %v318 = vsel %vm144, %v311, 0
    %320 = vmatprep.subr.mxu0 0.0
    %321 = vmatpush1.msra.mxu0 %v313
    %322 = vmatprep.subr.mxu0 0.0
    %323 = vmatpush1.msra.mxu0 %v314
    %324 = vmatprep.subr.mxu0 0.0
    %325 = vmatpush1.msra.mxu0 %v315
    %326 = vmatprep.subr.mxu0 0.0
    %327 = vmatpush1.msra.mxu0 %v316
    %328 = vmatprep.subr.mxu0 0.0
    %329 = vmatpush1.msra.mxu0 0.0
    %330 = vmatprep.subr.mxu0 0.0
    %331 = vmatpush1.msra.mxu0 0.0
    %332 = vmatprep.subr.mxu0 0.0
    %333 = vmatpush1.msra.mxu0 0.0
    %334 = vmatprep.subr.mxu0 0.0
    %335 = vmatpush1.msra.mxu0 0.0
    %336 = vmatprep.subr.mxu0 0.0
    %337 = vmatpush1.msra.mxu0 0.0
    %338 = vmatprep.subr.mxu0 0.0
    %339 = vmatpush1.msra.mxu0 0.0
    %340 = vmatprep.subr.mxu0 0.0
    %341 = vmatpush1.msra.mxu0 0.0
    %342 = vmatprep.subr.mxu0 0.0
    %343 = vmatpush1.msra.mxu0 0.0
    %344 = vmatprep.subr.mxu0 0.0
    %345 = vmatpush1.msra.mxu0 0.0
    %346 = vmatprep.subr.mxu0 0.0
    %347 = vmatpush1.msra.mxu0 0.0
    %348 = vmatprep.subr.mxu0 0.0
    %349 = vmatpush1.msra.mxu0 0.0
    %350 = vmatprep.subr.mxu0 0.0
    %351 = vmatpush1.msra.mxu0 0.0
    %352 = vmatprep.subr.mxu0 0.0
    %353 = vmatpush1.msra.mxu0 0.0
    %354 = vmatprep.subr.mxu0 0.0
    %355 = vmatpush1.msra.mxu0 0.0
    %356 = vmatprep.subr.mxu0 0.0
    %357 = vmatpush1.msra.mxu0 0.0
    %358 = vmatprep.subr.mxu0 0.0
    %359 = vmatpush1.msra.mxu0 0.0
    %360 = vmatprep.subr.mxu0 0.0
    %361 = vmatpush1.msra.mxu0 0.0
    %362 = vmatprep.subr.mxu0 0.0
    %363 = vmatpush1.msra.mxu0 0.0
    %364 = vmatprep.subr.mxu0 0.0
    %365 = vmatpush1.msra.mxu0 0.0
    %366 = vmatprep.subr.mxu0 0.0
    %367 = vmatpush1.msra.mxu0 0.0
    %368 = vmatprep.subr.mxu0 0.0
    %369 = vmatpush1.msra.mxu0 0.0
    %370 = vmatprep.subr.mxu0 0.0
    %371 = vmatpush1.msra.mxu0 0.0
    %372 = vmatprep.subr.mxu0 0.0
    %373 = vmatpush1.msra.mxu0 0.0
    %374 = vmatprep.subr.mxu0 0.0
    %375 = vmatpush1.msra.mxu0 0.0
    %376 = vmatprep.subr.mxu0 0.0
    %377 = vmatpush1.msra.mxu0 0.0
    %378 = vmatprep.subr.mxu0 0.0
    %379 = vmatpush1.msra.mxu0 0.0
    %380 = vmatprep.subr.mxu0 0.0
    %381 = vmatpush1.msra.mxu0 0.0
    %382 = vmatprep.subr.mxu0 0.0
    %383 = vmatpush1.msra.mxu0 0.0
    %384 = vmatprep.mubr.f32.mxu0 0.0
    %385 = vmatmul.mubr.f32.gmra.mrb[0].mxu0 %v318
    %v386 = vpop.f32.mrb[0].mxu0
    %v387 = vadd.f32 0.0, %v386
    %v388 = vpop.f32.mrb[0].mxu0
    %389 = vdwg.mxu0
    %v390 = vmul.f32 %v387, 0.1
    %v391 = vsub.f32 %v61, %v390
    %v392 = vtanh.pop %v312
    %v393 = vld [vmem:[%s4] sm:$0xff]
    %v394 = vld [vmem:[%s4 + $0x8] sm:$0xff]
    %v395 = vld [vmem:[%s4 + $0x10] sm:$0xff]
    %v396 = vld [vmem:[%s4 + $0x18] sm:$0xff]
    %v397 = vld [vmem:[%s6] sm:$0xff]
    %v398 = vld [vmem:[%s6 + $0x8] sm:$0xff]
    %v400 = vsel %vm69, %v391, 0
    %402 = vmatprep.subr.mxu0 0.0
    %403 = vmatpush1.msra.mxu0 %v397
    %404 = vmatprep.subr.mxu0 0.0
    %405 = vmatpush1.msra.mxu0 %v398
    %406 = vmatprep.subr.mxu0 0.0
    %407 = vmatpush1.msra.mxu0 0.0
    %408 = vmatprep.subr.mxu0 0.0
    %409 = vmatpush1.msra.mxu0 0.0
    %410 = vmatprep.subr.mxu0 0.0
    %411 = vmatpush1.msra.mxu0 0.0
    %412 = vmatprep.subr.mxu0 0.0
    %413 = vmatpush1.msra.mxu0 0.0
    %414 = vmatprep.subr.mxu0 0.0
    %415 = vmatpush1.msra.mxu0 0.0
    %416 = vmatprep.subr.mxu0 0.0
    %417 = vmatpush1.msra.mxu0 0.0
    %418 = vmatprep.subr.mxu0 0.0
    %419 = vmatpush1.msra.mxu0 0.0
    %420 = vmatprep.subr.mxu0 0.0
    %421 = vmatpush1.msra.mxu0 0.0
    %422 = vmatprep.subr.mxu0 0.0
    %423 = vmatpush1.msra.mxu0 0.0
    %424 = vmatprep.subr.mxu0 0.0
    %425 = vmatpush1.msra.mxu0 0.0
    %426 = vmatprep.subr.mxu0 0.0
    %427 = vmatpush1.msra.mxu0 0.0
    %428 = vmatprep.subr.mxu0 0.0
    %429 = vmatpush1.msra.mxu0 0.0
    %430 = vmatprep.subr.mxu0 0.0
    %431 = vmatpush1.msra.mxu0 0.0
    %432 = vmatprep.subr.mxu0 0.0
    %433 = vmatpush1.msra.mxu0 0.0
    %434 = vmatprep.subr.mxu0 0.0
    %435 = vmatpush1.msra.mxu0 0.0
    %436 = vmatprep.subr.mxu0 0.0
    %437 = vmatpush1.msra.mxu0 0.0
    %438 = vmatprep.subr.mxu0 0.0
    %439 = vmatpush1.msra.mxu0 0.0
    %440 = vmatprep.subr.mxu0 0.0
    %441 = vmatpush1.msra.mxu0 0.0
    %442 = vmatprep.subr.mxu0 0.0
    %443 = vmatpush1.msra.mxu0 0.0
    %444 = vmatprep.subr.mxu0 0.0
    %445 = vmatpush1.msra.mxu0 0.0
    %446 = vmatprep.subr.mxu0 0.0
    %447 = vmatpush1.msra.mxu0 0.0
    %448 = vmatprep.subr.mxu0 0.0
    %449 = vmatpush1.msra.mxu0 0.0
    %450 = vmatprep.subr.mxu0 0.0
    %451 = vmatpush1.msra.mxu0 0.0
    %452 = vmatprep.subr.mxu0 0.0
    %453 = vmatpush1.msra.mxu0 0.0
    %454 = vmatprep.subr.mxu0 0.0
    %455 = vmatpush1.msra.mxu0 0.0
    %456 = vmatprep.subr.mxu0 0.0
    %457 = vmatpush1.msra.mxu0 0.0
    %458 = vmatprep.subr.mxu0 0.0
    %459 = vmatpush1.msra.mxu0 0.0
    %460 = vmatprep.subr.mxu0 0.0
    %461 = vmatpush1.msra.mxu0 0.0
    %462 = vmatprep.subr.mxu0 0.0
    %463 = vmatpush1.msra.mxu0 0.0
    %464 = vmatprep.subr.mxu0 0.0
    %465 = vmatpush1.msra.mxu0 0.0
    %466 = vmatprep.mubr.f32.mxu0 0.0
    %467 = vmatmul.mubr.f32.gmra.mrb[0].mxu0 %v400
    %v468 = vpop.f32.mrb[0].mxu0
    %v469 = vadd.f32 0.0, %v468
    %v470 = vpop.f32.mrb[0].mxu0
    %471 = vdwg.mxu0
    %v472 = vmul.f32 %v312, 0.5
    %v474 = vsel %vm144, %v392, 0
    %476 = vmatprep.subr.mxu0 0.0
    %477 = vmatpush1.msra.mxu0 %v393
    %478 = vmatprep.subr.mxu0 0.0
    %479 = vmatpush1.msra.mxu0 %v394
    %480 = vmatprep.subr.mxu0 0.0
    %481 = vmatpush1.msra.mxu0 %v395
    %482 = vmatprep.subr.mxu0 0.0
    %483 = vmatpush1.msra.mxu0 %v396
    %484 = vmatprep.subr.mxu0 0.0
    %485 = vmatpush1.msra.mxu0 0.0
    %486 = vmatprep.subr.mxu0 0.0
    %487 = vmatpush1.msra.mxu0 0.0
    %488 = vmatprep.subr.mxu0 0.0
    %489 = vmatpush1.msra.mxu0 0.0
    %490 = vmatprep.subr.mxu0 0.0
    %491 = vmatpush1.msra.mxu0 0.0
    %492 = vmatprep.subr.mxu0 0.0
    %493 = vmatpush1.msra.mxu0 0.0
    %494 = vmatprep.subr.mxu0 0.0
    %495 = vmatpush1.msra.mxu0 0.0
    %496 = vmatprep.subr.mxu0 0.0
    %497 = vmatpush1.msra.mxu0 0.0
    %498 = vmatprep.subr.mxu0 0.0
    %499 = vmatpush1.msra.mxu0 0.0
    %500 = vmatprep.subr.mxu0 0.0
    %501 = vmatpush1.msra.mxu0 0.0
    %502 = vmatprep.subr.mxu0 0.0
    %503 = vmatpush1.msra.mxu0 0.0
    %504 = vmatprep.subr.mxu0 0.0
    %505 = vmatpush1.msra.mxu0 0.0
    %506 = vmatprep.subr.mxu0 0.0
    %507 = vmatpush1.msra.mxu0 0.0
    %508 = vmatprep.subr.mxu0 0.0
    %509 = vmatpush1.msra.mxu0 0.0
    %510 = vmatprep.subr.mxu0 0.0
    %511 = vmatpush1.msra.mxu0 0.0
    %512 = vmatprep.subr.mxu0 0.0
    %513 = vmatpush1.msra.mxu0 0.0
    %514 = vmatprep.subr.mxu0 0.0
    %515 = vmatpush1.msra.mxu0 0.0
    %516 = vmatprep.subr.mxu0 0.0
    %517 = vmatpush1.msra.mxu0 0.0
    %518 = vmatprep.subr.mxu0 0.0
    %519 = vmatpush1.msra.mxu0 0.0
    %520 = vmatprep.subr.mxu0 0.0
    %521 = vmatpush1.msra.mxu0 0.0
    %522 = vmatprep.subr.mxu0 0.0
    %523 = vmatpush1.msra.mxu0 0.0
    %524 = vmatprep.subr.mxu0 0.0
    %525 = vmatpush1.msra.mxu0 0.0
    %526 = vmatprep.subr.mxu0 0.0
    %527 = vmatpush1.msra.mxu0 0.0
    %528 = vmatprep.subr.mxu0 0.0
    %529 = vmatpush1.msra.mxu0 0.0
    %530 = vmatprep.subr.mxu0 0.0
    %531 = vmatpush1.msra.mxu0 0.0
    %532 = vmatprep.subr.mxu0 0.0
    %533 = vmatpush1.msra.mxu0 0.0
    %534 = vmatprep.subr.mxu0 0.0
    %535 = vmatpush1.msra.mxu0 0.0
    %536 = vmatprep.subr.mxu0 0.0
    %537 = vmatpush1.msra.mxu0 0.0
    %538 = vmatprep.subr.mxu0 0.0
    %539 = vmatpush1.msra.mxu0 0.0
    %540 = vmatprep.mubr.f32.mxu0 0.0
    %541 = vmatmul.mubr.f32.gmra.mrb[0].mxu0 %v474
    %v542 = vpop.f32.mrb[0].mxu0
    %v543 = vadd.f32 %v469, %v542
    %v544 = vpop.f32.mrb[0].mxu0
    %545 = vdwg.mxu0
    %v546 = vld [vmem:[%s5] sm:$0x1]
    %v548 = vlaneseq
    %v549 = vshrl.u32 %v548, 7
    %v550 = vsub.s32 0, %v549
    %v551 = vrot.slane %v546, %v550
    %v553 = vadd.f32 %v543, %v551
    %v554 = vmul.f32 %v553, 0.5
    %v555 = vadd.f32 %v472, %v554
    %v556 = vtanh.pop %v555
    %557 = vst.msk [vmem:[#allocation4 + $0x2] sm:$0x3] %vm229, %v556
    %v558 = vld [vmem:[%s9] sm:$0xff]
    %v559 = vld [vmem:[%s9 + $0x8] sm:$0xff]
    %v560 = vld [vmem:[%s9 + $0x10] sm:$0xff]
    %v561 = vld [vmem:[%s9 + $0x18] sm:$0xff]
    %v562 = vld [vmem:[%s1 + $0x2] sm:$0x3]
    %v564 = vsel %vm144, %v556, 0
    %566 = vmatprep.subr.mxu0 0.0
    %567 = vmatpush1.msra.mxu0 %v558
    %568 = vmatprep.subr.mxu0 0.0
    %569 = vmatpush1.msra.mxu0 %v559
    %570 = vmatprep.subr.mxu0 0.0
    %571 = vmatpush1.msra.mxu0 %v560
    %572 = vmatprep.subr.mxu0 0.0
    %573 = vmatpush1.msra.mxu0 %v561
    %574 = vmatprep.subr.mxu0 0.0
    %575 = vmatpush1.msra.mxu0 0.0
    %576 = vmatprep.subr.mxu0 0.0
    %577 = vmatpush1.msra.mxu0 0.0
    %578 = vmatprep.subr.mxu0 0.0
    %579 = vmatpush1.msra.mxu0 0.0
    %580 = vmatprep.subr.mxu0 0.0
    %581 = vmatpush1.msra.mxu0 0.0
    %582 = vmatprep.subr.mxu0 0.0
    %583 = vmatpush1.msra.mxu0 0.0
    %584 = vmatprep.subr.mxu0 0.0
    %585 = vmatpush1.msra.mxu0 0.0
    %586 = vmatprep.subr.mxu0 0.0
    %587 = vmatpush1.msra.mxu0 0.0
    %588 = vmatprep.subr.mxu0 0.0
    %589 = vmatpush1.msra.mxu0 0.0
    %590 = vmatprep.subr.mxu0 0.0
    %591 = vmatpush1.msra.mxu0 0.0
    %592 = vmatprep.subr.mxu0 0.0
    %593 = vmatpush1.msra.mxu0 0.0
    %594 = vmatprep.subr.mxu0 0.0
    %595 = vmatpush1.msra.mxu0 0.0
    %596 = vmatprep.subr.mxu0 0.0
    %597 = vmatpush1.msra.mxu0 0.0
    %598 = vmatprep.subr.mxu0 0.0
    %599 = vmatpush1.msra.mxu0 0.0
    %600 = vmatprep.subr.mxu0 0.0
    %601 = vmatpush1.msra.mxu0 0.0
    %602 = vmatprep.subr.mxu0 0.0
    %603 = vmatpush1.msra.mxu0 0.0
    %604 = vmatprep.subr.mxu0 0.0
    %605 = vmatpush1.msra.mxu0 0.0
    %606 = vmatprep.subr.mxu0 0.0
    %607 = vmatpush1.msra.mxu0 0.0
    %608 = vmatprep.subr.mxu0 0.0
    %609 = vmatpush1.msra.mxu0 0.0
    %610 = vmatprep.subr.mxu0 0.0
    %611 = vmatpush1.msra.mxu0 0.0
    %612 = vmatprep.subr.mxu0 0.0
    %613 = vmatpush1.msra.mxu0 0.0
    %614 = vmatprep.subr.mxu0 0.0
    %615 = vmatpush1.msra.mxu0 0.0
    %616 = vmatprep.subr.mxu0 0.0
    %617 = vmatpush1.msra.mxu0 0.0
    %618 = vmatprep.subr.mxu0 0.0
    %619 = vmatpush1.msra.mxu0 0.0
    %620 = vmatprep.subr.mxu0 0.0
    %621 = vmatpush1.msra.mxu0 0.0
    %622 = vmatprep.subr.mxu0 0.0
    %623 = vmatpush1.msra.mxu0 0.0
    %624 = vmatprep.subr.mxu0 0.0
    %625 = vmatpush1.msra.mxu0 0.0
    %626 = vmatprep.subr.mxu0 0.0
    %627 = vmatpush1.msra.mxu0 0.0
    %628 = vmatprep.subr.mxu0 0.0
    %629 = vmatpush1.msra.mxu0 0.0
    %630 = vmatprep.mubr.f32.mxu0 0.0
    %631 = vmatmul.mubr.f32.gmra.mrb[0].mxu0 %v564
    %v632 = vpop.f32.mrb[0].mxu0
    %v633 = vadd.f32 %v562, %v632
    %v634 = vpop.f32.mrb[0].mxu0
    %635 = vdwg.mxu0
    %v636 = vmul.f32 %v556, %v556
    %v637 = vsub.f32 1.0, %v636
    %v638 = vmul.f32 %v637, %v633
    %v639 = vsub.f32 %v555, %v638
    %v640 = vld [vmem:[%s10] sm:$0xff]
    %v641 = vld [vmem:[%s10 + $0x8] sm:$0xff]
    %v642 = vld [vmem:[%s10 + $0x10] sm:$0xff]
    %v643 = vld [vmem:[%s10 + $0x18] sm:$0xff]
    %v645 = vsel %vm144, %v638, 0
    %647 = vmatprep.subr.mxu0 0.0
    %648 = vmatpush1.msra.mxu0 %v640
    %649 = vmatprep.subr.mxu0 0.0
    %650 = vmatpush1.msra.mxu0 %v641
    %651 = vmatprep.subr.mxu0 0.0
    %652 = vmatpush1.msra.mxu0 %v642
    %653 = vmatprep.subr.mxu0 0.0
    %654 = vmatpush1.msra.mxu0 %v643
    %655 = vmatprep.subr.mxu0 0.0
    %656 = vmatpush1.msra.mxu0 0.0
    %657 = vmatprep.subr.mxu0 0.0
    %658 = vmatpush1.msra.mxu0 0.0
    %659 = vmatprep.subr.mxu0 0.0
    %660 = vmatpush1.msra.mxu0 0.0
    %661 = vmatprep.subr.mxu0 0.0
    %662 = vmatpush1.msra.mxu0 0.0
    %663 = vmatprep.subr.mxu0 0.0
    %664 = vmatpush1.msra.mxu0 0.0
    %665 = vmatprep.subr.mxu0 0.0
    %666 = vmatpush1.msra.mxu0 0.0
    %667 = vmatprep.subr.mxu0 0.0
    %668 = vmatpush1.msra.mxu0 0.0
    %669 = vmatprep.subr.mxu0 0.0
    %670 = vmatpush1.msra.mxu0 0.0
    %671 = vmatprep.subr.mxu0 0.0
    %672 = vmatpush1.msra.mxu0 0.0
    %673 = vmatprep.subr.mxu0 0.0
    %674 = vmatpush1.msra.mxu0 0.0
    %675 = vmatprep.subr.mxu0 0.0
    %676 = vmatpush1.msra.mxu0 0.0
    %677 = vmatprep.subr.mxu0 0.0
    %678 = vmatpush1.msra.mxu0 0.0
    %679 = vmatprep.subr.mxu0 0.0
    %680 = vmatpush1.msra.mxu0 0.0
    %681 = vmatprep.subr.mxu0 0.0
    %682 = vmatpush1.msra.mxu0 0.0
    %683 = vmatprep.subr.mxu0 0.0
    %684 = vmatpush1.msra.mxu0 0.0
    %685 = vmatprep.subr.mxu0 0.0
    %686 = vmatpush1.msra.mxu0 0.0
    %687 = vmatprep.subr.mxu0 0.0
    %688 = vmatpush1.msra.mxu0 0.0
    %689 = vmatprep.subr.mxu0 0.0
    %690 = vmatpush1.msra.mxu0 0.0
    %691 = vmatprep.subr.mxu0 0.0
    %692 = vmatpush1.msra.mxu0 0.0
    %693 = vmatprep.subr.mxu0 0.0
    %694 = vmatpush1.msra.mxu0 0.0
    %695 = vmatprep.subr.mxu0 0.0
    %696 = vmatpush1.msra.mxu0 0.0
    %697 = vmatprep.subr.mxu0 0.0
    %698 = vmatpush1.msra.mxu0 0.0
    %699 = vmatprep.subr.mxu0 0.0
    %700 = vmatpush1.msra.mxu0 0.0
    %701 = vmatprep.subr.mxu0 0.0
    %702 = vmatpush1.msra.mxu0 0.0
    %703 = vmatprep.subr.mxu0 0.0
    %704 = vmatpush1.msra.mxu0 0.0
    %705 = vmatprep.subr.mxu0 0.0
    %706 = vmatpush1.msra.mxu0 0.0
    %707 = vmatprep.subr.mxu0 0.0
    %708 = vmatpush1.msra.mxu0 0.0
    %709 = vmatprep.subr.mxu0 0.0
    %710 = vmatpush1.msra.mxu0 0.0
    %711 = vmatprep.mubr.f32.mxu0 0.0
    %712 = vmatmul.mubr.f32.gmra.mrb[0].mxu0 %v645
    %v713 = vpop.f32.mrb[0].mxu0
    %v714 = vadd.f32 0.0, %v713
    %v715 = vpop.f32.mrb[0].mxu0
    %716 = vdwg.mxu0
    %v717 = vmul.f32 %v714, 0.1
    %v718 = vsub.f32 %v391, %v717
    %v719 = vtanh.pop %v639
    %v720 = vld [vmem:[%s4] sm:$0xff]
    %v721 = vld [vmem:[%s4 + $0x8] sm:$0xff]
    %v722 = vld [vmem:[%s4 + $0x10] sm:$0xff]
    %v723 = vld [vmem:[%s4 + $0x18] sm:$0xff]
    %v724 = vld [vmem:[%s6] sm:$0xff]
    %v725 = vld [vmem:[%s6 + $0x8] sm:$0xff]
    %v727 = vsel %vm69, %v718, 0
    %729 = vmatprep.subr.mxu0 0.0
    %730 = vmatpush1.msra.mxu0 %v724
    %731 = vmatprep.subr.mxu0 0.0
    %732 = vmatpush1.msra.mxu0 %v725
    %733 = vmatprep.subr.mxu0 0.0
    %734 = vmatpush1.msra.mxu0 0.0
    %735 = vmatprep.subr.mxu0 0.0
    %736 = vmatpush1.msra.mxu0 0.0
    %737 = vmatprep.subr.mxu0 0.0
    %738 = vmatpush1.msra.mxu0 0.0
    %739 = vmatprep.subr.mxu0 0.0
    %740 = vmatpush1.msra.mxu0 0.0
    %741 = vmatprep.subr.mxu0 0.0
    %742 = vmatpush1.msra.mxu0 0.0
    %743 = vmatprep.subr.mxu0 0.0
    %744 = vmatpush1.msra.mxu0 0.0
    %745 = vmatprep.subr.mxu0 0.0
    %746 = vmatpush1.msra.mxu0 0.0
    %747 = vmatprep.subr.mxu0 0.0
    %748 = vmatpush1.msra.mxu0 0.0
    %749 = vmatprep.subr.mxu0 0.0
    %750 = vmatpush1.msra.mxu0 0.0
    %751 = vmatprep.subr.mxu0 0.0
    %752 = vmatpush1.msra.mxu0 0.0
    %753 = vmatprep.subr.mxu0 0.0
    %754 = vmatpush1.msra.mxu0 0.0
    %755 = vmatprep.subr.mxu0 0.0
    %756 = vmatpush1.msra.mxu0 0.0
    %757 = vmatprep.subr.mxu0 0.0
    %758 = vmatpush1.msra.mxu0 0.0
    %759 = vmatprep.subr.mxu0 0.0
    %760 = vmatpush1.msra.mxu0 0.0
    %761 = vmatprep.subr.mxu0 0.0
    %762 = vmatpush1.msra.mxu0 0.0
    %763 = vmatprep.subr.mxu0 0.0
    %764 = vmatpush1.msra.mxu0 0.0
    %765 = vmatprep.subr.mxu0 0.0
    %766 = vmatpush1.msra.mxu0 0.0
    %767 = vmatprep.subr.mxu0 0.0
    %768 = vmatpush1.msra.mxu0 0.0
    %769 = vmatprep.subr.mxu0 0.0
    %770 = vmatpush1.msra.mxu0 0.0
    %771 = vmatprep.subr.mxu0 0.0
    %772 = vmatpush1.msra.mxu0 0.0
    %773 = vmatprep.subr.mxu0 0.0
    %774 = vmatpush1.msra.mxu0 0.0
    %775 = vmatprep.subr.mxu0 0.0
    %776 = vmatpush1.msra.mxu0 0.0
    %777 = vmatprep.subr.mxu0 0.0
    %778 = vmatpush1.msra.mxu0 0.0
    %779 = vmatprep.subr.mxu0 0.0
    %780 = vmatpush1.msra.mxu0 0.0
    %781 = vmatprep.subr.mxu0 0.0
    %782 = vmatpush1.msra.mxu0 0.0
    %783 = vmatprep.subr.mxu0 0.0
    %784 = vmatpush1.msra.mxu0 0.0
    %785 = vmatprep.subr.mxu0 0.0
    %786 = vmatpush1.msra.mxu0 0.0
    %787 = vmatprep.subr.mxu0 0.0
    %788 = vmatpush1.msra.mxu0 0.0
    %789 = vmatprep.subr.mxu0 0.0
    %790 = vmatpush1.msra.mxu0 0.0
    %791 = vmatprep.subr.mxu0 0.0
    %792 = vmatpush1.msra.mxu0 0.0
    %793 = vmatprep.mubr.f32.mxu0 0.0
    %794 = vmatmul.mubr.f32.gmra.mrb[0].mxu0 %v727
    %v795 = vpop.f32.mrb[0].mxu0
    %v796 = vadd.f32 0.0, %v795
    %v797 = vpop.f32.mrb[0].mxu0
    %798 = vdwg.mxu0
    %v799 = vmul.f32 %v639, 0.5
    %v801 = vsel %vm144, %v719, 0
    %803 = vmatprep.subr.mxu0 0.0
    %804 = vmatpush1.msra.mxu0 %v720
    %805 = vmatprep.subr.mxu0 0.0
    %806 = vmatpush1.msra.mxu0 %v721
    %807 = vmatprep.subr.mxu0 0.0
    %808 = vmatpush1.msra.mxu0 %v722
    %809 = vmatprep.subr.mxu0 0.0
    %810 = vmatpush1.msra.mxu0 %v723
    %811 = vmatprep.subr.mxu0 0.0
    %812 = vmatpush1.msra.mxu0 0.0
    %813 = vmatprep.subr.mxu0 0.0
    %814 = vmatpush1.msra.mxu0 0.0
    %815 = vmatprep.subr.mxu0 0.0
    %816 = vmatpush1.msra.mxu0 0.0
    %817 = vmatprep.subr.mxu0 0.0
    %818 = vmatpush1.msra.mxu0 0.0
    %819 = vmatprep.subr.mxu0 0.0
    %820 = vmatpush1.msra.mxu0 0.0
    %821 = vmatprep.subr.mxu0 0.0
    %822 = vmatpush1.msra.mxu0 0.0
    %823 = vmatprep.subr.mxu0 0.0
    %824 = vmatpush1.msra.mxu0 0.0
    %825 = vmatprep.subr.mxu0 0.0
    %826 = vmatpush1.msra.mxu0 0.0
    %827 = vmatprep.subr.mxu0 0.0
    %828 = vmatpush1.msra.mxu0 0.0
    %829 = vmatprep.subr.mxu0 0.0
    %830 = vmatpush1.msra.mxu0 0.0
    %831 = vmatprep.subr.mxu0 0.0
    %832 = vmatpush1.msra.mxu0 0.0
    %833 = vmatprep.subr.mxu0 0.0
    %834 = vmatpush1.msra.mxu0 0.0
    %835 = vmatprep.subr.mxu0 0.0
    %836 = vmatpush1.msra.mxu0 0.0
    %837 = vmatprep.subr.mxu0 0.0
    %838 = vmatpush1.msra.mxu0 0.0
    %839 = vmatprep.subr.mxu0 0.0
    %840 = vmatpush1.msra.mxu0 0.0
    %841 = vmatprep.subr.mxu0 0.0
    %842 = vmatpush1.msra.mxu0 0.0
    %843 = vmatprep.subr.mxu0 0.0
    %844 = vmatpush1.msra.mxu0 0.0
    %845 = vmatprep.subr.mxu0 0.0
    %846 = vmatpush1.msra.mxu0 0.0
    %847 = vmatprep.subr.mxu0 0.0
    %848 = vmatpush1.msra.mxu0 0.0
    %849 = vmatprep.subr.mxu0 0.0
    %850 = vmatpush1.msra.mxu0 0.0
    %851 = vmatprep.subr.mxu0 0.0
    %852 = vmatpush1.msra.mxu0 0.0
    %853 = vmatprep.subr.mxu0 0.0
    %854 = vmatpush1.msra.mxu0 0.0
    %855 = vmatprep.subr.mxu0 0.0
    %856 = vmatpush1.msra.mxu0 0.0
    %857 = vmatprep.subr.mxu0 0.0
    %858 = vmatpush1.msra.mxu0 0.0
    %859 = vmatprep.subr.mxu0 0.0
    %860 = vmatpush1.msra.mxu0 0.0
    %861 = vmatprep.subr.mxu0 0.0
    %862 = vmatpush1.msra.mxu0 0.0
    %863 = vmatprep.subr.mxu0 0.0
    %864 = vmatpush1.msra.mxu0 0.0
    %865 = vmatprep.subr.mxu0 0.0
    %866 = vmatpush1.msra.mxu0 0.0
    %867 = vmatprep.mubr.f32.mxu0 0.0
    %868 = vmatmul.mubr.f32.gmra.mrb[0].mxu0 %v801
    %v869 = vpop.f32.mrb[0].mxu0
    %v870 = vadd.f32 %v796, %v869
    %v871 = vpop.f32.mrb[0].mxu0
    %872 = vdwg.mxu0
    %v873 = vld [vmem:[%s5] sm:$0x1]
    %v875 = vlaneseq
    %v876 = vshrl.u32 %v875, 7
    %v877 = vsub.s32 0, %v876
    %v878 = vrot.slane %v873, %v877
    %v880 = vadd.f32 %v870, %v878
    %v881 = vmul.f32 %v880, 0.5
    %v882 = vadd.f32 %v799, %v881
    %v883 = vtanh.pop %v882
    %884 = vst.msk [vmem:[#allocation4 + $0x4] sm:$0x3] %vm229, %v883
    %v885 = vld [vmem:[%s9] sm:$0xff]
    %v886 = vld [vmem:[%s9 + $0x8] sm:$0xff]
    %v887 = vld [vmem:[%s9 + $0x10] sm:$0xff]
    %v888 = vld [vmem:[%s9 + $0x18] sm:$0xff]
    %v889 = vld [vmem:[%s1 + $0x4] sm:$0x3]
    %v891 = vsel %vm144, %v883, 0
    %893 = vmatprep.subr.mxu0 0.0
    %894 = vmatpush1.msra.mxu0 %v885
    %895 = vmatprep.subr.mxu0 0.0
    %896 = vmatpush1.msra.mxu0 %v886
    %897 = vmatprep.subr.mxu0 0.0
    %898 = vmatpush1.msra.mxu0 %v887
    %899 = vmatprep.subr.mxu0 0.0
    %900 = vmatpush1.msra.mxu0 %v888
    %901 = vmatprep.subr.mxu0 0.0
    %902 = vmatpush1.msra.mxu0 0.0
    %903 = vmatprep.subr.mxu0 0.0
    %904 = vmatpush1.msra.mxu0 0.0
    %905 = vmatprep.subr.mxu0 0.0
    %906 = vmatpush1.msra.mxu0 0.0
    %907 = vmatprep.subr.mxu0 0.0
    %908 = vmatpush1.msra.mxu0 0.0
    %909 = vmatprep.subr.mxu0 0.0
    %910 = vmatpush1.msra.mxu0 0.0
    %911 = vmatprep.subr.mxu0 0.0
    %912 = vmatpush1.msra.mxu0 0.0
    %913 = vmatprep.subr.mxu0 0.0
    %914 = vmatpush1.msra.mxu0 0.0
    %915 = vmatprep.subr.mxu0 0.0
    %916 = vmatpush1.msra.mxu0 0.0
    %917 = vmatprep.subr.mxu0 0.0
    %918 = vmatpush1.msra.mxu0 0.0
    %919 = vmatprep.subr.mxu0 0.0
    %920 = vmatpush1.msra.mxu0 0.0
    %921 = vmatprep.subr.mxu0 0.0
    %922 = vmatpush1.msra.mxu0 0.0
    %923 = vmatprep.subr.mxu0 0.0
    %924 = vmatpush1.msra.mxu0 0.0
    %925 = vmatprep.subr.mxu0 0.0
    %926 = vmatpush1.msra.mxu0 0.0
    %927 = vmatprep.subr.mxu0 0.0
    %928 = vmatpush1.msra.mxu0 0.0
    %929 = vmatprep.subr.mxu0 0.0
    %930 = vmatpush1.msra.mxu0 0.0
    %931 = vmatprep.subr.mxu0 0.0
    %932 = vmatpush1.msra.mxu0 0.0
    %933 = vmatprep.subr.mxu0 0.0
    %934 = vmatpush1.msra.mxu0 0.0
    %935 = vmatprep.subr.mxu0 0.0
    %936 = vmatpush1.msra.mxu0 0.0
    %937 = vmatprep.subr.mxu0 0.0
    %938 = vmatpush1.msra.mxu0 0.0
    %939 = vmatprep.subr.mxu0 0.0
    %940 = vmatpush1.msra.mxu0 0.0
    %941 = vmatprep.subr.mxu0 0.0
    %942 = vmatpush1.msra.mxu0 0.0
    %943 = vmatprep.subr.mxu0 0.0
    %944 = vmatpush1.msra.mxu0 0.0
    %945 = vmatprep.subr.mxu0 0.0
    %946 = vmatpush1.msra.mxu0 0.0
    %947 = vmatprep.subr.mxu0 0.0
    %948 = vmatpush1.msra.mxu0 0.0
    %949 = vmatprep.subr.mxu0 0.0
    %950 = vmatpush1.msra.mxu0 0.0
    %951 = vmatprep.subr.mxu0 0.0
    %952 = vmatpush1.msra.mxu0 0.0
    %953 = vmatprep.subr.mxu0 0.0
    %954 = vmatpush1.msra.mxu0 0.0
    %955 = vmatprep.subr.mxu0 0.0
    %956 = vmatpush1.msra.mxu0 0.0
    %957 = vmatprep.mubr.f32.mxu0 0.0
    %958 = vmatmul.mubr.f32.gmra.mrb[0].mxu0 %v891
    %v959 = vpop.f32.mrb[0].mxu0
    %v960 = vadd.f32 %v889, %v959
    %v961 = vpop.f32.mrb[0].mxu0
    %962 = vdwg.mxu0
    %v963 = vmul.f32 %v883, %v883
    %v964 = vsub.f32 1.0, %v963
    %v965 = vmul.f32 %v964, %v960
    %v966 = vsub.f32 %v882, %v965
    %v967 = vld [vmem:[%s10] sm:$0xff]
    %v968 = vld [vmem:[%s10 + $0x8] sm:$0xff]
    %v969 = vld [vmem:[%s10 + $0x10] sm:$0xff]
    %v970 = vld [vmem:[%s10 + $0x18] sm:$0xff]
    %v972 = vsel %vm144, %v965, 0
    %974 = vmatprep.subr.mxu0 0.0
    %975 = vmatpush1.msra.mxu0 %v967
    %976 = vmatprep.subr.mxu0 0.0
    %977 = vmatpush1.msra.mxu0 %v968
    %978 = vmatprep.subr.mxu0 0.0
    %979 = vmatpush1.msra.mxu0 %v969
    %980 = vmatprep.subr.mxu0 0.0
    %981 = vmatpush1.msra.mxu0 %v970
    %982 = vmatprep.subr.mxu0 0.0
    %983 = vmatpush1.msra.mxu0 0.0
    %984 = vmatprep.subr.mxu0 0.0
    %985 = vmatpush1.msra.mxu0 0.0
    %986 = vmatprep.subr.mxu0 0.0
    %987 = vmatpush1.msra.mxu0 0.0
    %988 = vmatprep.subr.mxu0 0.0
    %989 = vmatpush1.msra.mxu0 0.0
    %990 = vmatprep.subr.mxu0 0.0
    %991 = vmatpush1.msra.mxu0 0.0
    %992 = vmatprep.subr.mxu0 0.0
    %993 = vmatpush1.msra.mxu0 0.0
    %994 = vmatprep.subr.mxu0 0.0
    %995 = vmatpush1.msra.mxu0 0.0
    %996 = vmatprep.subr.mxu0 0.0
    %997 = vmatpush1.msra.mxu0 0.0
    %998 = vmatprep.subr.mxu0 0.0
    %999 = vmatpush1.msra.mxu0 0.0
    %1000 = vmatprep.subr.mxu0 0.0
    %1001 = vmatpush1.msra.mxu0 0.0
    %1002 = vmatprep.subr.mxu0 0.0
    %1003 = vmatpush1.msra.mxu0 0.0
    %1004 = vmatprep.subr.mxu0 0.0
    %1005 = vmatpush1.msra.mxu0 0.0
    %1006 = vmatprep.subr.mxu0 0.0
    %1007 = vmatpush1.msra.mxu0 0.0
    %1008 = vmatprep.subr.mxu0 0.0
    %1009 = vmatpush1.msra.mxu0 0.0
    %1010 = vmatprep.subr.mxu0 0.0
    %1011 = vmatpush1.msra.mxu0 0.0
    %1012 = vmatprep.subr.mxu0 0.0
    %1013 = vmatpush1.msra.mxu0 0.0
    %1014 = vmatprep.subr.mxu0 0.0
    %1015 = vmatpush1.msra.mxu0 0.0
    %1016 = vmatprep.subr.mxu0 0.0
    %1017 = vmatpush1.msra.mxu0 0.0
    %1018 = vmatprep.subr.mxu0 0.0
    %1019 = vmatpush1.msra.mxu0 0.0
    %1020 = vmatprep.subr.mxu0 0.0
    %1021 = vmatpush1.msra.mxu0 0.0
    %1022 = vmatprep.subr.mxu0 0.0
    %1023 = vmatpush1.msra.mxu0 0.0
    %1024 = vmatprep.subr.mxu0 0.0
    %1025 = vmatpush1.msra.mxu0 0.0
    %1026 = vmatprep.subr.mxu0 0.0
    %1027 = vmatpush1.msra.mxu0 0.0
    %1028 = vmatprep.subr.mxu0 0.0
    %1029 = vmatpush1.msra.mxu0 0.0
    %1030 = vmatprep.subr.mxu0 0.0
    %1031 = vmatpush1.msra.mxu0 0.0
    %1032 = vmatprep.subr.mxu0 0.0
    %1033 = vmatpush1.msra.mxu0 0.0
    %1034 = vmatprep.subr.mxu0 0.0
    %1035 = vmatpush1.msra.mxu0 0.0
    %1036 = vmatprep.subr.mxu0 0.0
    %1037 = vmatpush1.msra.mxu0 0.0
    %1038 = vmatprep.mubr.f32.mxu0 0.0
    %1039 = vmatmul.mubr.f32.gmra.mrb[0].mxu0 %v972
    %v1040 = vpop.f32.mrb[0].mxu0
    %v1041 = vadd.f32 0.0, %v1040
    %v1042 = vpop.f32.mrb[0].mxu0
    %1043 = vdwg.mxu0
    %v1044 = vmul.f32 %v1041, 0.1
    %v1045 = vsub.f32 %v718, %v1044
    %v1046 = vtanh.pop %v966
    %v1047 = vld [vmem:[%s4] sm:$0xff]
    %v1048 = vld [vmem:[%s4 + $0x8] sm:$0xff]
    %v1049 = vld [vmem:[%s4 + $0x10] sm:$0xff]
    %v1050 = vld [vmem:[%s4 + $0x18] sm:$0xff]
    %v1051 = vld [vmem:[%s6] sm:$0xff]
    %v1052 = vld [vmem:[%s6 + $0x8] sm:$0xff]
    %v1054 = vsel %vm69, %v1045, 0
    %1056 = vmatprep.subr.mxu0 0.0
    %1057 = vmatpush1.msra.mxu0 %v1051
    %1058 = vmatprep.subr.mxu0 0.0
    %1059 = vmatpush1.msra.mxu0 %v1052
    %1060 = vmatprep.subr.mxu0 0.0
    %1061 = vmatpush1.msra.mxu0 0.0
    %1062 = vmatprep.subr.mxu0 0.0
    %1063 = vmatpush1.msra.mxu0 0.0
    %1064 = vmatprep.subr.mxu0 0.0
    %1065 = vmatpush1.msra.mxu0 0.0
    %1066 = vmatprep.subr.mxu0 0.0
    %1067 = vmatpush1.msra.mxu0 0.0
    %1068 = vmatprep.subr.mxu0 0.0
    %1069 = vmatpush1.msra.mxu0 0.0
    %1070 = vmatprep.subr.mxu0 0.0
    %1071 = vmatpush1.msra.mxu0 0.0
    %1072 = vmatprep.subr.mxu0 0.0
    %1073 = vmatpush1.msra.mxu0 0.0
    %1074 = vmatprep.subr.mxu0 0.0
    %1075 = vmatpush1.msra.mxu0 0.0
    %1076 = vmatprep.subr.mxu0 0.0
    %1077 = vmatpush1.msra.mxu0 0.0
    %1078 = vmatprep.subr.mxu0 0.0
    %1079 = vmatpush1.msra.mxu0 0.0
    %1080 = vmatprep.subr.mxu0 0.0
    %1081 = vmatpush1.msra.mxu0 0.0
    %1082 = vmatprep.subr.mxu0 0.0
    %1083 = vmatpush1.msra.mxu0 0.0
    %1084 = vmatprep.subr.mxu0 0.0
    %1085 = vmatpush1.msra.mxu0 0.0
    %1086 = vmatprep.subr.mxu0 0.0
    %1087 = vmatpush1.msra.mxu0 0.0
    %1088 = vmatprep.subr.mxu0 0.0
    %1089 = vmatpush1.msra.mxu0 0.0
    %1090 = vmatprep.subr.mxu0 0.0
    %1091 = vmatpush1.msra.mxu0 0.0
    %1092 = vmatprep.subr.mxu0 0.0
    %1093 = vmatpush1.msra.mxu0 0.0
    %1094 = vmatprep.subr.mxu0 0.0
    %1095 = vmatpush1.msra.mxu0 0.0
    %1096 = vmatprep.subr.mxu0 0.0
    %1097 = vmatpush1.msra.mxu0 0.0
    %1098 = vmatprep.subr.mxu0 0.0
    %1099 = vmatpush1.msra.mxu0 0.0
    %1100 = vmatprep.subr.mxu0 0.0
    %1101 = vmatpush1.msra.mxu0 0.0
    %1102 = vmatprep.subr.mxu0 0.0
    %1103 = vmatpush1.msra.mxu0 0.0
    %1104 = vmatprep.subr.mxu0 0.0
    %1105 = vmatpush1.msra.mxu0 0.0
    %1106 = vmatprep.subr.mxu0 0.0
    %1107 = vmatpush1.msra.mxu0 0.0
    %1108 = vmatprep.subr.mxu0 0.0
    %1109 = vmatpush1.msra.mxu0 0.0
    %1110 = vmatprep.subr.mxu0 0.0
    %1111 = vmatpush1.msra.mxu0 0.0
    %1112 = vmatprep.subr.mxu0 0.0
    %1113 = vmatpush1.msra.mxu0 0.0
    %1114 = vmatprep.subr.mxu0 0.0
    %1115 = vmatpush1.msra.mxu0 0.0
    %1116 = vmatprep.subr.mxu0 0.0
    %1117 = vmatpush1.msra.mxu0 0.0
    %1118 = vmatprep.subr.mxu0 0.0
    %1119 = vmatpush1.msra.mxu0 0.0
    %1120 = vmatprep.mubr.f32.mxu0 0.0
    %1121 = vmatmul.mubr.f32.gmra.mrb[0].mxu0 %v1054
    %v1122 = vpop.f32.mrb[0].mxu0
    %v1123 = vadd.f32 0.0, %v1122
    %v1124 = vpop.f32.mrb[0].mxu0
    %1125 = vdwg.mxu0
    %v1126 = vmul.f32 %v966, 0.5
    %v1128 = vsel %vm144, %v1046, 0
    %1130 = vmatprep.subr.mxu0 0.0
    %1131 = vmatpush1.msra.mxu0 %v1047
    %1132 = vmatprep.subr.mxu0 0.0
    %1133 = vmatpush1.msra.mxu0 %v1048
    %1134 = vmatprep.subr.mxu0 0.0
    %1135 = vmatpush1.msra.mxu0 %v1049
    %1136 = vmatprep.subr.mxu0 0.0
    %1137 = vmatpush1.msra.mxu0 %v1050
    %1138 = vmatprep.subr.mxu0 0.0
    %1139 = vmatpush1.msra.mxu0 0.0
    %1140 = vmatprep.subr.mxu0 0.0
    %1141 = vmatpush1.msra.mxu0 0.0
    %1142 = vmatprep.subr.mxu0 0.0
    %1143 = vmatpush1.msra.mxu0 0.0
    %1144 = vmatprep.subr.mxu0 0.0
    %1145 = vmatpush1.msra.mxu0 0.0
    %1146 = vmatprep.subr.mxu0 0.0
    %1147 = vmatpush1.msra.mxu0 0.0
    %1148 = vmatprep.subr.mxu0 0.0
    %1149 = vmatpush1.msra.mxu0 0.0
    %1150 = vmatprep.subr.mxu0 0.0
    %1151 = vmatpush1.msra.mxu0 0.0
    %1152 = vmatprep.subr.mxu0 0.0
    %1153 = vmatpush1.msra.mxu0 0.0
    %1154 = vmatprep.subr.mxu0 0.0
    %1155 = vmatpush1.msra.mxu0 0.0
    %1156 = vmatprep.subr.mxu0 0.0
    %1157 = vmatpush1.msra.mxu0 0.0
    %1158 = vmatprep.subr.mxu0 0.0
    %1159 = vmatpush1.msra.mxu0 0.0
    %1160 = vmatprep.subr.mxu0 0.0
    %1161 = vmatpush1.msra.mxu0 0.0
    %1162 = vmatprep.subr.mxu0 0.0
    %1163 = vmatpush1.msra.mxu0 0.0
    %1164 = vmatprep.subr.mxu0 0.0
    %1165 = vmatpush1.msra.mxu0 0.0
    %1166 = vmatprep.subr.mxu0 0.0
    %1167 = vmatpush1.msra.mxu0 0.0
    %1168 = vmatprep.subr.mxu0 0.0
    %1169 = vmatpush1.msra.mxu0 0.0
    %1170 = vmatprep.subr.mxu0 0.0
    %1171 = vmatpush1.msra.mxu0 0.0
    %1172 = vmatprep.subr.mxu0 0.0
    %1173 = vmatpush1.msra.mxu0 0.0
    %1174 = vmatprep.subr.mxu0 0.0
    %1175 = vmatpush1.msra.mxu0 0.0
    %1176 = vmatprep.subr.mxu0 0.0
    %1177 = vmatpush1.msra.mxu0 0.0
    %1178 = vmatprep.subr.mxu0 0.0
    %1179 = vmatpush1.msra.mxu0 0.0
    %1180 = vmatprep.subr.mxu0 0.0
    %1181 = vmatpush1.msra.mxu0 0.0
    %1182 = vmatprep.subr.mxu0 0.0
    %1183 = vmatpush1.msra.mxu0 0.0
    %1184 = vmatprep.subr.mxu0 0.0
    %1185 = vmatpush1.msra.mxu0 0.0
    %1186 = vmatprep.subr.mxu0 0.0
    %1187 = vmatpush1.msra.mxu0 0.0
    %1188 = vmatprep.subr.mxu0 0.0
    %1189 = vmatpush1.msra.mxu0 0.0
    %1190 = vmatprep.subr.mxu0 0.0
    %1191 = vmatpush1.msra.mxu0 0.0
    %1192 = vmatprep.subr.mxu0 0.0
    %1193 = vmatpush1.msra.mxu0 0.0
    %1194 = vmatprep.mubr.f32.mxu0 0.0
    %1195 = vmatmul.mubr.f32.gmra.mrb[0].mxu0 %v1128
    %v1196 = vpop.f32.mrb[0].mxu0
    %v1197 = vadd.f32 %v1123, %v1196
    %v1198 = vpop.f32.mrb[0].mxu0
    %1199 = vdwg.mxu0
    %v1200 = vld [vmem:[%s5] sm:$0x1]
    %v1202 = vlaneseq
    %v1203 = vshrl.u32 %v1202, 7
    %v1204 = vsub.s32 0, %v1203
    %v1205 = vrot.slane %v1200, %v1204
    %v1207 = vadd.f32 %v1197, %v1205
    %v1208 = vmul.f32 %v1207, 0.5
    %v1209 = vadd.f32 %v1126, %v1208
    %v1210 = vtanh.pop %v1209
    %1211 = vst.msk [vmem:[#allocation4 + $0x6] sm:$0x3] %vm229, %v1210
    %v1212 = vld [vmem:[%s9] sm:$0xff]
    %v1213 = vld [vmem:[%s9 + $0x8] sm:$0xff]
    %v1214 = vld [vmem:[%s9 + $0x10] sm:$0xff]
    %v1215 = vld [vmem:[%s9 + $0x18] sm:$0xff]
    %v1216 = vld [vmem:[%s1 + $0x6] sm:$0x3]
    %v1218 = vsel %vm144, %v1210, 0
    %1220 = vmatprep.subr.mxu0 0.0
    %1221 = vmatpush1.msra.mxu0 %v1212
    %1222 = vmatprep.subr.mxu0 0.0
    %1223 = vmatpush1.msra.mxu0 %v1213
    %1224 = vmatprep.subr.mxu0 0.0
    %1225 = vmatpush1.msra.mxu0 %v1214
    %1226 = vmatprep.subr.mxu0 0.0
    %1227 = vmatpush1.msra.mxu0 %v1215
    %1228 = vmatprep.subr.mxu0 0.0
    %1229 = vmatpush1.msra.mxu0 0.0
    %1230 = vmatprep.subr.mxu0 0.0
    %1231 = vmatpush1.msra.mxu0 0.0
    %1232 = vmatprep.subr.mxu0 0.0
    %1233 = vmatpush1.msra.mxu0 0.0
    %1234 = vmatprep.subr.mxu0 0.0
    %1235 = vmatpush1.msra.mxu0 0.0
    %1236 = vmatprep.subr.mxu0 0.0
    %1237 = vmatpush1.msra.mxu0 0.0
    %1238 = vmatprep.subr.mxu0 0.0
    %1239 = vmatpush1.msra.mxu0 0.0
    %1240 = vmatprep.subr.mxu0 0.0
    %1241 = vmatpush1.msra.mxu0 0.0
    %1242 = vmatprep.subr.mxu0 0.0
    %1243 = vmatpush1.msra.mxu0 0.0
    %1244 = vmatprep.subr.mxu0 0.0
    %1245 = vmatpush1.msra.mxu0 0.0
    %1246 = vmatprep.subr.mxu0 0.0
    %1247 = vmatpush1.msra.mxu0 0.0
    %1248 = vmatprep.subr.mxu0 0.0
    %1249 = vmatpush1.msra.mxu0 0.0
    %1250 = vmatprep.subr.mxu0 0.0
    %1251 = vmatpush1.msra.mxu0 0.0
    %1252 = vmatprep.subr.mxu0 0.0
    %1253 = vmatpush1.msra.mxu0 0.0
    %1254 = vmatprep.subr.mxu0 0.0
    %1255 = vmatpush1.msra.mxu0 0.0
    %1256 = vmatprep.subr.mxu0 0.0
    %1257 = vmatpush1.msra.mxu0 0.0
    %1258 = vmatprep.subr.mxu0 0.0
    %1259 = vmatpush1.msra.mxu0 0.0
    %1260 = vmatprep.subr.mxu0 0.0
    %1261 = vmatpush1.msra.mxu0 0.0
    %1262 = vmatprep.subr.mxu0 0.0
    %1263 = vmatpush1.msra.mxu0 0.0
    %1264 = vmatprep.subr.mxu0 0.0
    %1265 = vmatpush1.msra.mxu0 0.0
    %1266 = vmatprep.subr.mxu0 0.0
    %1267 = vmatpush1.msra.mxu0 0.0
    %1268 = vmatprep.subr.mxu0 0.0
    %1269 = vmatpush1.msra.mxu0 0.0
    %1270 = vmatprep.subr.mxu0 0.0
    %1271 = vmatpush1.msra.mxu0 0.0
    %1272 = vmatprep.subr.mxu0 0.0
    %1273 = vmatpush1.msra.mxu0 0.0
    %1274 = vmatprep.subr.mxu0 0.0
    %1275 = vmatpush1.msra.mxu0 0.0
    %1276 = vmatprep.subr.mxu0 0.0
    %1277 = vmatpush1.msra.mxu0 0.0
    %1278 = vmatprep.subr.mxu0 0.0
    %1279 = vmatpush1.msra.mxu0 0.0
    %1280 = vmatprep.subr.mxu0 0.0
    %1281 = vmatpush1.msra.mxu0 0.0
    %1282 = vmatprep.subr.mxu0 0.0
    %1283 = vmatpush1.msra.mxu0 0.0
    %1284 = vmatprep.mubr.f32.mxu0 0.0
    %1285 = vmatmul.mubr.f32.gmra.mrb[0].mxu0 %v1218
    %v1286 = vpop.f32.mrb[0].mxu0
    %v1287 = vadd.f32 %v1216, %v1286
    %v1288 = vpop.f32.mrb[0].mxu0
    %1289 = vdwg.mxu0
    %v1290 = vmul.f32 %v1210, %v1210
    %v1291 = vsub.f32 1.0, %v1290
    %v1292 = vmul.f32 %v1291, %v1287
    %v1293 = vsub.f32 %v1209, %v1292
    %v1294 = vld [vmem:[%s10] sm:$0xff]
    %v1295 = vld [vmem:[%s10 + $0x8] sm:$0xff]
    %v1296 = vld [vmem:[%s10 + $0x10] sm:$0xff]
    %v1297 = vld [vmem:[%s10 + $0x18] sm:$0xff]
    %v1299 = vsel %vm144, %v1292, 0
    %1301 = vmatprep.subr.mxu0 0.0
    %1302 = vmatpush1.msra.mxu0 %v1294
    %1303 = vmatprep.subr.mxu0 0.0
    %1304 = vmatpush1.msra.mxu0 %v1295
    %1305 = vmatprep.subr.mxu0 0.0
    %1306 = vmatpush1.msra.mxu0 %v1296
    %1307 = vmatprep.subr.mxu0 0.0
    %1308 = vmatpush1.msra.mxu0 %v1297
    %1309 = vmatprep.subr.mxu0 0.0
    %1310 = vmatpush1.msra.mxu0 0.0
    %1311 = vmatprep.subr.mxu0 0.0
    %1312 = vmatpush1.msra.mxu0 0.0
    %1313 = vmatprep.subr.mxu0 0.0
    %1314 = vmatpush1.msra.mxu0 0.0
    %1315 = vmatprep.subr.mxu0 0.0
    %1316 = vmatpush1.msra.mxu0 0.0
    %1317 = vmatprep.subr.mxu0 0.0
    %1318 = vmatpush1.msra.mxu0 0.0
    %1319 = vmatprep.subr.mxu0 0.0
    %1320 = vmatpush1.msra.mxu0 0.0
    %1321 = vmatprep.subr.mxu0 0.0
    %1322 = vmatpush1.msra.mxu0 0.0
    %1323 = vmatprep.subr.mxu0 0.0
    %1324 = vmatpush1.msra.mxu0 0.0
    %1325 = vmatprep.subr.mxu0 0.0
    %1326 = vmatpush1.msra.mxu0 0.0
    %1327 = vmatprep.subr.mxu0 0.0
    %1328 = vmatpush1.msra.mxu0 0.0
    %1329 = vmatprep.subr.mxu0 0.0
    %1330 = vmatpush1.msra.mxu0 0.0
    %1331 = vmatprep.subr.mxu0 0.0
    %1332 = vmatpush1.msra.mxu0 0.0
    %1333 = vmatprep.subr.mxu0 0.0
    %1334 = vmatpush1.msra.mxu0 0.0
    %1335 = vmatprep.subr.mxu0 0.0
    %1336 = vmatpush1.msra.mxu0 0.0
    %1337 = vmatprep.subr.mxu0 0.0
    %1338 = vmatpush1.msra.mxu0 0.0
    %1339 = vmatprep.subr.mxu0 0.0
    %1340 = vmatpush1.msra.mxu0 0.0
    %1341 = vmatprep.subr.mxu0 0.0
    %1342 = vmatpush1.msra.mxu0 0.0
    %1343 = vmatprep.subr.mxu0 0.0
    %1344 = vmatpush1.msra.mxu0 0.0
    %1345 = vmatprep.subr.mxu0 0.0
    %1346 = vmatpush1.msra.mxu0 0.0
    %1347 = vmatprep.subr.mxu0 0.0
    %1348 = vmatpush1.msra.mxu0 0.0
    %1349 = vmatprep.subr.mxu0 0.0
    %1350 = vmatpush1.msra.mxu0 0.0
    %1351 = vmatprep.subr.mxu0 0.0
    %1352 = vmatpush1.msra.mxu0 0.0
    %1353 = vmatprep.subr.mxu0 0.0
    %1354 = vmatpush1.msra.mxu0 0.0
    %1355 = vmatprep.subr.mxu0 0.0
    %1356 = vmatpush1.msra.mxu0 0.0
    %1357 = vmatprep.subr.mxu0 0.0
    %1358 = vmatpush1.msra.mxu0 0.0
    %1359 = vmatprep.subr.mxu0 0.0
    %1360 = vmatpush1.msra.mxu0 0.0
    %1361 = vmatprep.subr.mxu0 0.0
    %1362 = vmatpush1.msra.mxu0 0.0
    %1363 = vmatprep.subr.mxu0 0.0
    %1364 = vmatpush1.msra.mxu0 0.0
    %1365 = vmatprep.mubr.f32.mxu0 0.0
    %1366 = vmatmul.mubr.f32.gmra.mrb[0].mxu0 %v1299
    %v1367 = vpop.f32.mrb[0].mxu0
    %v1368 = vadd.f32 0.0, %v1367
    %v1369 = vpop.f32.mrb[0].mxu0
    %1370 = vdwg.mxu0
    %v1371 = vmul.f32 %v1368, 0.1
    %v1372 = vsub.f32 %v1045, %v1371
    %v1373 = vtanh.pop %v1293
    %v1374 = vld [vmem:[%s4] sm:$0xff]
    %v1375 = vld [vmem:[%s4 + $0x8] sm:$0xff]
    %v1376 = vld [vmem:[%s4 + $0x10] sm:$0xff]
    %v1377 = vld [vmem:[%s4 + $0x18] sm:$0xff]
    %v1378 = vld [vmem:[%s6] sm:$0xff]
    %v1379 = vld [vmem:[%s6 + $0x8] sm:$0xff]
    %v1381 = vsel %vm69, %v1372, 0
    %1383 = vmatprep.subr.mxu0 0.0
    %1384 = vmatpush1.msra.mxu0 %v1378
    %1385 = vmatprep.subr.mxu0 0.0
    %1386 = vmatpush1.msra.mxu0 %v1379
    %1387 = vmatprep.subr.mxu0 0.0
    %1388 = vmatpush1.msra.mxu0 0.0
    %1389 = vmatprep.subr.mxu0 0.0
    %1390 = vmatpush1.msra.mxu0 0.0
    %1391 = vmatprep.subr.mxu0 0.0
    %1392 = vmatpush1.msra.mxu0 0.0
    %1393 = vmatprep.subr.mxu0 0.0
    %1394 = vmatpush1.msra.mxu0 0.0
    %1395 = vmatprep.subr.mxu0 0.0
    %1396 = vmatpush1.msra.mxu0 0.0
    %1397 = vmatprep.subr.mxu0 0.0
    %1398 = vmatpush1.msra.mxu0 0.0
    %1399 = vmatprep.subr.mxu0 0.0
    %1400 = vmatpush1.msra.mxu0 0.0
    %1401 = vmatprep.subr.mxu0 0.0
    %1402 = vmatpush1.msra.mxu0 0.0
    %1403 = vmatprep.subr.mxu0 0.0
    %1404 = vmatpush1.msra.mxu0 0.0
    %1405 = vmatprep.subr.mxu0 0.0
    %1406 = vmatpush1.msra.mxu0 0.0
    %1407 = vmatprep.subr.mxu0 0.0
    %1408 = vmatpush1.msra.mxu0 0.0
    %1409 = vmatprep.subr.mxu0 0.0
    %1410 = vmatpush1.msra.mxu0 0.0
    %1411 = vmatprep.subr.mxu0 0.0
    %1412 = vmatpush1.msra.mxu0 0.0
    %1413 = vmatprep.subr.mxu0 0.0
    %1414 = vmatpush1.msra.mxu0 0.0
    %1415 = vmatprep.subr.mxu0 0.0
    %1416 = vmatpush1.msra.mxu0 0.0
    %1417 = vmatprep.subr.mxu0 0.0
    %1418 = vmatpush1.msra.mxu0 0.0
    %1419 = vmatprep.subr.mxu0 0.0
    %1420 = vmatpush1.msra.mxu0 0.0
    %1421 = vmatprep.subr.mxu0 0.0
    %1422 = vmatpush1.msra.mxu0 0.0
    %1423 = vmatprep.subr.mxu0 0.0
    %1424 = vmatpush1.msra.mxu0 0.0
    %1425 = vmatprep.subr.mxu0 0.0
    %1426 = vmatpush1.msra.mxu0 0.0
    %1427 = vmatprep.subr.mxu0 0.0
    %1428 = vmatpush1.msra.mxu0 0.0
    %1429 = vmatprep.subr.mxu0 0.0
    %1430 = vmatpush1.msra.mxu0 0.0
    %1431 = vmatprep.subr.mxu0 0.0
    %1432 = vmatpush1.msra.mxu0 0.0
    %1433 = vmatprep.subr.mxu0 0.0
    %1434 = vmatpush1.msra.mxu0 0.0
    %1435 = vmatprep.subr.mxu0 0.0
    %1436 = vmatpush1.msra.mxu0 0.0
    %1437 = vmatprep.subr.mxu0 0.0
    %1438 = vmatpush1.msra.mxu0 0.0
    %1439 = vmatprep.subr.mxu0 0.0
    %1440 = vmatpush1.msra.mxu0 0.0
    %1441 = vmatprep.subr.mxu0 0.0
    %1442 = vmatpush1.msra.mxu0 0.0
    %1443 = vmatprep.subr.mxu0 0.0
    %1444 = vmatpush1.msra.mxu0 0.0
    %1445 = vmatprep.subr.mxu0 0.0
    %1446 = vmatpush1.msra.mxu0 0.0
    %1447 = vmatprep.mubr.f32.mxu0 0.0
    %1448 = vmatmul.mubr.f32.gmra.mrb[0].mxu0 %v1381
    %v1449 = vpop.f32.mrb[0].mxu0
    %v1450 = vadd.f32 0.0, %v1449
    %v1451 = vpop.f32.mrb[0].mxu0
    %1452 = vdwg.mxu0
    %v1453 = vmul.f32 %v1293, 0.5
    %v1455 = vsel %vm144, %v1373, 0
    %1457 = vmatprep.subr.mxu0 0.0
    %1458 = vmatpush1.msra.mxu0 %v1374
    %1459 = vmatprep.subr.mxu0 0.0
    %1460 = vmatpush1.msra.mxu0 %v1375
    %1461 = vmatprep.subr.mxu0 0.0
    %1462 = vmatpush1.msra.mxu0 %v1376
    %1463 = vmatprep.subr.mxu0 0.0
    %1464 = vmatpush1.msra.mxu0 %v1377
    %1465 = vmatprep.subr.mxu0 0.0
    %1466 = vmatpush1.msra.mxu0 0.0
    %1467 = vmatprep.subr.mxu0 0.0
    %1468 = vmatpush1.msra.mxu0 0.0
    %1469 = vmatprep.subr.mxu0 0.0
    %1470 = vmatpush1.msra.mxu0 0.0
    %1471 = vmatprep.subr.mxu0 0.0
    %1472 = vmatpush1.msra.mxu0 0.0
    %1473 = vmatprep.subr.mxu0 0.0
    %1474 = vmatpush1.msra.mxu0 0.0
    %1475 = vmatprep.subr.mxu0 0.0
    %1476 = vmatpush1.msra.mxu0 0.0
    %1477 = vmatprep.subr.mxu0 0.0
    %1478 = vmatpush1.msra.mxu0 0.0
    %1479 = vmatprep.subr.mxu0 0.0
    %1480 = vmatpush1.msra.mxu0 0.0
    %1481 = vmatprep.subr.mxu0 0.0
    %1482 = vmatpush1.msra.mxu0 0.0
    %1483 = vmatprep.subr.mxu0 0.0
    %1484 = vmatpush1.msra.mxu0 0.0
    %1485 = vmatprep.subr.mxu0 0.0
    %1486 = vmatpush1.msra.mxu0 0.0
    %1487 = vmatprep.subr.mxu0 0.0
    %1488 = vmatpush1.msra.mxu0 0.0
    %1489 = vmatprep.subr.mxu0 0.0
    %1490 = vmatpush1.msra.mxu0 0.0
    %1491 = vmatprep.subr.mxu0 0.0
    %1492 = vmatpush1.msra.mxu0 0.0
    %1493 = vmatprep.subr.mxu0 0.0
    %1494 = vmatpush1.msra.mxu0 0.0
    %1495 = vmatprep.subr.mxu0 0.0
    %1496 = vmatpush1.msra.mxu0 0.0
    %1497 = vmatprep.subr.mxu0 0.0
    %1498 = vmatpush1.msra.mxu0 0.0
    %1499 = vmatprep.subr.mxu0 0.0
    %1500 = vmatpush1.msra.mxu0 0.0
    %1501 = vmatprep.subr.mxu0 0.0
    %1502 = vmatpush1.msra.mxu0 0.0
    %1503 = vmatprep.subr.mxu0 0.0
    %1504 = vmatpush1.msra.mxu0 0.0
    %1505 = vmatprep.subr.mxu0 0.0
    %1506 = vmatpush1.msra.mxu0 0.0
    %1507 = vmatprep.subr.mxu0 0.0
    %1508 = vmatpush1.msra.mxu0 0.0
    %1509 = vmatprep.subr.mxu0 0.0
    %1510 = vmatpush1.msra.mxu0 0.0
    %1511 = vmatprep.subr.mxu0 0.0
    %1512 = vmatpush1.msra.mxu0 0.0
    %1513 = vmatprep.subr.mxu0 0.0
    %1514 = vmatpush1.msra.mxu0 0.0
    %1515 = vmatprep.subr.mxu0 0.0
    %1516 = vmatpush1.msra.mxu0 0.0
    %1517 = vmatprep.subr.mxu0 0.0
    %1518 = vmatpush1.msra.mxu0 0.0
    %1519 = vmatprep.subr.mxu0 0.0
    %1520 = vmatpush1.msra.mxu0 0.0
    %1521 = vmatprep.mubr.f32.mxu0 0.0
    %1522 = vmatmul.mubr.f32.gmra.mrb[0].mxu0 %v1455
    %v1523 = vpop.f32.mrb[0].mxu0
    %v1524 = vadd.f32 %v1450, %v1523
    %v1525 = vpop.f32.mrb[0].mxu0
    %1526 = vdwg.mxu0
    %v1527 = vld [vmem:[%s5] sm:$0x1]
    %v1529 = vlaneseq
    %v1530 = vshrl.u32 %v1529, 7
    %v1531 = vsub.s32 0, %v1530
    %v1532 = vrot.slane %v1527, %v1531
    %v1534 = vadd.f32 %v1524, %v1532
    %v1535 = vmul.f32 %v1534, 0.5
    %v1536 = vadd.f32 %v1453, %v1535
    %v1537 = vtanh.pop %v1536
    %1538 = vst.msk [vmem:[#allocation4 + $0x8] sm:$0x3] %vm229, %v1537
    %v1539 = vld [vmem:[%s9] sm:$0xff]
    %v1540 = vld [vmem:[%s9 + $0x8] sm:$0xff]
    %v1541 = vld [vmem:[%s9 + $0x10] sm:$0xff]
    %v1542 = vld [vmem:[%s9 + $0x18] sm:$0xff]
    %v1543 = vld [vmem:[%s1 + $0x8] sm:$0x3]
    %v1545 = vsel %vm144, %v1537, 0
    %1547 = vmatprep.subr.mxu0 0.0
    %1548 = vmatpush1.msra.mxu0 %v1539
    %1549 = vmatprep.subr.mxu0 0.0
    %1550 = vmatpush1.msra.mxu0 %v1540
    %1551 = vmatprep.subr.mxu0 0.0
    %1552 = vmatpush1.msra.mxu0 %v1541
    %1553 = vmatprep.subr.mxu0 0.0
    %1554 = vmatpush1.msra.mxu0 %v1542
    %1555 = vmatprep.subr.mxu0 0.0
    %1556 = vmatpush1.msra.mxu0 0.0
    %1557 = vmatprep.subr.mxu0 0.0
    %1558 = vmatpush1.msra.mxu0 0.0
    %1559 = vmatprep.subr.mxu0 0.0
    %1560 = vmatpush1.msra.mxu0 0.0
    %1561 = vmatprep.subr.mxu0 0.0
    %1562 = vmatpush1.msra.mxu0 0.0
    %1563 = vmatprep.subr.mxu0 0.0
    %1564 = vmatpush1.msra.mxu0 0.0
    %1565 = vmatprep.subr.mxu0 0.0
    %1566 = vmatpush1.msra.mxu0 0.0
    %1567 = vmatprep.subr.mxu0 0.0
    %1568 = vmatpush1.msra.mxu0 0.0
    %1569 = vmatprep.subr.mxu0 0.0
    %1570 = vmatpush1.msra.mxu0 0.0
    %1571 = vmatprep.subr.mxu0 0.0
    %1572 = vmatpush1.msra.mxu0 0.0
    %1573 = vmatprep.subr.mxu0 0.0
    %1574 = vmatpush1.msra.mxu0 0.0
    %1575 = vmatprep.subr.mxu0 0.0
    %1576 = vmatpush1.msra.mxu0 0.0
    %1577 = vmatprep.subr.mxu0 0.0
    %1578 = vmatpush1.msra.mxu0 0.0
    %1579 = vmatprep.subr.mxu0 0.0
    %1580 = vmatpush1.msra.mxu0 0.0
    %1581 = vmatprep.subr.mxu0 0.0
    %1582 = vmatpush1.msra.mxu0 0.0
    %1583 = vmatprep.subr.mxu0 0.0
    %1584 = vmatpush1.msra.mxu0 0.0
    %1585 = vmatprep.subr.mxu0 0.0
    %1586 = vmatpush1.msra.mxu0 0.0
    %1587 = vmatprep.subr.mxu0 0.0
    %1588 = vmatpush1.msra.mxu0 0.0
    %1589 = vmatprep.subr.mxu0 0.0
    %1590 = vmatpush1.msra.mxu0 0.0
    %1591 = vmatprep.subr.mxu0 0.0
    %1592 = vmatpush1.msra.mxu0 0.0
    %1593 = vmatprep.subr.mxu0 0.0
    %1594 = vmatpush1.msra.mxu0 0.0
    %1595 = vmatprep.subr.mxu0 0.0
    %1596 = vmatpush1.msra.mxu0 0.0
    %1597 = vmatprep.subr.mxu0 0.0
    %1598 = vmatpush1.msra.mxu0 0.0
    %1599 = vmatprep.subr.mxu0 0.0
    %1600 = vmatpush1.msra.mxu0 0.0
    %1601 = vmatprep.subr.mxu0 0.0
    %1602 = vmatpush1.msra.mxu0 0.0
    %1603 = vmatprep.subr.mxu0 0.0
    %1604 = vmatpush1.msra.mxu0 0.0
    %1605 = vmatprep.subr.mxu0 0.0
    %1606 = vmatpush1.msra.mxu0 0.0
    %1607 = vmatprep.subr.mxu0 0.0
    %1608 = vmatpush1.msra.mxu0 0.0
    %1609 = vmatprep.subr.mxu0 0.0
    %1610 = vmatpush1.msra.mxu0 0.0
    %1611 = vmatprep.mubr.f32.mxu0 0.0
    %1612 = vmatmul.mubr.f32.gmra.mrb[0].mxu0 %v1545
    %v1613 = vpop.f32.mrb[0].mxu0
    %v1614 = vadd.f32 %v1543, %v1613
    %v1615 = vpop.f32.mrb[0].mxu0
    %1616 = vdwg.mxu0
    %v1617 = vmul.f32 %v1537, %v1537
    %v1618 = vsub.f32 1.0, %v1617
    %v1619 = vmul.f32 %v1618, %v1614
    %v1620 = vsub.f32 %v1536, %v1619
    %v1621 = vld [vmem:[%s10] sm:$0xff]
    %v1622 = vld [vmem:[%s10 + $0x8] sm:$0xff]
    %v1623 = vld [vmem:[%s10 + $0x10] sm:$0xff]
    %v1624 = vld [vmem:[%s10 + $0x18] sm:$0xff]
    %v1626 = vsel %vm144, %v1619, 0
    %1628 = vmatprep.subr.mxu0 0.0
    %1629 = vmatpush1.msra.mxu0 %v1621
    %1630 = vmatprep.subr.mxu0 0.0
    %1631 = vmatpush1.msra.mxu0 %v1622
    %1632 = vmatprep.subr.mxu0 0.0
    %1633 = vmatpush1.msra.mxu0 %v1623
    %1634 = vmatprep.subr.mxu0 0.0
    %1635 = vmatpush1.msra.mxu0 %v1624
    %1636 = vmatprep.subr.mxu0 0.0
    %1637 = vmatpush1.msra.mxu0 0.0
    %1638 = vmatprep.subr.mxu0 0.0
    %1639 = vmatpush1.msra.mxu0 0.0
    %1640 = vmatprep.subr.mxu0 0.0
    %1641 = vmatpush1.msra.mxu0 0.0
    %1642 = vmatprep.subr.mxu0 0.0
    %1643 = vmatpush1.msra.mxu0 0.0
    %1644 = vmatprep.subr.mxu0 0.0
    %1645 = vmatpush1.msra.mxu0 0.0
    %1646 = vmatprep.subr.mxu0 0.0
    %1647 = vmatpush1.msra.mxu0 0.0
    %1648 = vmatprep.subr.mxu0 0.0
    %1649 = vmatpush1.msra.mxu0 0.0
    %1650 = vmatprep.subr.mxu0 0.0
    %1651 = vmatpush1.msra.mxu0 0.0
    %1652 = vmatprep.subr.mxu0 0.0
    %1653 = vmatpush1.msra.mxu0 0.0
    %1654 = vmatprep.subr.mxu0 0.0
    %1655 = vmatpush1.msra.mxu0 0.0
    %1656 = vmatprep.subr.mxu0 0.0
    %1657 = vmatpush1.msra.mxu0 0.0
    %1658 = vmatprep.subr.mxu0 0.0
    %1659 = vmatpush1.msra.mxu0 0.0
    %1660 = vmatprep.subr.mxu0 0.0
    %1661 = vmatpush1.msra.mxu0 0.0
    %1662 = vmatprep.subr.mxu0 0.0
    %1663 = vmatpush1.msra.mxu0 0.0
    %1664 = vmatprep.subr.mxu0 0.0
    %1665 = vmatpush1.msra.mxu0 0.0
    %1666 = vmatprep.subr.mxu0 0.0
    %1667 = vmatpush1.msra.mxu0 0.0
    %1668 = vmatprep.subr.mxu0 0.0
    %1669 = vmatpush1.msra.mxu0 0.0
    %1670 = vmatprep.subr.mxu0 0.0
    %1671 = vmatpush1.msra.mxu0 0.0
    %1672 = vmatprep.subr.mxu0 0.0
    %1673 = vmatpush1.msra.mxu0 0.0
    %1674 = vmatprep.subr.mxu0 0.0
    %1675 = vmatpush1.msra.mxu0 0.0
    %1676 = vmatprep.subr.mxu0 0.0
    %1677 = vmatpush1.msra.mxu0 0.0
    %1678 = vmatprep.subr.mxu0 0.0
    %1679 = vmatpush1.msra.mxu0 0.0
    %1680 = vmatprep.subr.mxu0 0.0
    %1681 = vmatpush1.msra.mxu0 0.0
    %1682 = vmatprep.subr.mxu0 0.0
    %1683 = vmatpush1.msra.mxu0 0.0
    %1684 = vmatprep.subr.mxu0 0.0
    %1685 = vmatpush1.msra.mxu0 0.0
    %1686 = vmatprep.subr.mxu0 0.0
    %1687 = vmatpush1.msra.mxu0 0.0
    %1688 = vmatprep.subr.mxu0 0.0
    %1689 = vmatpush1.msra.mxu0 0.0
    %1690 = vmatprep.subr.mxu0 0.0
    %1691 = vmatpush1.msra.mxu0 0.0
    %1692 = vmatprep.mubr.f32.mxu0 0.0
    %1693 = vmatmul.mubr.f32.gmra.mrb[0].mxu0 %v1626
    %v1694 = vpop.f32.mrb[0].mxu0
    %v1695 = vadd.f32 0.0, %v1694
    %v1696 = vpop.f32.mrb[0].mxu0
    %1697 = vdwg.mxu0
    %v1698 = vmul.f32 %v1695, 0.1
    %v1699 = vsub.f32 %v1372, %v1698
    %v1700 = vtanh.pop %v1620
    %v1701 = vld [vmem:[%s4] sm:$0xff]
    %v1702 = vld [vmem:[%s4 + $0x8] sm:$0xff]
    %v1703 = vld [vmem:[%s4 + $0x10] sm:$0xff]
    %v1704 = vld [vmem:[%s4 + $0x18] sm:$0xff]
    %v1705 = vld [vmem:[%s6] sm:$0xff]
    %v1706 = vld [vmem:[%s6 + $0x8] sm:$0xff]
    %v1708 = vsel %vm69, %v1699, 0
    %1710 = vmatprep.subr.mxu0 0.0
    %1711 = vmatpush1.msra.mxu0 %v1705
    %1712 = vmatprep.subr.mxu0 0.0
    %1713 = vmatpush1.msra.mxu0 %v1706
    %1714 = vmatprep.subr.mxu0 0.0
    %1715 = vmatpush1.msra.mxu0 0.0
    %1716 = vmatprep.subr.mxu0 0.0
    %1717 = vmatpush1.msra.mxu0 0.0
    %1718 = vmatprep.subr.mxu0 0.0
    %1719 = vmatpush1.msra.mxu0 0.0
    %1720 = vmatprep.subr.mxu0 0.0
    %1721 = vmatpush1.msra.mxu0 0.0
    %1722 = vmatprep.subr.mxu0 0.0
    %1723 = vmatpush1.msra.mxu0 0.0
    %1724 = vmatprep.subr.mxu0 0.0
    %1725 = vmatpush1.msra.mxu0 0.0
    %1726 = vmatprep.subr.mxu0 0.0
    %1727 = vmatpush1.msra.mxu0 0.0
    %1728 = vmatprep.subr.mxu0 0.0
    %1729 = vmatpush1.msra.mxu0 0.0
    %1730 = vmatprep.subr.mxu0 0.0
    %1731 = vmatpush1.msra.mxu0 0.0
    %1732 = vmatprep.subr.mxu0 0.0
    %1733 = vmatpush1.msra.mxu0 0.0
    %1734 = vmatprep.subr.mxu0 0.0
    %1735 = vmatpush1.msra.mxu0 0.0
    %1736 = vmatprep.subr.mxu0 0.0
    %1737 = vmatpush1.msra.mxu0 0.0
    %1738 = vmatprep.subr.mxu0 0.0
    %1739 = vmatpush1.msra.mxu0 0.0
    %1740 = vmatprep.subr.mxu0 0.0
    %1741 = vmatpush1.msra.mxu0 0.0
    %1742 = vmatprep.subr.mxu0 0.0
    %1743 = vmatpush1.msra.mxu0 0.0
    %1744 = vmatprep.subr.mxu0 0.0
    %1745 = vmatpush1.msra.mxu0 0.0
    %1746 = vmatprep.subr.mxu0 0.0
    %1747 = vmatpush1.msra.mxu0 0.0
    %1748 = vmatprep.subr.mxu0 0.0
    %1749 = vmatpush1.msra.mxu0 0.0
    %1750 = vmatprep.subr.mxu0 0.0
    %1751 = vmatpush1.msra.mxu0 0.0
    %1752 = vmatprep.subr.mxu0 0.0
    %1753 = vmatpush1.msra.mxu0 0.0
    %1754 = vmatprep.subr.mxu0 0.0
    %1755 = vmatpush1.msra.mxu0 0.0
    %1756 = vmatprep.subr.mxu0 0.0
    %1757 = vmatpush1.msra.mxu0 0.0
    %1758 = vmatprep.subr.mxu0 0.0
    %1759 = vmatpush1.msra.mxu0 0.0
    %1760 = vmatprep.subr.mxu0 0.0
    %1761 = vmatpush1.msra.mxu0 0.0
    %1762 = vmatprep.subr.mxu0 0.0
    %1763 = vmatpush1.msra.mxu0 0.0
    %1764 = vmatprep.subr.mxu0 0.0
    %1765 = vmatpush1.msra.mxu0 0.0
    %1766 = vmatprep.subr.mxu0 0.0
    %1767 = vmatpush1.msra.mxu0 0.0
    %1768 = vmatprep.subr.mxu0 0.0
    %1769 = vmatpush1.msra.mxu0 0.0
    %1770 = vmatprep.subr.mxu0 0.0
    %1771 = vmatpush1.msra.mxu0 0.0
    %1772 = vmatprep.subr.mxu0 0.0
    %1773 = vmatpush1.msra.mxu0 0.0
    %1774 = vmatprep.mubr.f32.mxu0 0.0
    %1775 = vmatmul.mubr.f32.gmra.mrb[0].mxu0 %v1708
    %v1776 = vpop.f32.mrb[0].mxu0
    %v1777 = vadd.f32 0.0, %v1776
    %v1778 = vpop.f32.mrb[0].mxu0
    %1779 = vdwg.mxu0
    %v1780 = vmul.f32 %v1620, 0.5
    %v1782 = vsel %vm144, %v1700, 0
    %1784 = vmatprep.subr.mxu0 0.0
    %1785 = vmatpush1.msra.mxu0 %v1701
    %1786 = vmatprep.subr.mxu0 0.0
    %1787 = vmatpush1.msra.mxu0 %v1702
    %1788 = vmatprep.subr.mxu0 0.0
    %1789 = vmatpush1.msra.mxu0 %v1703
    %1790 = vmatprep.subr.mxu0 0.0
    %1791 = vmatpush1.msra.mxu0 %v1704
    %1792 = vmatprep.subr.mxu0 0.0
    %1793 = vmatpush1.msra.mxu0 0.0
    %1794 = vmatprep.subr.mxu0 0.0
    %1795 = vmatpush1.msra.mxu0 0.0
    %1796 = vmatprep.subr.mxu0 0.0
    %1797 = vmatpush1.msra.mxu0 0.0
    %1798 = vmatprep.subr.mxu0 0.0
    %1799 = vmatpush1.msra.mxu0 0.0
    %1800 = vmatprep.subr.mxu0 0.0
    %1801 = vmatpush1.msra.mxu0 0.0
    %1802 = vmatprep.subr.mxu0 0.0
    %1803 = vmatpush1.msra.mxu0 0.0
    %1804 = vmatprep.subr.mxu0 0.0
    %1805 = vmatpush1.msra.mxu0 0.0
    %1806 = vmatprep.subr.mxu0 0.0
    %1807 = vmatpush1.msra.mxu0 0.0
    %1808 = vmatprep.subr.mxu0 0.0
    %1809 = vmatpush1.msra.mxu0 0.0
    %1810 = vmatprep.subr.mxu0 0.0
    %1811 = vmatpush1.msra.mxu0 0.0
    %1812 = vmatprep.subr.mxu0 0.0
    %1813 = vmatpush1.msra.mxu0 0.0
    %1814 = vmatprep.subr.mxu0 0.0
    %1815 = vmatpush1.msra.mxu0 0.0
    %1816 = vmatprep.subr.mxu0 0.0
    %1817 = vmatpush1.msra.mxu0 0.0
    %1818 = vmatprep.subr.mxu0 0.0
    %1819 = vmatpush1.msra.mxu0 0.0
    %1820 = vmatprep.subr.mxu0 0.0
    %1821 = vmatpush1.msra.mxu0 0.0
    %1822 = vmatprep.subr.mxu0 0.0
    %1823 = vmatpush1.msra.mxu0 0.0
    %1824 = vmatprep.subr.mxu0 0.0
    %1825 = vmatpush1.msra.mxu0 0.0
    %1826 = vmatprep.subr.mxu0 0.0
    %1827 = vmatpush1.msra.mxu0 0.0
    %1828 = vmatprep.subr.mxu0 0.0
    %1829 = vmatpush1.msra.mxu0 0.0
    %1830 = vmatprep.subr.mxu0 0.0
    %1831 = vmatpush1.msra.mxu0 0.0
    %1832 = vmatprep.subr.mxu0 0.0
    %1833 = vmatpush1.msra.mxu0 0.0
    %1834 = vmatprep.subr.mxu0 0.0
    %1835 = vmatpush1.msra.mxu0 0.0
    %1836 = vmatprep.subr.mxu0 0.0
    %1837 = vmatpush1.msra.mxu0 0.0
    %1838 = vmatprep.subr.mxu0 0.0
    %1839 = vmatpush1.msra.mxu0 0.0
    %1840 = vmatprep.subr.mxu0 0.0
    %1841 = vmatpush1.msra.mxu0 0.0
    %1842 = vmatprep.subr.mxu0 0.0
    %1843 = vmatpush1.msra.mxu0 0.0
    %1844 = vmatprep.subr.mxu0 0.0
    %1845 = vmatpush1.msra.mxu0 0.0
    %1846 = vmatprep.subr.mxu0 0.0
    %1847 = vmatpush1.msra.mxu0 0.0
    %1848 = vmatprep.mubr.f32.mxu0 0.0
    %1849 = vmatmul.mubr.f32.gmra.mrb[0].mxu0 %v1782
    %v1850 = vpop.f32.mrb[0].mxu0
    %v1851 = vadd.f32 %v1777, %v1850
    %v1852 = vpop.f32.mrb[0].mxu0
    %1853 = vdwg.mxu0
    %v1854 = vld [vmem:[%s5] sm:$0x1]
    %v1856 = vlaneseq
    %v1857 = vshrl.u32 %v1856, 7
    %v1858 = vsub.s32 0, %v1857
    %v1859 = vrot.slane %v1854, %v1858
    %v1861 = vadd.f32 %v1851, %v1859
    %v1862 = vmul.f32 %v1861, 0.5
    %v1863 = vadd.f32 %v1780, %v1862
    %v1864 = vtanh.pop %v1863
    %1865 = vst.msk [vmem:[#allocation4 + $0xa] sm:$0x3] %vm229, %v1864
    %v1866 = vld [vmem:[%s9] sm:$0xff]
    %v1867 = vld [vmem:[%s9 + $0x8] sm:$0xff]
    %v1868 = vld [vmem:[%s9 + $0x10] sm:$0xff]
    %v1869 = vld [vmem:[%s9 + $0x18] sm:$0xff]
    %v1870 = vld [vmem:[%s1 + $0xa] sm:$0x3]
    %v1872 = vsel %vm144, %v1864, 0
    %1874 = vmatprep.subr.mxu0 0.0
    %1875 = vmatpush1.msra.mxu0 %v1866
    %1876 = vmatprep.subr.mxu0 0.0
    %1877 = vmatpush1.msra.mxu0 %v1867
    %1878 = vmatprep.subr.mxu0 0.0
    %1879 = vmatpush1.msra.mxu0 %v1868
    %1880 = vmatprep.subr.mxu0 0.0
    %1881 = vmatpush1.msra.mxu0 %v1869
    %1882 = vmatprep.subr.mxu0 0.0
    %1883 = vmatpush1.msra.mxu0 0.0
    %1884 = vmatprep.subr.mxu0 0.0
    %1885 = vmatpush1.msra.mxu0 0.0
    %1886 = vmatprep.subr.mxu0 0.0
    %1887 = vmatpush1.msra.mxu0 0.0
    %1888 = vmatprep.subr.mxu0 0.0
    %1889 = vmatpush1.msra.mxu0 0.0
    %1890 = vmatprep.subr.mxu0 0.0
    %1891 = vmatpush1.msra.mxu0 0.0
    %1892 = vmatprep.subr.mxu0 0.0
    %1893 = vmatpush1.msra.mxu0 0.0
    %1894 = vmatprep.subr.mxu0 0.0
    %1895 = vmatpush1.msra.mxu0 0.0
    %1896 = vmatprep.subr.mxu0 0.0
    %1897 = vmatpush1.msra.mxu0 0.0
    %1898 = vmatprep.subr.mxu0 0.0
    %1899 = vmatpush1.msra.mxu0 0.0
    %1900 = vmatprep.subr.mxu0 0.0
    %1901 = vmatpush1.msra.mxu0 0.0
    %1902 = vmatprep.subr.mxu0 0.0
    %1903 = vmatpush1.msra.mxu0 0.0
    %1904 = vmatprep.subr.mxu0 0.0
    %1905 = vmatpush1.msra.mxu0 0.0
    %1906 = vmatprep.subr.mxu0 0.0
    %1907 = vmatpush1.msra.mxu0 0.0
    %1908 = vmatprep.subr.mxu0 0.0
    %1909 = vmatpush1.msra.mxu0 0.0
    %1910 = vmatprep.subr.mxu0 0.0
    %1911 = vmatpush1.msra.mxu0 0.0
    %1912 = vmatprep.subr.mxu0 0.0
    %1913 = vmatpush1.msra.mxu0 0.0
    %1914 = vmatprep.subr.mxu0 0.0
    %1915 = vmatpush1.msra.mxu0 0.0
    %1916 = vmatprep.subr.mxu0 0.0
    %1917 = vmatpush1.msra.mxu0 0.0
    %1918 = vmatprep.subr.mxu0 0.0
    %1919 = vmatpush1.msra.mxu0 0.0
    %1920 = vmatprep.subr.mxu0 0.0
    %1921 = vmatpush1.msra.mxu0 0.0
    %1922 = vmatprep.subr.mxu0 0.0
    %1923 = vmatpush1.msra.mxu0 0.0
    %1924 = vmatprep.subr.mxu0 0.0
    %1925 = vmatpush1.msra.mxu0 0.0
    %1926 = vmatprep.subr.mxu0 0.0
    %1927 = vmatpush1.msra.mxu0 0.0
    %1928 = vmatprep.subr.mxu0 0.0
    %1929 = vmatpush1.msra.mxu0 0.0
    %1930 = vmatprep.subr.mxu0 0.0
    %1931 = vmatpush1.msra.mxu0 0.0
    %1932 = vmatprep.subr.mxu0 0.0
    %1933 = vmatpush1.msra.mxu0 0.0
    %1934 = vmatprep.subr.mxu0 0.0
    %1935 = vmatpush1.msra.mxu0 0.0
    %1936 = vmatprep.subr.mxu0 0.0
    %1937 = vmatpush1.msra.mxu0 0.0
    %1938 = vmatprep.mubr.f32.mxu0 0.0
    %1939 = vmatmul.mubr.f32.gmra.mrb[0].mxu0 %v1872
    %v1940 = vpop.f32.mrb[0].mxu0
    %v1941 = vadd.f32 %v1870, %v1940
    %v1942 = vpop.f32.mrb[0].mxu0
    %1943 = vdwg.mxu0
    %v1944 = vmul.f32 %v1864, %v1864
    %v1945 = vsub.f32 1.0, %v1944
    %v1946 = vmul.f32 %v1945, %v1941
    %v1947 = vsub.f32 %v1863, %v1946
    %v1948 = vld [vmem:[%s10] sm:$0xff]
    %v1949 = vld [vmem:[%s10 + $0x8] sm:$0xff]
    %v1950 = vld [vmem:[%s10 + $0x10] sm:$0xff]
    %v1951 = vld [vmem:[%s10 + $0x18] sm:$0xff]
    %v1953 = vsel %vm144, %v1946, 0
    %1955 = vmatprep.subr.mxu0 0.0
    %1956 = vmatpush1.msra.mxu0 %v1948
    %1957 = vmatprep.subr.mxu0 0.0
    %1958 = vmatpush1.msra.mxu0 %v1949
    %1959 = vmatprep.subr.mxu0 0.0
    %1960 = vmatpush1.msra.mxu0 %v1950
    %1961 = vmatprep.subr.mxu0 0.0
    %1962 = vmatpush1.msra.mxu0 %v1951
    %1963 = vmatprep.subr.mxu0 0.0
    %1964 = vmatpush1.msra.mxu0 0.0
    %1965 = vmatprep.subr.mxu0 0.0
    %1966 = vmatpush1.msra.mxu0 0.0
    %1967 = vmatprep.subr.mxu0 0.0
    %1968 = vmatpush1.msra.mxu0 0.0
    %1969 = vmatprep.subr.mxu0 0.0
    %1970 = vmatpush1.msra.mxu0 0.0
    %1971 = vmatprep.subr.mxu0 0.0
    %1972 = vmatpush1.msra.mxu0 0.0
    %1973 = vmatprep.subr.mxu0 0.0
    %1974 = vmatpush1.msra.mxu0 0.0
    %1975 = vmatprep.subr.mxu0 0.0
    %1976 = vmatpush1.msra.mxu0 0.0
    %1977 = vmatprep.subr.mxu0 0.0
    %1978 = vmatpush1.msra.mxu0 0.0
    %1979 = vmatprep.subr.mxu0 0.0
    %1980 = vmatpush1.msra.mxu0 0.0
    %1981 = vmatprep.subr.mxu0 0.0
    %1982 = vmatpush1.msra.mxu0 0.0
    %1983 = vmatprep.subr.mxu0 0.0
    %1984 = vmatpush1.msra.mxu0 0.0
    %1985 = vmatprep.subr.mxu0 0.0
    %1986 = vmatpush1.msra.mxu0 0.0
    %1987 = vmatprep.subr.mxu0 0.0
    %1988 = vmatpush1.msra.mxu0 0.0
    %1989 = vmatprep.subr.mxu0 0.0
    %1990 = vmatpush1.msra.mxu0 0.0
    %1991 = vmatprep.subr.mxu0 0.0
    %1992 = vmatpush1.msra.mxu0 0.0
    %1993 = vmatprep.subr.mxu0 0.0
    %1994 = vmatpush1.msra.mxu0 0.0
    %1995 = vmatprep.subr.mxu0 0.0
    %1996 = vmatpush1.msra.mxu0 0.0
    %1997 = vmatprep.subr.mxu0 0.0
    %1998 = vmatpush1.msra.mxu0 0.0
    %1999 = vmatprep.subr.mxu0 0.0
    %2000 = vmatpush1.msra.mxu0 0.0
    %2001 = vmatprep.subr.mxu0 0.0
    %2002 = vmatpush1.msra.mxu0 0.0
    %2003 = vmatprep.subr.mxu0 0.0
    %2004 = vmatpush1.msra.mxu0 0.0
    %2005 = vmatprep.subr.mxu0 0.0
    %2006 = vmatpush1.msra.mxu0 0.0
    %2007 = vmatprep.subr.mxu0 0.0
    %2008 = vmatpush1.msra.mxu0 0.0
    %2009 = vmatprep.subr.mxu0 0.0
    %2010 = vmatpush1.msra.mxu0 0.0
    %2011 = vmatprep.subr.mxu0 0.0
    %2012 = vmatpush1.msra.mxu0 0.0
    %2013 = vmatprep.subr.mxu0 0.0
    %2014 = vmatpush1.msra.mxu0 0.0
    %2015 = vmatprep.subr.mxu0 0.0
    %2016 = vmatpush1.msra.mxu0 0.0
    %2017 = vmatprep.subr.mxu0 0.0
    %2018 = vmatpush1.msra.mxu0 0.0
    %2019 = vmatprep.mubr.f32.mxu0 0.0
    %2020 = vmatmul.mubr.f32.gmra.mrb[0].mxu0 %v1953
    %v2021 = vpop.f32.mrb[0].mxu0
    %v2022 = vadd.f32 0.0, %v2021
    %v2023 = vpop.f32.mrb[0].mxu0
    %2024 = vdwg.mxu0
    %v2025 = vmul.f32 %v2022, 0.1
    %v2026 = vsub.f32 %v1699, %v2025
    %v2027 = vtanh.pop %v1947
    %v2028 = vld [vmem:[%s4] sm:$0xff]
    %v2029 = vld [vmem:[%s4 + $0x8] sm:$0xff]
    %v2030 = vld [vmem:[%s4 + $0x10] sm:$0xff]
    %v2031 = vld [vmem:[%s4 + $0x18] sm:$0xff]
    %v2032 = vld [vmem:[%s6] sm:$0xff]
    %v2033 = vld [vmem:[%s6 + $0x8] sm:$0xff]
    %v2035 = vsel %vm69, %v2026, 0
    %2037 = vmatprep.subr.mxu0 0.0
    %2038 = vmatpush1.msra.mxu0 %v2032
    %2039 = vmatprep.subr.mxu0 0.0
    %2040 = vmatpush1.msra.mxu0 %v2033
    %2041 = vmatprep.subr.mxu0 0.0
    %2042 = vmatpush1.msra.mxu0 0.0
    %2043 = vmatprep.subr.mxu0 0.0
    %2044 = vmatpush1.msra.mxu0 0.0
    %2045 = vmatprep.subr.mxu0 0.0
    %2046 = vmatpush1.msra.mxu0 0.0
    %2047 = vmatprep.subr.mxu0 0.0
    %2048 = vmatpush1.msra.mxu0 0.0
    %2049 = vmatprep.subr.mxu0 0.0
    %2050 = vmatpush1.msra.mxu0 0.0
    %2051 = vmatprep.subr.mxu0 0.0
    %2052 = vmatpush1.msra.mxu0 0.0
    %2053 = vmatprep.subr.mxu0 0.0
    %2054 = vmatpush1.msra.mxu0 0.0
    %2055 = vmatprep.subr.mxu0 0.0
    %2056 = vmatpush1.msra.mxu0 0.0
    %2057 = vmatprep.subr.mxu0 0.0
    %2058 = vmatpush1.msra.mxu0 0.0
    %2059 = vmatprep.subr.mxu0 0.0
    %2060 = vmatpush1.msra.mxu0 0.0
    %2061 = vmatprep.subr.mxu0 0.0
    %2062 = vmatpush1.msra.mxu0 0.0
    %2063 = vmatprep.subr.mxu0 0.0
    %2064 = vmatpush1.msra.mxu0 0.0
    %2065 = vmatprep.subr.mxu0 0.0
    %2066 = vmatpush1.msra.mxu0 0.0
    %2067 = vmatprep.subr.mxu0 0.0
    %2068 = vmatpush1.msra.mxu0 0.0
    %2069 = vmatprep.subr.mxu0 0.0
    %2070 = vmatpush1.msra.mxu0 0.0
    %2071 = vmatprep.subr.mxu0 0.0
    %2072 = vmatpush1.msra.mxu0 0.0
    %2073 = vmatprep.subr.mxu0 0.0
    %2074 = vmatpush1.msra.mxu0 0.0
    %2075 = vmatprep.subr.mxu0 0.0
    %2076 = vmatpush1.msra.mxu0 0.0
    %2077 = vmatprep.subr.mxu0 0.0
    %2078 = vmatpush1.msra.mxu0 0.0
    %2079 = vmatprep.subr.mxu0 0.0
    %2080 = vmatpush1.msra.mxu0 0.0
    %2081 = vmatprep.subr.mxu0 0.0
    %2082 = vmatpush1.msra.mxu0 0.0
    %2083 = vmatprep.subr.mxu0 0.0
    %2084 = vmatpush1.msra.mxu0 0.0
    %2085 = vmatprep.subr.mxu0 0.0
    %2086 = vmatpush1.msra.mxu0 0.0
    %2087 = vmatprep.subr.mxu0 0.0
    %2088 = vmatpush1.msra.mxu0 0.0
    %2089 = vmatprep.subr.mxu0 0.0
    %2090 = vmatpush1.msra.mxu0 0.0
    %2091 = vmatprep.subr.mxu0 0.0
    %2092 = vmatpush1.msra.mxu0 0.0
    %2093 = vmatprep.subr.mxu0 0.0
    %2094 = vmatpush1.msra.mxu0 0.0
    %2095 = vmatprep.subr.mxu0 0.0
    %2096 = vmatpush1.msra.mxu0 0.0
    %2097 = vmatprep.subr.mxu0 0.0
    %2098 = vmatpush1.msra.mxu0 0.0
    %2099 = vmatprep.subr.mxu0 0.0
    %2100 = vmatpush1.msra.mxu0 0.0
    %2101 = vmatprep.mubr.f32.mxu0 0.0
    %2102 = vmatmul.mubr.f32.gmra.mrb[0].mxu0 %v2035
    %v2103 = vpop.f32.mrb[0].mxu0
    %v2104 = vadd.f32 0.0, %v2103
    %v2105 = vpop.f32.mrb[0].mxu0
    %2106 = vdwg.mxu0
    %v2107 = vmul.f32 %v1947, 0.5
    %v2109 = vsel %vm144, %v2027, 0
    %2111 = vmatprep.subr.mxu0 0.0
    %2112 = vmatpush1.msra.mxu0 %v2028
    %2113 = vmatprep.subr.mxu0 0.0
    %2114 = vmatpush1.msra.mxu0 %v2029
    %2115 = vmatprep.subr.mxu0 0.0
    %2116 = vmatpush1.msra.mxu0 %v2030
    %2117 = vmatprep.subr.mxu0 0.0
    %2118 = vmatpush1.msra.mxu0 %v2031
    %2119 = vmatprep.subr.mxu0 0.0
    %2120 = vmatpush1.msra.mxu0 0.0
    %2121 = vmatprep.subr.mxu0 0.0
    %2122 = vmatpush1.msra.mxu0 0.0
    %2123 = vmatprep.subr.mxu0 0.0
    %2124 = vmatpush1.msra.mxu0 0.0
    %2125 = vmatprep.subr.mxu0 0.0
    %2126 = vmatpush1.msra.mxu0 0.0
    %2127 = vmatprep.subr.mxu0 0.0
    %2128 = vmatpush1.msra.mxu0 0.0
    %2129 = vmatprep.subr.mxu0 0.0
    %2130 = vmatpush1.msra.mxu0 0.0
    %2131 = vmatprep.subr.mxu0 0.0
    %2132 = vmatpush1.msra.mxu0 0.0
    %2133 = vmatprep.subr.mxu0 0.0
    %2134 = vmatpush1.msra.mxu0 0.0
    %2135 = vmatprep.subr.mxu0 0.0
    %2136 = vmatpush1.msra.mxu0 0.0
    %2137 = vmatprep.subr.mxu0 0.0
    %2138 = vmatpush1.msra.mxu0 0.0
    %2139 = vmatprep.subr.mxu0 0.0
    %2140 = vmatpush1.msra.mxu0 0.0
    %2141 = vmatprep.subr.mxu0 0.0
    %2142 = vmatpush1.msra.mxu0 0.0
    %2143 = vmatprep.subr.mxu0 0.0
    %2144 = vmatpush1.msra.mxu0 0.0
    %2145 = vmatprep.subr.mxu0 0.0
    %2146 = vmatpush1.msra.mxu0 0.0
    %2147 = vmatprep.subr.mxu0 0.0
    %2148 = vmatpush1.msra.mxu0 0.0
    %2149 = vmatprep.subr.mxu0 0.0
    %2150 = vmatpush1.msra.mxu0 0.0
    %2151 = vmatprep.subr.mxu0 0.0
    %2152 = vmatpush1.msra.mxu0 0.0
    %2153 = vmatprep.subr.mxu0 0.0
    %2154 = vmatpush1.msra.mxu0 0.0
    %2155 = vmatprep.subr.mxu0 0.0
    %2156 = vmatpush1.msra.mxu0 0.0
    %2157 = vmatprep.subr.mxu0 0.0
    %2158 = vmatpush1.msra.mxu0 0.0
    %2159 = vmatprep.subr.mxu0 0.0
    %2160 = vmatpush1.msra.mxu0 0.0
    %2161 = vmatprep.subr.mxu0 0.0
    %2162 = vmatpush1.msra.mxu0 0.0
    %2163 = vmatprep.subr.mxu0 0.0
    %2164 = vmatpush1.msra.mxu0 0.0
    %2165 = vmatprep.subr.mxu0 0.0
    %2166 = vmatpush1.msra.mxu0 0.0
    %2167 = vmatprep.subr.mxu0 0.0
    %2168 = vmatpush1.msra.mxu0 0.0
    %2169 = vmatprep.subr.mxu0 0.0
    %2170 = vmatpush1.msra.mxu0 0.0
    %2171 = vmatprep.subr.mxu0 0.0
    %2172 = vmatpush1.msra.mxu0 0.0
    %2173 = vmatprep.subr.mxu0 0.0
    %2174 = vmatpush1.msra.mxu0 0.0
    %2175 = vmatprep.mubr.f32.mxu0 0.0
    %2176 = vmatmul.mubr.f32.gmra.mrb[0].mxu0 %v2109
    %v2177 = vpop.f32.mrb[0].mxu0
    %v2178 = vadd.f32 %v2104, %v2177
    %v2179 = vpop.f32.mrb[0].mxu0
    %2180 = vdwg.mxu0
    %v2181 = vld [vmem:[%s5] sm:$0x1]
    %v2183 = vlaneseq
    %v2184 = vshrl.u32 %v2183, 7
    %v2185 = vsub.s32 0, %v2184
    %v2186 = vrot.slane %v2181, %v2185
    %v2188 = vadd.f32 %v2178, %v2186
    %v2189 = vmul.f32 %v2188, 0.5
    %v2190 = vadd.f32 %v2107, %v2189
    %v2191 = vtanh.pop %v2190
    %2192 = vst.msk [vmem:[#allocation4 + $0xc] sm:$0x3] %vm229, %v2191
    %v2193 = vld [vmem:[%s9] sm:$0xff]
    %v2194 = vld [vmem:[%s9 + $0x8] sm:$0xff]
    %v2195 = vld [vmem:[%s9 + $0x10] sm:$0xff]
    %v2196 = vld [vmem:[%s9 + $0x18] sm:$0xff]
    %v2197 = vld [vmem:[%s1 + $0xc] sm:$0x3]
    %v2199 = vsel %vm144, %v2191, 0
    %2201 = vmatprep.subr.mxu0 0.0
    %2202 = vmatpush1.msra.mxu0 %v2193
    %2203 = vmatprep.subr.mxu0 0.0
    %2204 = vmatpush1.msra.mxu0 %v2194
    %2205 = vmatprep.subr.mxu0 0.0
    %2206 = vmatpush1.msra.mxu0 %v2195
    %2207 = vmatprep.subr.mxu0 0.0
    %2208 = vmatpush1.msra.mxu0 %v2196
    %2209 = vmatprep.subr.mxu0 0.0
    %2210 = vmatpush1.msra.mxu0 0.0
    %2211 = vmatprep.subr.mxu0 0.0
    %2212 = vmatpush1.msra.mxu0 0.0
    %2213 = vmatprep.subr.mxu0 0.0
    %2214 = vmatpush1.msra.mxu0 0.0
    %2215 = vmatprep.subr.mxu0 0.0
    %2216 = vmatpush1.msra.mxu0 0.0
    %2217 = vmatprep.subr.mxu0 0.0
    %2218 = vmatpush1.msra.mxu0 0.0
    %2219 = vmatprep.subr.mxu0 0.0
    %2220 = vmatpush1.msra.mxu0 0.0
    %2221 = vmatprep.subr.mxu0 0.0
    %2222 = vmatpush1.msra.mxu0 0.0
    %2223 = vmatprep.subr.mxu0 0.0
    %2224 = vmatpush1.msra.mxu0 0.0
    %2225 = vmatprep.subr.mxu0 0.0
    %2226 = vmatpush1.msra.mxu0 0.0
    %2227 = vmatprep.subr.mxu0 0.0
    %2228 = vmatpush1.msra.mxu0 0.0
    %2229 = vmatprep.subr.mxu0 0.0
    %2230 = vmatpush1.msra.mxu0 0.0
    %2231 = vmatprep.subr.mxu0 0.0
    %2232 = vmatpush1.msra.mxu0 0.0
    %2233 = vmatprep.subr.mxu0 0.0
    %2234 = vmatpush1.msra.mxu0 0.0
    %2235 = vmatprep.subr.mxu0 0.0
    %2236 = vmatpush1.msra.mxu0 0.0
    %2237 = vmatprep.subr.mxu0 0.0
    %2238 = vmatpush1.msra.mxu0 0.0
    %2239 = vmatprep.subr.mxu0 0.0
    %2240 = vmatpush1.msra.mxu0 0.0
    %2241 = vmatprep.subr.mxu0 0.0
    %2242 = vmatpush1.msra.mxu0 0.0
    %2243 = vmatprep.subr.mxu0 0.0
    %2244 = vmatpush1.msra.mxu0 0.0
    %2245 = vmatprep.subr.mxu0 0.0
    %2246 = vmatpush1.msra.mxu0 0.0
    %2247 = vmatprep.subr.mxu0 0.0
    %2248 = vmatpush1.msra.mxu0 0.0
    %2249 = vmatprep.subr.mxu0 0.0
    %2250 = vmatpush1.msra.mxu0 0.0
    %2251 = vmatprep.subr.mxu0 0.0
    %2252 = vmatpush1.msra.mxu0 0.0
    %2253 = vmatprep.subr.mxu0 0.0
    %2254 = vmatpush1.msra.mxu0 0.0
    %2255 = vmatprep.subr.mxu0 0.0
    %2256 = vmatpush1.msra.mxu0 0.0
    %2257 = vmatprep.subr.mxu0 0.0
    %2258 = vmatpush1.msra.mxu0 0.0
    %2259 = vmatprep.subr.mxu0 0.0
    %2260 = vmatpush1.msra.mxu0 0.0
    %2261 = vmatprep.subr.mxu0 0.0
    %2262 = vmatpush1.msra.mxu0 0.0
    %2263 = vmatprep.subr.mxu0 0.0
    %2264 = vmatpush1.msra.mxu0 0.0
    %2265 = vmatprep.mubr.f32.mxu0 0.0
    %2266 = vmatmul.mubr.f32.gmra.mrb[0].mxu0 %v2199
    %v2267 = vpop.f32.mrb[0].mxu0
    %v2268 = vadd.f32 %v2197, %v2267
    %v2269 = vpop.f32.mrb[0].mxu0
    %2270 = vdwg.mxu0
    %v2271 = vmul.f32 %v2191, %v2191
    %v2272 = vsub.f32 1.0, %v2271
    %v2273 = vmul.f32 %v2272, %v2268
    %v2274 = vsub.f32 %v2190, %v2273
    %v2275 = vld [vmem:[%s10] sm:$0xff]
    %v2276 = vld [vmem:[%s10 + $0x8] sm:$0xff]
    %v2277 = vld [vmem:[%s10 + $0x10] sm:$0xff]
    %v2278 = vld [vmem:[%s10 + $0x18] sm:$0xff]
    %v2280 = vsel %vm144, %v2273, 0
    %2282 = vmatprep.subr.mxu0 0.0
    %2283 = vmatpush1.msra.mxu0 %v2275
    %2284 = vmatprep.subr.mxu0 0.0
    %2285 = vmatpush1.msra.mxu0 %v2276
    %2286 = vmatprep.subr.mxu0 0.0
    %2287 = vmatpush1.msra.mxu0 %v2277
    %2288 = vmatprep.subr.mxu0 0.0
    %2289 = vmatpush1.msra.mxu0 %v2278
    %2290 = vmatprep.subr.mxu0 0.0
    %2291 = vmatpush1.msra.mxu0 0.0
    %2292 = vmatprep.subr.mxu0 0.0
    %2293 = vmatpush1.msra.mxu0 0.0
    %2294 = vmatprep.subr.mxu0 0.0
    %2295 = vmatpush1.msra.mxu0 0.0
    %2296 = vmatprep.subr.mxu0 0.0
    %2297 = vmatpush1.msra.mxu0 0.0
    %2298 = vmatprep.subr.mxu0 0.0
    %2299 = vmatpush1.msra.mxu0 0.0
    %2300 = vmatprep.subr.mxu0 0.0
    %2301 = vmatpush1.msra.mxu0 0.0
    %2302 = vmatprep.subr.mxu0 0.0
    %2303 = vmatpush1.msra.mxu0 0.0
    %2304 = vmatprep.subr.mxu0 0.0
    %2305 = vmatpush1.msra.mxu0 0.0
    %2306 = vmatprep.subr.mxu0 0.0
    %2307 = vmatpush1.msra.mxu0 0.0
    %2308 = vmatprep.subr.mxu0 0.0
    %2309 = vmatpush1.msra.mxu0 0.0
    %2310 = vmatprep.subr.mxu0 0.0
    %2311 = vmatpush1.msra.mxu0 0.0
    %2312 = vmatprep.subr.mxu0 0.0
    %2313 = vmatpush1.msra.mxu0 0.0
    %2314 = vmatprep.subr.mxu0 0.0
    %2315 = vmatpush1.msra.mxu0 0.0
    %2316 = vmatprep.subr.mxu0 0.0
    %2317 = vmatpush1.msra.mxu0 0.0
    %2318 = vmatprep.subr.mxu0 0.0
    %2319 = vmatpush1.msra.mxu0 0.0
    %2320 = vmatprep.subr.mxu0 0.0
    %2321 = vmatpush1.msra.mxu0 0.0
    %2322 = vmatprep.subr.mxu0 0.0
    %2323 = vmatpush1.msra.mxu0 0.0
    %2324 = vmatprep.subr.mxu0 0.0
    %2325 = vmatpush1.msra.mxu0 0.0
    %2326 = vmatprep.subr.mxu0 0.0
    %2327 = vmatpush1.msra.mxu0 0.0
    %2328 = vmatprep.subr.mxu0 0.0
    %2329 = vmatpush1.msra.mxu0 0.0
    %2330 = vmatprep.subr.mxu0 0.0
    %2331 = vmatpush1.msra.mxu0 0.0
    %2332 = vmatprep.subr.mxu0 0.0
    %2333 = vmatpush1.msra.mxu0 0.0
    %2334 = vmatprep.subr.mxu0 0.0
    %2335 = vmatpush1.msra.mxu0 0.0
    %2336 = vmatprep.subr.mxu0 0.0
    %2337 = vmatpush1.msra.mxu0 0.0
    %2338 = vmatprep.subr.mxu0 0.0
    %2339 = vmatpush1.msra.mxu0 0.0
    %2340 = vmatprep.subr.mxu0 0.0
    %2341 = vmatpush1.msra.mxu0 0.0
    %2342 = vmatprep.subr.mxu0 0.0
    %2343 = vmatpush1.msra.mxu0 0.0
    %2344 = vmatprep.subr.mxu0 0.0
    %2345 = vmatpush1.msra.mxu0 0.0
    %2346 = vmatprep.mubr.f32.mxu0 0.0
    %2347 = vmatmul.mubr.f32.gmra.mrb[0].mxu0 %v2280
    %v2348 = vpop.f32.mrb[0].mxu0
    %v2349 = vadd.f32 0.0, %v2348
    %v2350 = vpop.f32.mrb[0].mxu0
    %2351 = vdwg.mxu0
    %v2352 = vmul.f32 %v2349, 0.1
    %v2353 = vsub.f32 %v2026, %v2352
    %v2354 = vtanh.pop %v2274
    %v2355 = vld [vmem:[%s4] sm:$0xff]
    %v2356 = vld [vmem:[%s4 + $0x8] sm:$0xff]
    %v2357 = vld [vmem:[%s4 + $0x10] sm:$0xff]
    %v2358 = vld [vmem:[%s4 + $0x18] sm:$0xff]
    %v2359 = vld [vmem:[%s6] sm:$0xff]
    %v2360 = vld [vmem:[%s6 + $0x8] sm:$0xff]
    %v2362 = vsel %vm69, %v2353, 0
    %2364 = vmatprep.subr.mxu0 0.0
    %2365 = vmatpush1.msra.mxu0 %v2359
    %2366 = vmatprep.subr.mxu0 0.0
    %2367 = vmatpush1.msra.mxu0 %v2360
    %2368 = vmatprep.subr.mxu0 0.0
    %2369 = vmatpush1.msra.mxu0 0.0
    %2370 = vmatprep.subr.mxu0 0.0
    %2371 = vmatpush1.msra.mxu0 0.0
    %2372 = vmatprep.subr.mxu0 0.0
    %2373 = vmatpush1.msra.mxu0 0.0
    %2374 = vmatprep.subr.mxu0 0.0
    %2375 = vmatpush1.msra.mxu0 0.0
    %2376 = vmatprep.subr.mxu0 0.0
    %2377 = vmatpush1.msra.mxu0 0.0
    %2378 = vmatprep.subr.mxu0 0.0
    %2379 = vmatpush1.msra.mxu0 0.0
    %2380 = vmatprep.subr.mxu0 0.0
    %2381 = vmatpush1.msra.mxu0 0.0
    %2382 = vmatprep.subr.mxu0 0.0
    %2383 = vmatpush1.msra.mxu0 0.0
    %2384 = vmatprep.subr.mxu0 0.0
    %2385 = vmatpush1.msra.mxu0 0.0
    %2386 = vmatprep.subr.mxu0 0.0
    %2387 = vmatpush1.msra.mxu0 0.0
    %2388 = vmatprep.subr.mxu0 0.0
    %2389 = vmatpush1.msra.mxu0 0.0
    %2390 = vmatprep.subr.mxu0 0.0
    %2391 = vmatpush1.msra.mxu0 0.0
    %2392 = vmatprep.subr.mxu0 0.0
    %2393 = vmatpush1.msra.mxu0 0.0
    %2394 = vmatprep.subr.mxu0 0.0
    %2395 = vmatpush1.msra.mxu0 0.0
    %2396 = vmatprep.subr.mxu0 0.0
    %2397 = vmatpush1.msra.mxu0 0.0
    %2398 = vmatprep.subr.mxu0 0.0
    %2399 = vmatpush1.msra.mxu0 0.0
    %2400 = vmatprep.subr.mxu0 0.0
    %2401 = vmatpush1.msra.mxu0 0.0
    %2402 = vmatprep.subr.mxu0 0.0
    %2403 = vmatpush1.msra.mxu0 0.0
    %2404 = vmatprep.subr.mxu0 0.0
    %2405 = vmatpush1.msra.mxu0 0.0
    %2406 = vmatprep.subr.mxu0 0.0
    %2407 = vmatpush1.msra.mxu0 0.0
    %2408 = vmatprep.subr.mxu0 0.0
    %2409 = vmatpush1.msra.mxu0 0.0
    %2410 = vmatprep.subr.mxu0 0.0
    %2411 = vmatpush1.msra.mxu0 0.0
    %2412 = vmatprep.subr.mxu0 0.0
    %2413 = vmatpush1.msra.mxu0 0.0
    %2414 = vmatprep.subr.mxu0 0.0
    %2415 = vmatpush1.msra.mxu0 0.0
    %2416 = vmatprep.subr.mxu0 0.0
    %2417 = vmatpush1.msra.mxu0 0.0
    %2418 = vmatprep.subr.mxu0 0.0
    %2419 = vmatpush1.msra.mxu0 0.0
    %2420 = vmatprep.subr.mxu0 0.0
    %2421 = vmatpush1.msra.mxu0 0.0
    %2422 = vmatprep.subr.mxu0 0.0
    %2423 = vmatpush1.msra.mxu0 0.0
    %2424 = vmatprep.subr.mxu0 0.0
    %2425 = vmatpush1.msra.mxu0 0.0
    %2426 = vmatprep.subr.mxu0 0.0
    %2427 = vmatpush1.msra.mxu0 0.0
    %2428 = vmatprep.mubr.f32.mxu0 0.0
    %2429 = vmatmul.mubr.f32.gmra.mrb[0].mxu0 %v2362
    %v2430 = vpop.f32.mrb[0].mxu0
    %v2431 = vadd.f32 0.0, %v2430
    %v2432 = vpop.f32.mrb[0].mxu0
    %2433 = vdwg.mxu0
    %v2434 = vmul.f32 %v2274, 0.5
    %v2436 = vsel %vm144, %v2354, 0
    %2438 = vmatprep.subr.mxu0 0.0
    %2439 = vmatpush1.msra.mxu0 %v2355
    %2440 = vmatprep.subr.mxu0 0.0
    %2441 = vmatpush1.msra.mxu0 %v2356
    %2442 = vmatprep.subr.mxu0 0.0
    %2443 = vmatpush1.msra.mxu0 %v2357
    %2444 = vmatprep.subr.mxu0 0.0
    %2445 = vmatpush1.msra.mxu0 %v2358
    %2446 = vmatprep.subr.mxu0 0.0
    %2447 = vmatpush1.msra.mxu0 0.0
    %2448 = vmatprep.subr.mxu0 0.0
    %2449 = vmatpush1.msra.mxu0 0.0
    %2450 = vmatprep.subr.mxu0 0.0
    %2451 = vmatpush1.msra.mxu0 0.0
    %2452 = vmatprep.subr.mxu0 0.0
    %2453 = vmatpush1.msra.mxu0 0.0
    %2454 = vmatprep.subr.mxu0 0.0
    %2455 = vmatpush1.msra.mxu0 0.0
    %2456 = vmatprep.subr.mxu0 0.0
    %2457 = vmatpush1.msra.mxu0 0.0
    %2458 = vmatprep.subr.mxu0 0.0
    %2459 = vmatpush1.msra.mxu0 0.0
    %2460 = vmatprep.subr.mxu0 0.0
    %2461 = vmatpush1.msra.mxu0 0.0
    %2462 = vmatprep.subr.mxu0 0.0
    %2463 = vmatpush1.msra.mxu0 0.0
    %2464 = vmatprep.subr.mxu0 0.0
    %2465 = vmatpush1.msra.mxu0 0.0
    %2466 = vmatprep.subr.mxu0 0.0
    %2467 = vmatpush1.msra.mxu0 0.0
    %2468 = vmatprep.subr.mxu0 0.0
    %2469 = vmatpush1.msra.mxu0 0.0
    %2470 = vmatprep.subr.mxu0 0.0
    %2471 = vmatpush1.msra.mxu0 0.0
    %2472 = vmatprep.subr.mxu0 0.0
    %2473 = vmatpush1.msra.mxu0 0.0
    %2474 = vmatprep.subr.mxu0 0.0
    %2475 = vmatpush1.msra.mxu0 0.0
    %2476 = vmatprep.subr.mxu0 0.0
    %2477 = vmatpush1.msra.mxu0 0.0
    %2478 = vmatprep.subr.mxu0 0.0
    %2479 = vmatpush1.msra.mxu0 0.0
    %2480 = vmatprep.subr.mxu0 0.0
    %2481 = vmatpush1.msra.mxu0 0.0
    %2482 = vmatprep.subr.mxu0 0.0
    %2483 = vmatpush1.msra.mxu0 0.0
    %2484 = vmatprep.subr.mxu0 0.0
    %2485 = vmatpush1.msra.mxu0 0.0
    %2486 = vmatprep.subr.mxu0 0.0
    %2487 = vmatpush1.msra.mxu0 0.0
    %2488 = vmatprep.subr.mxu0 0.0
    %2489 = vmatpush1.msra.mxu0 0.0
    %2490 = vmatprep.subr.mxu0 0.0
    %2491 = vmatpush1.msra.mxu0 0.0
    %2492 = vmatprep.subr.mxu0 0.0
    %2493 = vmatpush1.msra.mxu0 0.0
    %2494 = vmatprep.subr.mxu0 0.0
    %2495 = vmatpush1.msra.mxu0 0.0
    %2496 = vmatprep.subr.mxu0 0.0
    %2497 = vmatpush1.msra.mxu0 0.0
    %2498 = vmatprep.subr.mxu0 0.0
    %2499 = vmatpush1.msra.mxu0 0.0
    %2500 = vmatprep.subr.mxu0 0.0
    %2501 = vmatpush1.msra.mxu0 0.0
    %2502 = vmatprep.mubr.f32.mxu0 0.0
    %2503 = vmatmul.mubr.f32.gmra.mrb[0].mxu0 %v2436
    %v2504 = vpop.f32.mrb[0].mxu0
    %v2505 = vadd.f32 %v2431, %v2504
    %v2506 = vpop.f32.mrb[0].mxu0
    %2507 = vdwg.mxu0
    %v2508 = vld [vmem:[%s5] sm:$0x1]
    %v2510 = vlaneseq
    %v2511 = vshrl.u32 %v2510, 7
    %v2512 = vsub.s32 0, %v2511
    %v2513 = vrot.slane %v2508, %v2512
    %v2515 = vadd.f32 %v2505, %v2513
    %v2516 = vmul.f32 %v2515, 0.5
    %v2517 = vadd.f32 %v2434, %v2516
    %v2518 = vtanh.pop %v2517
    %2519 = vst.msk [vmem:[#allocation4 + $0xe] sm:$0x3] %vm229, %v2518
    %v2520 = vld [vmem:[%s9] sm:$0xff]
    %v2521 = vld [vmem:[%s9 + $0x8] sm:$0xff]
    %v2522 = vld [vmem:[%s9 + $0x10] sm:$0xff]
    %v2523 = vld [vmem:[%s9 + $0x18] sm:$0xff]
    %v2524 = vld [vmem:[%s1 + $0xe] sm:$0x3]
    %v2526 = vsel %vm144, %v2518, 0
    %2528 = vmatprep.subr.mxu0 0.0
    %2529 = vmatpush1.msra.mxu0 %v2520
    %2530 = vmatprep.subr.mxu0 0.0
    %2531 = vmatpush1.msra.mxu0 %v2521
    %2532 = vmatprep.subr.mxu0 0.0
    %2533 = vmatpush1.msra.mxu0 %v2522
    %2534 = vmatprep.subr.mxu0 0.0
    %2535 = vmatpush1.msra.mxu0 %v2523
    %2536 = vmatprep.subr.mxu0 0.0
    %2537 = vmatpush1.msra.mxu0 0.0
    %2538 = vmatprep.subr.mxu0 0.0
    %2539 = vmatpush1.msra.mxu0 0.0
    %2540 = vmatprep.subr.mxu0 0.0
    %2541 = vmatpush1.msra.mxu0 0.0
    %2542 = vmatprep.subr.mxu0 0.0
    %2543 = vmatpush1.msra.mxu0 0.0
    %2544 = vmatprep.subr.mxu0 0.0
    %2545 = vmatpush1.msra.mxu0 0.0
    %2546 = vmatprep.subr.mxu0 0.0
    %2547 = vmatpush1.msra.mxu0 0.0
    %2548 = vmatprep.subr.mxu0 0.0
    %2549 = vmatpush1.msra.mxu0 0.0
    %2550 = vmatprep.subr.mxu0 0.0
    %2551 = vmatpush1.msra.mxu0 0.0
    %2552 = vmatprep.subr.mxu0 0.0
    %2553 = vmatpush1.msra.mxu0 0.0
    %2554 = vmatprep.subr.mxu0 0.0
    %2555 = vmatpush1.msra.mxu0 0.0
    %2556 = vmatprep.subr.mxu0 0.0
    %2557 = vmatpush1.msra.mxu0 0.0
    %2558 = vmatprep.subr.mxu0 0.0
    %2559 = vmatpush1.msra.mxu0 0.0
    %2560 = vmatprep.subr.mxu0 0.0
    %2561 = vmatpush1.msra.mxu0 0.0
    %2562 = vmatprep.subr.mxu0 0.0
    %2563 = vmatpush1.msra.mxu0 0.0
    %2564 = vmatprep.subr.mxu0 0.0
    %2565 = vmatpush1.msra.mxu0 0.0
    %2566 = vmatprep.subr.mxu0 0.0
    %2567 = vmatpush1.msra.mxu0 0.0
    %2568 = vmatprep.subr.mxu0 0.0
    %2569 = vmatpush1.msra.mxu0 0.0
    %2570 = vmatprep.subr.mxu0 0.0
    %2571 = vmatpush1.msra.mxu0 0.0
    %2572 = vmatprep.subr.mxu0 0.0
    %2573 = vmatpush1.msra.mxu0 0.0
    %2574 = vmatprep.subr.mxu0 0.0
    %2575 = vmatpush1.msra.mxu0 0.0
    %2576 = vmatprep.subr.mxu0 0.0
    %2577 = vmatpush1.msra.mxu0 0.0
    %2578 = vmatprep.subr.mxu0 0.0
    %2579 = vmatpush1.msra.mxu0 0.0
    %2580 = vmatprep.subr.mxu0 0.0
    %2581 = vmatpush1.msra.mxu0 0.0
    %2582 = vmatprep.subr.mxu0 0.0
    %2583 = vmatpush1.msra.mxu0 0.0
    %2584 = vmatprep.subr.mxu0 0.0
    %2585 = vmatpush1.msra.mxu0 0.0
    %2586 = vmatprep.subr.mxu0 0.0
    %2587 = vmatpush1.msra.mxu0 0.0
    %2588 = vmatprep.subr.mxu0 0.0
    %2589 = vmatpush1.msra.mxu0 0.0
    %2590 = vmatprep.subr.mxu0 0.0
    %2591 = vmatpush1.msra.mxu0 0.0
    %2592 = vmatprep.mubr.f32.mxu0 0.0
    %2593 = vmatmul.mubr.f32.gmra.mrb[0].mxu0 %v2526
    %v2594 = vpop.f32.mrb[0].mxu0
    %v2595 = vadd.f32 %v2524, %v2594
    %v2596 = vpop.f32.mrb[0].mxu0
    %2597 = vdwg.mxu0
    %v2598 = vmul.f32 %v2518, %v2518
    %v2599 = vsub.f32 1.0, %v2598
    %v2600 = vmul.f32 %v2599, %v2595
    %v2601 = vsub.f32 %v2517, %v2600
    %v2602 = vld [vmem:[%s10] sm:$0xff]
    %v2603 = vld [vmem:[%s10 + $0x8] sm:$0xff]
    %v2604 = vld [vmem:[%s10 + $0x10] sm:$0xff]
    %v2605 = vld [vmem:[%s10 + $0x18] sm:$0xff]
    %v2607 = vsel %vm144, %v2600, 0
    %2609 = vmatprep.subr.mxu0 0.0
    %2610 = vmatpush1.msra.mxu0 %v2602
    %2611 = vmatprep.subr.mxu0 0.0
    %2612 = vmatpush1.msra.mxu0 %v2603
    %2613 = vmatprep.subr.mxu0 0.0
    %2614 = vmatpush1.msra.mxu0 %v2604
    %2615 = vmatprep.subr.mxu0 0.0
    %2616 = vmatpush1.msra.mxu0 %v2605
    %2617 = vmatprep.subr.mxu0 0.0
    %2618 = vmatpush1.msra.mxu0 0.0
    %2619 = vmatprep.subr.mxu0 0.0
    %2620 = vmatpush1.msra.mxu0 0.0
    %2621 = vmatprep.subr.mxu0 0.0
    %2622 = vmatpush1.msra.mxu0 0.0
    %2623 = vmatprep.subr.mxu0 0.0
    %2624 = vmatpush1.msra.mxu0 0.0
    %2625 = vmatprep.subr.mxu0 0.0
    %2626 = vmatpush1.msra.mxu0 0.0
    %2627 = vmatprep.subr.mxu0 0.0
    %2628 = vmatpush1.msra.mxu0 0.0
    %2629 = vmatprep.subr.mxu0 0.0
    %2630 = vmatpush1.msra.mxu0 0.0
    %2631 = vmatprep.subr.mxu0 0.0
    %2632 = vmatpush1.msra.mxu0 0.0
    %2633 = vmatprep.subr.mxu0 0.0
    %2634 = vmatpush1.msra.mxu0 0.0
    %2635 = vmatprep.subr.mxu0 0.0
    %2636 = vmatpush1.msra.mxu0 0.0
    %2637 = vmatprep.subr.mxu0 0.0
    %2638 = vmatpush1.msra.mxu0 0.0
    %2639 = vmatprep.subr.mxu0 0.0
    %2640 = vmatpush1.msra.mxu0 0.0
    %2641 = vmatprep.subr.mxu0 0.0
    %2642 = vmatpush1.msra.mxu0 0.0
    %2643 = vmatprep.subr.mxu0 0.0
    %2644 = vmatpush1.msra.mxu0 0.0
    %2645 = vmatprep.subr.mxu0 0.0
    %2646 = vmatpush1.msra.mxu0 0.0
    %2647 = vmatprep.subr.mxu0 0.0
    %2648 = vmatpush1.msra.mxu0 0.0
    %2649 = vmatprep.subr.mxu0 0.0
    %2650 = vmatpush1.msra.mxu0 0.0
    %2651 = vmatprep.subr.mxu0 0.0
    %2652 = vmatpush1.msra.mxu0 0.0
    %2653 = vmatprep.subr.mxu0 0.0
    %2654 = vmatpush1.msra.mxu0 0.0
    %2655 = vmatprep.subr.mxu0 0.0
    %2656 = vmatpush1.msra.mxu0 0.0
    %2657 = vmatprep.subr.mxu0 0.0
    %2658 = vmatpush1.msra.mxu0 0.0
    %2659 = vmatprep.subr.mxu0 0.0
    %2660 = vmatpush1.msra.mxu0 0.0
    %2661 = vmatprep.subr.mxu0 0.0
    %2662 = vmatpush1.msra.mxu0 0.0
    %2663 = vmatprep.subr.mxu0 0.0
    %2664 = vmatpush1.msra.mxu0 0.0
    %2665 = vmatprep.subr.mxu0 0.0
    %2666 = vmatpush1.msra.mxu0 0.0
    %2667 = vmatprep.subr.mxu0 0.0
    %2668 = vmatpush1.msra.mxu0 0.0
    %2669 = vmatprep.subr.mxu0 0.0
    %2670 = vmatpush1.msra.mxu0 0.0
    %2671 = vmatprep.subr.mxu0 0.0
    %2672 = vmatpush1.msra.mxu0 0.0
    %2673 = vmatprep.mubr.f32.mxu0 0.0
    %2674 = vmatmul.mubr.f32.gmra.mrb[0].mxu0 %v2607
    %v2675 = vpop.f32.mrb[0].mxu0
    %v2676 = vadd.f32 0.0, %v2675
    %v2677 = vpop.f32.mrb[0].mxu0
    %2678 = vdwg.mxu0
    %v2679 = vmul.f32 %v2676, 0.1
    %v2680 = vsub.f32 %v2353, %v2679
    %2681 = vst.msk [vmem:[#allocation2] sm:$0x3] %vm229, %v2601
    %vm2682 = vcmask 123904
    %2683 = vst.msk [vmem:[#allocation3] sm:$0x3] %vm2682, %v2680
    %v2684 = vld [vmem:[#allocation4] sm:$0xff]
    %v2685 = vld [vmem:[#allocation4 + $0x8] sm:$0xff]
    %v2686 = vld [vmem:[%s7] sm:$0xff]
    %v2687 = vld [vmem:[%s7 + $0x8] sm:$0xff]
    %v2688 = vld [vmem:[%s7 + $0x10] sm:$0xff]
    %v2689 = vld [vmem:[%s7 + $0x18] sm:$0xff]
    %v2690 = vld [vmem:[%s8] sm:$0x1]
    %v2692 = vlaneseq
    %v2693 = vshrl.u32 %v2692, 7
    %v2694 = vsub.s32 0, %v2693
    %v2695 = vrot.slane %v2690, %v2694
    %v2698 = vsel %vm144, %v2684, 0
    %v2701 = vsel %vm144, %v2685, 0
    %2703 = vmatprep.subr.mxu0 0.0
    %2704 = vmatpush1.msra.mxu0 %v2686
    %2705 = vmatprep.subr.mxu0 0.0
    %2706 = vmatpush1.msra.mxu0 %v2687
    %2707 = vmatprep.subr.mxu0 0.0
    %2708 = vmatpush1.msra.mxu0 %v2688
    %2709 = vmatprep.subr.mxu0 0.0
    %2710 = vmatpush1.msra.mxu0 %v2689
    %2711 = vmatprep.subr.mxu0 0.0
    %2712 = vmatpush1.msra.mxu0 0.0
    %2713 = vmatprep.subr.mxu0 0.0
    %2714 = vmatpush1.msra.mxu0 0.0
    %2715 = vmatprep.subr.mxu0 0.0
    %2716 = vmatpush1.msra.mxu0 0.0
    %2717 = vmatprep.subr.mxu0 0.0
    %2718 = vmatpush1.msra.mxu0 0.0
    %2719 = vmatprep.subr.mxu0 0.0
    %2720 = vmatpush1.msra.mxu0 0.0
    %2721 = vmatprep.subr.mxu0 0.0
    %2722 = vmatpush1.msra.mxu0 0.0
    %2723 = vmatprep.subr.mxu0 0.0
    %2724 = vmatpush1.msra.mxu0 0.0
    %2725 = vmatprep.subr.mxu0 0.0
    %2726 = vmatpush1.msra.mxu0 0.0
    %2727 = vmatprep.subr.mxu0 0.0
    %2728 = vmatpush1.msra.mxu0 0.0
    %2729 = vmatprep.subr.mxu0 0.0
    %2730 = vmatpush1.msra.mxu0 0.0
    %2731 = vmatprep.subr.mxu0 0.0
    %2732 = vmatpush1.msra.mxu0 0.0
    %2733 = vmatprep.subr.mxu0 0.0
    %2734 = vmatpush1.msra.mxu0 0.0
    %2735 = vmatprep.subr.mxu0 0.0
    %2736 = vmatpush1.msra.mxu0 0.0
    %2737 = vmatprep.subr.mxu0 0.0
    %2738 = vmatpush1.msra.mxu0 0.0
    %2739 = vmatprep.subr.mxu0 0.0
    %2740 = vmatpush1.msra.mxu0 0.0
    %2741 = vmatprep.subr.mxu0 0.0
    %2742 = vmatpush1.msra.mxu0 0.0
    %2743 = vmatprep.subr.mxu0 0.0
    %2744 = vmatpush1.msra.mxu0 0.0
    %2745 = vmatprep.subr.mxu0 0.0
    %2746 = vmatpush1.msra.mxu0 0.0
    %2747 = vmatprep.subr.mxu0 0.0
    %2748 = vmatpush1.msra.mxu0 0.0
    %2749 = vmatprep.subr.mxu0 0.0
    %2750 = vmatpush1.msra.mxu0 0.0
    %2751 = vmatprep.subr.mxu0 0.0
    %2752 = vmatpush1.msra.mxu0 0.0
    %2753 = vmatprep.subr.mxu0 0.0
    %2754 = vmatpush1.msra.mxu0 0.0
    %2755 = vmatprep.subr.mxu0 0.0
    %2756 = vmatpush1.msra.mxu0 0.0
    %2757 = vmatprep.subr.mxu0 0.0
    %2758 = vmatpush1.msra.mxu0 0.0
    %2759 = vmatprep.subr.mxu0 0.0
    %2760 = vmatpush1.msra.mxu0 0.0
    %2761 = vmatprep.subr.mxu0 0.0
    %2762 = vmatpush1.msra.mxu0 0.0
    %2763 = vmatprep.subr.mxu0 0.0
    %2764 = vmatpush1.msra.mxu0 0.0
    %2765 = vmatprep.subr.mxu0 0.0
    %2766 = vmatpush1.msra.mxu0 0.0
    %2767 = vmatprep.mubr.f32.mxu0 0.0
    %2768 = vmatmul.mubr.f32.gmra.mrb[0].mxu0 %v2698
    %v2769 = vpop.f32.mrb[0].mxu0
    %v2770 = vadd.f32 %v2695, %v2769
    %v2771 = vpop.f32.mrb[0].mxu0
    %2772 = vmatprep.mubr.f32.mxu0 0.0
    %2773 = vmatmul.mubr.f32.gmra.mrb[0].mxu0 %v2701
    %v2774 = vpop.f32.mrb[0].mxu0
    %v2775 = vadd.f32 %v2695, %v2774
    %v2776 = vpop.f32.mrb[0].mxu0
    %2777 = vdwg.mxu0
    %v2778 = vld [vmem:[%s0] sm:$0xff]
    %v2779 = vld [vmem:[%s0 + $0x8] sm:$0xff]
    %v2780 = vsub.f32 %v2770, %v2778
    %v2781 = vsub.f32 %v2775, %v2779
    %vm2782 = vcmask 64512
    %2783 = vst.msk [vmem:[%s11] sm:$0xff] %vm2782, %v2780
    %2784 = vst.msk [vmem:[%s11 + $0x8] sm:$0xff] %vm2782, %v2781
    // Predicated region
    $region54: #{tpu_custom_call.1} parent=1 // pred_check
      _
    $region55: #{tpu_custom_call.1} parent=1 // pred_check_branch
      %2786 = sbr.rel (0) target = $region57
    $region56: #{tpu_custom_call.1} parent=1 // pred_region
      _
    $region57: #{tpu_custom_call.1} parent=1 // pred_fallthru
      _
    // Predicated region
    $region58: #{tpu_custom_call.1} parent=1 // pred_check
      _
    $region59: #{tpu_custom_call.1} parent=1 // pred_check_branch
      %2788 = sbr.rel (0) target = $region61
    $region60: #{tpu_custom_call.1} parent=1 // pred_region
      _
    $region61: #{tpu_custom_call.1} parent=1 // pred_fallthru
      _
    %2789 = vsyncpa [#allocation6], 1

</llo_original>
